<compile_context>
chip_gen: v5e
topology: v5e:2x2
jax: 0.10.0
libtpu: 0.0.40
codegen_flags: <defaults>
</compile_context>

<pallas_src>
import jax
import jax.numpy as jnp
from jax.experimental import pallas as pl
from jax.experimental.pallas import tpu as pltpu

PAD_L = 8            # left pad along W in scratch (multiple of 8 => aligned interior store)
PAD_W = PAD_L + 1    # total extra columns: 8 left + 1 right


# ----------------------------- in-kernel helpers ------------------------------

def _store_padded(dst_ref, val):
    # val: (H, W, C) value -> interior of dst_ref: (H+2, W+PAD_W, C) zeroed scratch.
    H, W, _ = val.shape
    dst_ref[pl.ds(1, H), pl.ds(PAD_L, W), :] = val


def _conv3x3_relu(src_ref, w_ref, b_ref, im_ref):
    # src_ref: (H+2, W+PAD_W, Cin) zero-padded activation (VMEM scratch)
    # w_ref  : (9*Cin, Cout) bf16 im2col weights, b_ref: (1, Cout) f32
    # im_ref : (H0, W0, 9*Cmax) f32 reusable im2col scratch (sliced per layer)
    H = src_ref.shape[0] - 2
    W = src_ref.shape[1] - PAD_W
    Cin = src_ref.shape[2]
    Cout = w_ref.shape[1]

    # Build the im2col patch tensor in VMEM; lane order (ky, kx, cin) matches the
    # (3, 3, Cin, Cout) -> (9*Cin, Cout) weight reshape.
    t = 0
    for ky in range(3):
        for kx in range(3):
            win = src_ref[pl.ds(ky, H), pl.ds(kx + PAD_L - 1, W), :]     # (H, W, Cin)
            im_ref[pl.ds(0, H), pl.ds(0, W), pl.ds(t * Cin, Cin)] = win
            t += 1

    patches = im_ref[pl.ds(0, H), pl.ds(0, W), pl.ds(0, 9 * Cin)].reshape(H * W, 9 * Cin)
    acc = jnp.dot(patches.astype(jnp.bfloat16), w_ref[...],
                  preferred_element_type=jnp.float32)                    # (H*W, Cout)
    acc = acc + b_ref[...]
    return jnp.maximum(acc, 0.0).reshape(H, W, Cout)


def _maxpool3x3s2(src_ref):
    # MaxPool2d(3, stride=2, padding=1) on the zero-padded, post-ReLU activation held
    # in src_ref: (H+2, W+PAD_W, C).  Zero pad == torch's -inf pad because values >= 0.
    H = src_ref.shape[0] - 2
    W = src_ref.shape[1] - PAD_W
    Ho, Wo = H // 2, W // 2
    out = None
    for ky in range(3):
        for kx in range(3):
            win = src_ref[pl.ds(ky, Ho, 2), pl.ds(kx + PAD_L - 1, Wo, 2), :]
            out = win if out is None else jnp.maximum(out, win)
    return out                                                            # (Ho, Wo, C)


# --------------------------------- fused kernel -------------------------------

def _fused_cnn_kernel(x_ref,
                      w1_ref, b1_ref, w2_ref, b2_ref, w3_ref, b3_ref, w4_ref, b4_ref,
                      wl1_ref, bl1_ref, wo_ref, bo_ref,
                      o_ref,
                      c1, p1, c2, p2, c3, p3, c4, p4, im_ref):
    conv_pads = (c1, c2, c3, c4)
    pool_pads = (p1, p2, p3, p4)
    weights = ((w1_ref, b1_ref), (w2_ref, b2_ref), (w3_ref, b3_ref), (w4_ref, b4_ref))

    # Zero the padded scratches every grid step (borders must be zero; interiors are
    # fully overwritten below).  Done per-step so the kernel stays correct under
    # megacore "parallel" partitioning of the batch axis.
    for s in conv_pads + pool_pads:
        s[...] = jnp.zeros_like(s)

    a = x_ref[0]                                          # (H0, W0, C0)
    for (w_ref, b_ref), c_pad, p_pad in zip(weights, conv_pads, pool_pads):
        _store_padded(c_pad, a)                           # pad input for conv
        a = _conv3x3_relu(c_pad, w_ref, b_ref, im_ref)    # (H, W, Cout), ReLU'd
        _store_padded(p_pad, a)                           # pad conv output for pool
        a = _maxpool3x3s2(p_pad)                          # (H//2, W//2, Cout)

    # MLP head.  Final spatial map is 1x1 for this config, so the NHWC flatten below
    # equals torch.flatten of the NCHW (N, C, 1, 1) feature map.
    flat = a.reshape(1, -1).astype(jnp.bfloat16)          # (1, F4)
    h = jnp.dot(flat, wl1_ref[...], preferred_element_type=jnp.float32) + bl1_ref[...]
    h = jnp.maximum(h, 0.0).astype(jnp.bfloat16)
    logits = jnp.dot(h, wo_ref[...], preferred_element_type=jnp.float32) + bo_ref[...]

    m = jnp.max(logits, axis=-1, keepdims=True)
    e = jnp.exp(logits - m)
    inv = pl.reciprocal(jnp.sum(e, axis=-1, keepdims=True), approx=True)  # EUP slot
    o_ref[...] = (e * inv).reshape(1, 1, -1)


# ----------------------------------- wrapper -----------------------------------

def cnn_forward(x_nchw, params):
    """Fused forward pass: NCHW input -> softmax probs (N, K). One pallas_call."""
    N, C0, H0, W0 = x_nchw.shape
    assert H0 % 16 == 0 and W0 % 16 == 0, "four stride-2 pools halve H and W"
    x = jnp.transpose(x_nchw, (0, 2, 3, 1))               # NCHW -> NHWC (channels on lanes)

    conv_w = [params[f"w{i}"] for i in range(1, 5)]       # (9*Cin, Cout) bf16
    conv_b = [params[f"b{i}"] for i in range(1, 5)]       # (1, Cout) f32
    wl1, bl1 = params["w_lin1"], params["b_lin1"]
    wo, bo = params["w_out"], params["b_out"]
    K = wo.shape[1]

    chans = [C0] + [w.shape[1] for w in conv_w]           # [C0, f1, f2, f3, f4]

    def full_spec(a):
        nd = a.ndim
        return pl.BlockSpec(a.shape, lambda n, _nd=nd: (0,) * _nd)

    in_specs = [pl.BlockSpec((1, H0, W0, C0), lambda n: (n, 0, 0, 0))]
    operands = [x]
    for w_, b_ in zip(conv_w, conv_b):
        in_specs += [full_spec(w_), full_spec(b_)]
        operands += [w_, b_]
    for a in (wl1, bl1, wo, bo):
        in_specs.append(full_spec(a))
        operands.append(a)

    # VMEM scratch: per layer one zero-padded conv-input buffer and one zero-padded
    # pool-input buffer, plus one reusable im2col buffer.  Total ~200 KB.
    scratch = []
    h, w_sp = H0, W0
    for i in range(4):
        scratch.append(pltpu.VMEM((h + 2, w_sp + PAD_W, chans[i]), jnp.float32))
        scratch.append(pltpu.VMEM((h + 2, w_sp + PAD_W, chans[i + 1]), jnp.float32))
        h, w_sp = h // 2, w_sp // 2
    scratch.append(pltpu.VMEM((H0, W0, 9 * max(chans[:4])), jnp.float32))   # im2col

    out = pl.pallas_call(
        _fused_cnn_kernel,
        out_shape=jax.ShapeDtypeStruct((N, 1, K), jnp.float32),
        grid=(N,),
        in_specs=in_specs,
        out_specs=pl.BlockSpec((1, 1, K), lambda n: (n, 0, 0)),
        scratch_shapes=scratch,
        compiler_params=pltpu.CompilerParams(dimension_semantics=("parallel",)),
    )(*operands)
    return out.reshape(N, K)


# ------------------------------ parameters --------------------------------------

def init_params(key, input_dims, f1, f2, f3, f4, lin1, K):
    """Natural-layout f32 params (conv: (3,3,Cin,Cout) HWIO; linear: (in,out))."""
    c0, H, W = input_dims
    neurons = f4 * (H // 16) * (W // 16)
    ks = jax.random.split(key, 12)

    def conv_w(k, cin, cout):
        return jax.random.normal(k, (3, 3, cin, cout), jnp.float32) / jnp.sqrt(9.0 * cin)

    def lin_w(k, fin, fout):
        return jax.random.normal(k, (fin, fout), jnp.float32) / jnp.sqrt(float(fin))

    return {
        "w1": conv_w(ks[0], c0, f1), "b1": 0.01 * jax.random.normal(ks[1], (f1,), jnp.float32),
        "w2": conv_w(ks[2], f1, f2), "b2": 0.01 * jax.random.normal(ks[3], (f2,), jnp.float32),
        "w3": conv_w(ks[4], f2, f3), "b3": 0.01 * jax.random.normal(ks[5], (f3,), jnp.float32),
        "w4": conv_w(ks[6], f3, f4), "b4": 0.01 * jax.random.normal(ks[7], (f4,), jnp.float32),
        # w_lin1 rows are in the kernel's NHWC flatten order; identical to torch's
        # NCHW flatten here because the final feature map is 1x1.
        "w_lin1": lin_w(ks[8], neurons, lin1),
        "b_lin1": 0.01 * jax.random.normal(ks[9], (lin1,), jnp.float32),
        "w_out": lin_w(ks[10], lin1, K),
        "b_out": 0.01 * jax.random.normal(ks[11], (K,), jnp.float32),
    }


def prepare_params(p):
    """Convert natural-layout params to the kernel layout (done once, outside forward).

    Conv weights -> (9*Cin, Cout) im2col form, bf16 (MXU operands); linear weights bf16;
    biases stay f32, reshaped to (1, C) rows.
    """
    out = {}
    for i in range(1, 5):
        w = p[f"w{i}"]
        cin, cout = w.shape[2], w.shape[3]
        out[f"w{i}"] = w.reshape(9 * cin, cout).astype(jnp.bfloat16)
        out[f"b{i}"] = p[f"b{i}"].reshape(1, -1)
    out["w_lin1"] = p["w_lin1"].astype(jnp.bfloat16)
    out["b_lin1"] = p["b_lin1"].reshape(1, -1)
    out["w_out"] = p["w_out"].astype(jnp.bfloat16)
    out["b_out"] = p["b_out"].reshape(1, -1)
    return out


# ------------------------------------ main ---------------------------------------

if __name__ == "__main__":
    K = 10
    input_dims = (4, 16, 16)          # (C, H, W)
    f1, f2, f3, f4, lin1 = 8, 8, 16, 16, 32
    batch = 2

    key = jax.random.PRNGKey(0)
    k_x, k_p = jax.random.split(key)
    x = jax.random.normal(k_x, (batch,) + input_dims, jnp.float32)
    params = prepare_params(init_params(k_p, input_dims, f1, f2, f3, f4, lin1, K))

    forward = jax.jit(cnn_forward)
    out = jax.block_until_ready(forward(x, params))

    assert out.shape == (batch, K), out.shape
    assert bool(jnp.all(jnp.isfinite(out)))
    assert bool(jnp.all(out >= 0.0))
    # approx EUP reciprocal in the in-kernel softmax => row sums are ~1 to ~1e-3.
    assert bool(jnp.allclose(jnp.sum(out, axis=1), 1.0, atol=1e-2))
    print("KERNEL_OK")
</pallas_src>

<mosaic_0001>
module attributes {stable_mosaic.version = 11 : i64} {
  func.func @_fused_cnn_kernel(%arg0: i32, %arg1: memref<1x16x16x4xf32, #tpu.memory_space<vmem>>, %arg2: memref<36x8xbf16, #tpu.memory_space<vmem>>, %arg3: memref<1x8xf32, #tpu.memory_space<vmem>>, %arg4: memref<72x8xbf16, #tpu.memory_space<vmem>>, %arg5: memref<1x8xf32, #tpu.memory_space<vmem>>, %arg6: memref<72x16xbf16, #tpu.memory_space<vmem>>, %arg7: memref<1x16xf32, #tpu.memory_space<vmem>>, %arg8: memref<144x16xbf16, #tpu.memory_space<vmem>>, %arg9: memref<1x16xf32, #tpu.memory_space<vmem>>, %arg10: memref<16x32xbf16, #tpu.memory_space<vmem>>, %arg11: memref<1x32xf32, #tpu.memory_space<vmem>>, %arg12: memref<32x10xbf16, #tpu.memory_space<vmem>>, %arg13: memref<1x10xf32, #tpu.memory_space<vmem>>, %arg14: memref<1x1x10xf32, #tpu.memory_space<vmem>>, %arg15: memref<18x25x4xf32, #tpu.memory_space<vmem>>, %arg16: memref<18x25x8xf32, #tpu.memory_space<vmem>>, %arg17: memref<10x17x8xf32, #tpu.memory_space<vmem>>, %arg18: memref<10x17x8xf32, #tpu.memory_space<vmem>>, %arg19: memref<6x13x8xf32, #tpu.memory_space<vmem>>, %arg20: memref<6x13x16xf32, #tpu.memory_space<vmem>>, %arg21: memref<4x11x16xf32, #tpu.memory_space<vmem>>, %arg22: memref<4x11x16xf32, #tpu.memory_space<vmem>>, %arg23: memref<16x16x144xf32, #tpu.memory_space<vmem>>) attributes {dimension_semantics = [#tpu.dimension_semantics<parallel>], iteration_bounds = array<i64: 2>, scalar_prefetch = 0 : i64, scratch_operands = 9 : i64, tpu.core_type = #tpu.core_type<tc>, window_params = [{transform_indices = @transform_0, window_bounds = array<i64: 1, 16, 16, 4>}, {pipeline_mode = #tpu.pipeline_mode<synchronous>, transform_indices = @transform_1, window_bounds = array<i64: 36, 8>}, {pipeline_mode = #tpu.pipeline_mode<synchronous>, transform_indices = @transform_2, window_bounds = array<i64: 1, 8>}, {pipeline_mode = #tpu.pipeline_mode<synchronous>, transform_indices = @transform_3, window_bounds = array<i64: 72, 8>}, {pipeline_mode = #tpu.pipeline_mode<synchronous>, transform_indices = @transform_4, window_bounds = array<i64: 1, 8>}, {pipeline_mode = #tpu.pipeline_mode<synchronous>, transform_indices = @transform_5, window_bounds = array<i64: 72, 16>}, {pipeline_mode = #tpu.pipeline_mode<synchronous>, transform_indices = @transform_6, window_bounds = array<i64: 1, 16>}, {pipeline_mode = #tpu.pipeline_mode<synchronous>, transform_indices = @transform_7, window_bounds = array<i64: 144, 16>}, {pipeline_mode = #tpu.pipeline_mode<synchronous>, transform_indices = @transform_8, window_bounds = array<i64: 1, 16>}, {pipeline_mode = #tpu.pipeline_mode<synchronous>, transform_indices = @transform_9, window_bounds = array<i64: 16, 32>}, {pipeline_mode = #tpu.pipeline_mode<synchronous>, transform_indices = @transform_10, window_bounds = array<i64: 1, 32>}, {pipeline_mode = #tpu.pipeline_mode<synchronous>, transform_indices = @transform_11, window_bounds = array<i64: 32, 10>}, {pipeline_mode = #tpu.pipeline_mode<synchronous>, transform_indices = @transform_12, window_bounds = array<i64: 1, 10>}, {transform_indices = @transform_13, window_bounds = array<i64: 1, 1, 10>}]} {
    %cst = arith.constant 0.000000e+00 : f32
    %0 = vector.broadcast %cst : f32 to vector<18x25x4xf32>
    %c0 = arith.constant 0 : index
    %c0_0 = arith.constant 0 : index
    %c0_1 = arith.constant 0 : index
    %1 = vector.load %arg15[%c0, %c0_0, %c0_1] : memref<18x25x4xf32, #tpu.memory_space<vmem>>, vector<18x25x4xf32>
    tpu.vector_store %arg15[%c0, %c0_0, %c0_1], %0 {strides = array<i32>} : memref<18x25x4xf32, #tpu.memory_space<vmem>>, vector<18x25x4xf32>,
    %cst_2 = arith.constant 0.000000e+00 : f32
    %2 = vector.broadcast %cst_2 : f32 to vector<10x17x8xf32>
    %c0_3 = arith.constant 0 : index
    %c0_4 = arith.constant 0 : index
    %c0_5 = arith.constant 0 : index
    %3 = vector.load %arg17[%c0_3, %c0_4, %c0_5] : memref<10x17x8xf32, #tpu.memory_space<vmem>>, vector<10x17x8xf32>
    tpu.vector_store %arg17[%c0_3, %c0_4, %c0_5], %2 {strides = array<i32>} : memref<10x17x8xf32, #tpu.memory_space<vmem>>, vector<10x17x8xf32>,
    %cst_6 = arith.constant 0.000000e+00 : f32
    %4 = vector.broadcast %cst_6 : f32 to vector<6x13x8xf32>
    %c0_7 = arith.constant 0 : index
    %c0_8 = arith.constant 0 : index
    %c0_9 = arith.constant 0 : index
    %5 = vector.load %arg19[%c0_7, %c0_8, %c0_9] : memref<6x13x8xf32, #tpu.memory_space<vmem>>, vector<6x13x8xf32>
    tpu.vector_store %arg19[%c0_7, %c0_8, %c0_9], %4 {strides = array<i32>} : memref<6x13x8xf32, #tpu.memory_space<vmem>>, vector<6x13x8xf32>,
    %cst_10 = arith.constant 0.000000e+00 : f32
    %6 = vector.broadcast %cst_10 : f32 to vector<4x11x16xf32>
    %c0_11 = arith.constant 0 : index
    %c0_12 = arith.constant 0 : index
    %c0_13 = arith.constant 0 : index
    %7 = vector.load %arg21[%c0_11, %c0_12, %c0_13] : memref<4x11x16xf32, #tpu.memory_space<vmem>>, vector<4x11x16xf32>
    tpu.vector_store %arg21[%c0_11, %c0_12, %c0_13], %6 {strides = array<i32>} : memref<4x11x16xf32, #tpu.memory_space<vmem>>, vector<4x11x16xf32>,
    %cst_14 = arith.constant 0.000000e+00 : f32
    %8 = vector.broadcast %cst_14 : f32 to vector<18x25x8xf32>
    %c0_15 = arith.constant 0 : index
    %c0_16 = arith.constant 0 : index
    %c0_17 = arith.constant 0 : index
    %9 = vector.load %arg16[%c0_15, %c0_16, %c0_17] : memref<18x25x8xf32, #tpu.memory_space<vmem>>, vector<18x25x8xf32>
    tpu.vector_store %arg16[%c0_15, %c0_16, %c0_17], %8 {strides = array<i32>} : memref<18x25x8xf32, #tpu.memory_space<vmem>>, vector<18x25x8xf32>,
    %cst_18 = arith.constant 0.000000e+00 : f32
    %10 = vector.broadcast %cst_18 : f32 to vector<10x17x8xf32>
    %c0_19 = arith.constant 0 : index
    %c0_20 = arith.constant 0 : index
    %c0_21 = arith.constant 0 : index
    %11 = vector.load %arg18[%c0_19, %c0_20, %c0_21] : memref<10x17x8xf32, #tpu.memory_space<vmem>>, vector<10x17x8xf32>
    tpu.vector_store %arg18[%c0_19, %c0_20, %c0_21], %10 {strides = array<i32>} : memref<10x17x8xf32, #tpu.memory_space<vmem>>, vector<10x17x8xf32>,
    %cst_22 = arith.constant 0.000000e+00 : f32
    %12 = vector.broadcast %cst_22 : f32 to vector<6x13x16xf32>
    %c0_23 = arith.constant 0 : index
    %c0_24 = arith.constant 0 : index
    %c0_25 = arith.constant 0 : index
    %13 = vector.load %arg20[%c0_23, %c0_24, %c0_25] : memref<6x13x16xf32, #tpu.memory_space<vmem>>, vector<6x13x16xf32>
    tpu.vector_store %arg20[%c0_23, %c0_24, %c0_25], %12 {strides = array<i32>} : memref<6x13x16xf32, #tpu.memory_space<vmem>>, vector<6x13x16xf32>,
    %cst_26 = arith.constant 0.000000e+00 : f32
    %14 = vector.broadcast %cst_26 : f32 to vector<4x11x16xf32>
    %c0_27 = arith.constant 0 : index
    %c0_28 = arith.constant 0 : index
    %c0_29 = arith.constant 0 : index
    %15 = vector.load %arg22[%c0_27, %c0_28, %c0_29] : memref<4x11x16xf32, #tpu.memory_space<vmem>>, vector<4x11x16xf32>
    tpu.vector_store %arg22[%c0_27, %c0_28, %c0_29], %14 {strides = array<i32>} : memref<4x11x16xf32, #tpu.memory_space<vmem>>, vector<4x11x16xf32>,
    %c0_30 = arith.constant 0 : index
    %c0_31 = arith.constant 0 : index
    %c0_32 = arith.constant 0 : index
    %c0_33 = arith.constant 0 : index
    %16 = vector.load %arg1[%c0_30, %c0_31, %c0_32, %c0_33] : memref<1x16x16x4xf32, #tpu.memory_space<vmem>>, vector<1x16x16x4xf32>
    %17 = vector.shape_cast %16 : vector<1x16x16x4xf32> to vector<16x16x4xf32>
    %c1 = arith.constant 1 : index
    %c8 = arith.constant 8 : index
    %c0_34 = arith.constant 0 : index
    %18 = vector.load %arg15[%c1, %c8, %c0_34] : memref<18x25x4xf32, #tpu.memory_space<vmem>>, vector<16x16x4xf32>
    tpu.vector_store %arg15[%c1, %c8, %c0_34], %17 {strides = array<i32>} : memref<18x25x4xf32, #tpu.memory_space<vmem>>, vector<16x16x4xf32>,
    %c0_35 = arith.constant 0 : index
    %c7 = arith.constant 7 : index
    %c0_36 = arith.constant 0 : index
    %19 = vector.load %arg15[%c0_35, %c7, %c0_36] : memref<18x25x4xf32, #tpu.memory_space<vmem>>, vector<16x16x4xf32>
    %c0_37 = arith.constant 0 : index
    %c0_38 = arith.constant 0 : index
    %c0_39 = arith.constant 0 : index
    %20 = vector.load %arg23[%c0_37, %c0_38, %c0_39] : memref<16x16x144xf32, #tpu.memory_space<vmem>>, vector<16x16x4xf32>
    tpu.vector_store %arg23[%c0_37, %c0_38, %c0_39], %19 {strides = array<i32>} : memref<16x16x144xf32, #tpu.memory_space<vmem>>, vector<16x16x4xf32>,
    %c0_40 = arith.constant 0 : index
    %c8_41 = arith.constant 8 : index
    %c0_42 = arith.constant 0 : index
    %21 = vector.load %arg15[%c0_40, %c8_41, %c0_42] : memref<18x25x4xf32, #tpu.memory_space<vmem>>, vector<16x16x4xf32>
    %c0_43 = arith.constant 0 : index
    %c0_44 = arith.constant 0 : index
    %c4 = arith.constant 4 : index
    %22 = vector.load %arg23[%c0_43, %c0_44, %c4] : memref<16x16x144xf32, #tpu.memory_space<vmem>>, vector<16x16x4xf32>
    tpu.vector_store %arg23[%c0_43, %c0_44, %c4], %21 {strides = array<i32>} : memref<16x16x144xf32, #tpu.memory_space<vmem>>, vector<16x16x4xf32>,
    %c0_45 = arith.constant 0 : index
    %c9 = arith.constant 9 : index
    %c0_46 = arith.constant 0 : index
    %23 = vector.load %arg15[%c0_45, %c9, %c0_46] : memref<18x25x4xf32, #tpu.memory_space<vmem>>, vector<16x16x4xf32>
    %c0_47 = arith.constant 0 : index
    %c0_48 = arith.constant 0 : index
    %c8_49 = arith.constant 8 : index
    %24 = vector.load %arg23[%c0_47, %c0_48, %c8_49] : memref<16x16x144xf32, #tpu.memory_space<vmem>>, vector<16x16x4xf32>
    tpu.vector_store %arg23[%c0_47, %c0_48, %c8_49], %23 {strides = array<i32>} : memref<16x16x144xf32, #tpu.memory_space<vmem>>, vector<16x16x4xf32>,
    %c1_50 = arith.constant 1 : index
    %c7_51 = arith.constant 7 : index
    %c0_52 = arith.constant 0 : index
    %25 = vector.load %arg15[%c1_50, %c7_51, %c0_52] : memref<18x25x4xf32, #tpu.memory_space<vmem>>, vector<16x16x4xf32>
    %c0_53 = arith.constant 0 : index
    %c0_54 = arith.constant 0 : index
    %c12 = arith.constant 12 : index
    %26 = vector.load %arg23[%c0_53, %c0_54, %c12] : memref<16x16x144xf32, #tpu.memory_space<vmem>>, vector<16x16x4xf32>
    tpu.vector_store %arg23[%c0_53, %c0_54, %c12], %25 {strides = array<i32>} : memref<16x16x144xf32, #tpu.memory_space<vmem>>, vector<16x16x4xf32>,
    %c1_55 = arith.constant 1 : index
    %c8_56 = arith.constant 8 : index
    %c0_57 = arith.constant 0 : index
    %27 = vector.load %arg15[%c1_55, %c8_56, %c0_57] : memref<18x25x4xf32, #tpu.memory_space<vmem>>, vector<16x16x4xf32>
    %c0_58 = arith.constant 0 : index
    %c0_59 = arith.constant 0 : index
    %c16 = arith.constant 16 : index
    %28 = vector.load %arg23[%c0_58, %c0_59, %c16] : memref<16x16x144xf32, #tpu.memory_space<vmem>>, vector<16x16x4xf32>
    tpu.vector_store %arg23[%c0_58, %c0_59, %c16], %27 {strides = array<i32>} : memref<16x16x144xf32, #tpu.memory_space<vmem>>, vector<16x16x4xf32>,
    %c1_60 = arith.constant 1 : index
    %c9_61 = arith.constant 9 : index
    %c0_62 = arith.constant 0 : index
    %29 = vector.load %arg15[%c1_60, %c9_61, %c0_62] : memref<18x25x4xf32, #tpu.memory_space<vmem>>, vector<16x16x4xf32>
    %c0_63 = arith.constant 0 : index
    %c0_64 = arith.constant 0 : index
    %c20 = arith.constant 20 : index
    %30 = vector.load %arg23[%c0_63, %c0_64, %c20] : memref<16x16x144xf32, #tpu.memory_space<vmem>>, vector<16x16x4xf32>
    tpu.vector_store %arg23[%c0_63, %c0_64, %c20], %29 {strides = array<i32>} : memref<16x16x144xf32, #tpu.memory_space<vmem>>, vector<16x16x4xf32>,
    %c2 = arith.constant 2 : index
    %c7_65 = arith.constant 7 : index
    %c0_66 = arith.constant 0 : index
    %31 = vector.load %arg15[%c2, %c7_65, %c0_66] : memref<18x25x4xf32, #tpu.memory_space<vmem>>, vector<16x16x4xf32>
    %c0_67 = arith.constant 0 : index
    %c0_68 = arith.constant 0 : index
    %c24 = arith.constant 24 : index
    %32 = vector.load %arg23[%c0_67, %c0_68, %c24] : memref<16x16x144xf32, #tpu.memory_space<vmem>>, vector<16x16x4xf32>
    tpu.vector_store %arg23[%c0_67, %c0_68, %c24], %31 {strides = array<i32>} : memref<16x16x144xf32, #tpu.memory_space<vmem>>, vector<16x16x4xf32>,
    %c2_69 = arith.constant 2 : index
    %c8_70 = arith.constant 8 : index
    %c0_71 = arith.constant 0 : index
    %33 = vector.load %arg15[%c2_69, %c8_70, %c0_71] : memref<18x25x4xf32, #tpu.memory_space<vmem>>, vector<16x16x4xf32>
    %c0_72 = arith.constant 0 : index
    %c0_73 = arith.constant 0 : index
    %c28 = arith.constant 28 : index
    %34 = vector.load %arg23[%c0_72, %c0_73, %c28] : memref<16x16x144xf32, #tpu.memory_space<vmem>>, vector<16x16x4xf32>
    tpu.vector_store %arg23[%c0_72, %c0_73, %c28], %33 {strides = array<i32>} : memref<16x16x144xf32, #tpu.memory_space<vmem>>, vector<16x16x4xf32>,
    %c2_74 = arith.constant 2 : index
    %c9_75 = arith.constant 9 : index
    %c0_76 = arith.constant 0 : index
    %35 = vector.load %arg15[%c2_74, %c9_75, %c0_76] : memref<18x25x4xf32, #tpu.memory_space<vmem>>, vector<16x16x4xf32>
    %c0_77 = arith.constant 0 : index
    %c0_78 = arith.constant 0 : index
    %c32 = arith.constant 32 : index
    %36 = vector.load %arg23[%c0_77, %c0_78, %c32] : memref<16x16x144xf32, #tpu.memory_space<vmem>>, vector<16x16x4xf32>
    tpu.vector_store %arg23[%c0_77, %c0_78, %c32], %35 {strides = array<i32>} : memref<16x16x144xf32, #tpu.memory_space<vmem>>, vector<16x16x4xf32>,
    %c0_79 = arith.constant 0 : index
    %c0_80 = arith.constant 0 : index
    %c0_81 = arith.constant 0 : index
    %37 = vector.load %arg23[%c0_79, %c0_80, %c0_81] : memref<16x16x144xf32, #tpu.memory_space<vmem>>, vector<16x16x36xf32>
    %38 = vector.shape_cast %37 : vector<16x16x36xf32> to vector<256x36xf32>
    %39 = arith.truncf %38 : vector<256x36xf32> to vector<256x36xbf16>
    %c0_82 = arith.constant 0 : index
    %c0_83 = arith.constant 0 : index
    %40 = vector.load %arg2[%c0_82, %c0_83] : memref<36x8xbf16, #tpu.memory_space<vmem>>, vector<36x8xbf16>
    %cst_84 = arith.constant dense<0.000000e+00> : vector<256x8xf32>
    %41 = tpu.matmul %39, %40, %cst_84 {dimension_numbers = #tpu.dot_dimension_numbers<[1], [0], [0], [1], [0, 0, 1, 1], [], []>} : vector<256x36xbf16>, vector<36x8xbf16>, vector<256x8xf32> -> vector<256x8xf32>
    %c0_85 = arith.constant 0 : index
    %c0_86 = arith.constant 0 : index
    %42 = vector.load %arg3[%c0_85, %c0_86] : memref<1x8xf32, #tpu.memory_space<vmem>>, vector<1x8xf32>
    %43 = vector.broadcast %42 : vector<1x8xf32> to vector<256x8xf32>
    %44 = arith.addf %41, %43 : vector<256x8xf32>
    %cst_87 = arith.constant 0.000000e+00 : f32
    %45 = vector.broadcast %cst_87 : f32 to vector<256x8xf32>
    %46 = arith.maximumf %44, %45 : vector<256x8xf32>
    %47 = vector.shape_cast %46 : vector<256x8xf32> to vector<16x16x8xf32>
    %c1_88 = arith.constant 1 : index
    %c8_89 = arith.constant 8 : index
    %c0_90 = arith.constant 0 : index
    %48 = vector.load %arg16[%c1_88, %c8_89, %c0_90] : memref<18x25x8xf32, #tpu.memory_space<vmem>>, vector<16x16x8xf32>
    tpu.vector_store %arg16[%c1_88, %c8_89, %c0_90], %47 {strides = array<i32>} : memref<18x25x8xf32, #tpu.memory_space<vmem>>, vector<16x16x8xf32>,
    %c0_91 = arith.constant 0 : index
    %c7_92 = arith.constant 7 : index
    %c0_93 = arith.constant 0 : index
    %49 = tpu.strided_load %arg16[%c0_91, %c7_92, %c0_93] {strides = array<i32: 2, 2, 1>} : memref<18x25x8xf32, #tpu.memory_space<vmem>>, vector<8x8x8xf32>
    %c0_94 = arith.constant 0 : index
    %c8_95 = arith.constant 8 : index
    %c0_96 = arith.constant 0 : index
    %50 = tpu.strided_load %arg16[%c0_94, %c8_95, %c0_96] {strides = array<i32: 2, 2, 1>} : memref<18x25x8xf32, #tpu.memory_space<vmem>>, vector<8x8x8xf32>
    %51 = arith.maximumf %49, %50 : vector<8x8x8xf32>
    %c0_97 = arith.constant 0 : index
    %c9_98 = arith.constant 9 : index
    %c0_99 = arith.constant 0 : index
    %52 = tpu.strided_load %arg16[%c0_97, %c9_98, %c0_99] {strides = array<i32: 2, 2, 1>} : memref<18x25x8xf32, #tpu.memory_space<vmem>>, vector<8x8x8xf32>
    %53 = arith.maximumf %51, %52 : vector<8x8x8xf32>
    %c1_100 = arith.constant 1 : index
    %c7_101 = arith.constant 7 : index
    %c0_102 = arith.constant 0 : index
    %54 = tpu.strided_load %arg16[%c1_100, %c7_101, %c0_102] {strides = array<i32: 2, 2, 1>} : memref<18x25x8xf32, #tpu.memory_space<vmem>>, vector<8x8x8xf32>
    %55 = arith.maximumf %53, %54 : vector<8x8x8xf32>
    %c1_103 = arith.constant 1 : index
    %c8_104 = arith.constant 8 : index
    %c0_105 = arith.constant 0 : index
    %56 = tpu.strided_load %arg16[%c1_103, %c8_104, %c0_105] {strides = array<i32: 2, 2, 1>} : memref<18x25x8xf32, #tpu.memory_space<vmem>>, vector<8x8x8xf32>
    %57 = arith.maximumf %55, %56 : vector<8x8x8xf32>
    %c1_106 = arith.constant 1 : index
    %c9_107 = arith.constant 9 : index
    %c0_108 = arith.constant 0 : index
    %58 = tpu.strided_load %arg16[%c1_106, %c9_107, %c0_108] {strides = array<i32: 2, 2, 1>} : memref<18x25x8xf32, #tpu.memory_space<vmem>>, vector<8x8x8xf32>
    %59 = arith.maximumf %57, %58 : vector<8x8x8xf32>
    %c2_109 = arith.constant 2 : index
    %c7_110 = arith.constant 7 : index
    %c0_111 = arith.constant 0 : index
    %60 = tpu.strided_load %arg16[%c2_109, %c7_110, %c0_111] {strides = array<i32: 2, 2, 1>} : memref<18x25x8xf32, #tpu.memory_space<vmem>>, vector<8x8x8xf32>
    %61 = arith.maximumf %59, %60 : vector<8x8x8xf32>
    %c2_112 = arith.constant 2 : index
    %c8_113 = arith.constant 8 : index
    %c0_114 = arith.constant 0 : index
    %62 = tpu.strided_load %arg16[%c2_112, %c8_113, %c0_114] {strides = array<i32: 2, 2, 1>} : memref<18x25x8xf32, #tpu.memory_space<vmem>>, vector<8x8x8xf32>
    %63 = arith.maximumf %61, %62 : vector<8x8x8xf32>
    %c2_115 = arith.constant 2 : index
    %c9_116 = arith.constant 9 : index
    %c0_117 = arith.constant 0 : index
    %64 = tpu.strided_load %arg16[%c2_115, %c9_116, %c0_117] {strides = array<i32: 2, 2, 1>} : memref<18x25x8xf32, #tpu.memory_space<vmem>>, vector<8x8x8xf32>
    %65 = arith.maximumf %63, %64 : vector<8x8x8xf32>
    %c1_118 = arith.constant 1 : index
    %c8_119 = arith.constant 8 : index
    %c0_120 = arith.constant 0 : index
    %66 = vector.load %arg17[%c1_118, %c8_119, %c0_120] : memref<10x17x8xf32, #tpu.memory_space<vmem>>, vector<8x8x8xf32>
    tpu.vector_store %arg17[%c1_118, %c8_119, %c0_120], %65 {strides = array<i32>} : memref<10x17x8xf32, #tpu.memory_space<vmem>>, vector<8x8x8xf32>,
    %c0_121 = arith.constant 0 : index
    %c7_122 = arith.constant 7 : index
    %c0_123 = arith.constant 0 : index
    %67 = vector.load %arg17[%c0_121, %c7_122, %c0_123] : memref<10x17x8xf32, #tpu.memory_space<vmem>>, vector<8x8x8xf32>
    %c0_124 = arith.constant 0 : index
    %c0_125 = arith.constant 0 : index
    %c0_126 = arith.constant 0 : index
    %68 = vector.load %arg23[%c0_124, %c0_125, %c0_126] : memref<16x16x144xf32, #tpu.memory_space<vmem>>, vector<8x8x8xf32>
    tpu.vector_store %arg23[%c0_124, %c0_125, %c0_126], %67 {strides = array<i32>} : memref<16x16x144xf32, #tpu.memory_space<vmem>>, vector<8x8x8xf32>,
    %c0_127 = arith.constant 0 : index
    %c8_128 = arith.constant 8 : index
    %c0_129 = arith.constant 0 : index
    %69 = vector.load %arg17[%c0_127, %c8_128, %c0_129] : memref<10x17x8xf32, #tpu.memory_space<vmem>>, vector<8x8x8xf32>
    %c0_130 = arith.constant 0 : index
    %c0_131 = arith.constant 0 : index
    %c8_132 = arith.constant 8 : index
    %70 = vector.load %arg23[%c0_130, %c0_131, %c8_132] : memref<16x16x144xf32, #tpu.memory_space<vmem>>, vector<8x8x8xf32>
    tpu.vector_store %arg23[%c0_130, %c0_131, %c8_132], %69 {strides = array<i32>} : memref<16x16x144xf32, #tpu.memory_space<vmem>>, vector<8x8x8xf32>,
    %c0_133 = arith.constant 0 : index
    %c9_134 = arith.constant 9 : index
    %c0_135 = arith.constant 0 : index
    %71 = vector.load %arg17[%c0_133, %c9_134, %c0_135] : memref<10x17x8xf32, #tpu.memory_space<vmem>>, vector<8x8x8xf32>
    %c0_136 = arith.constant 0 : index
    %c0_137 = arith.constant 0 : index
    %c16_138 = arith.constant 16 : index
    %72 = vector.load %arg23[%c0_136, %c0_137, %c16_138] : memref<16x16x144xf32, #tpu.memory_space<vmem>>, vector<8x8x8xf32>
    tpu.vector_store %arg23[%c0_136, %c0_137, %c16_138], %71 {strides = array<i32>} : memref<16x16x144xf32, #tpu.memory_space<vmem>>, vector<8x8x8xf32>,
    %c1_139 = arith.constant 1 : index
    %c7_140 = arith.constant 7 : index
    %c0_141 = arith.constant 0 : index
    %73 = vector.load %arg17[%c1_139, %c7_140, %c0_141] : memref<10x17x8xf32, #tpu.memory_space<vmem>>, vector<8x8x8xf32>
    %c0_142 = arith.constant 0 : index
    %c0_143 = arith.constant 0 : index
    %c24_144 = arith.constant 24 : index
    %74 = vector.load %arg23[%c0_142, %c0_143, %c24_144] : memref<16x16x144xf32, #tpu.memory_space<vmem>>, vector<8x8x8xf32>
    tpu.vector_store %arg23[%c0_142, %c0_143, %c24_144], %73 {strides = array<i32>} : memref<16x16x144xf32, #tpu.memory_space<vmem>>, vector<8x8x8xf32>,
    %c1_145 = arith.constant 1 : index
    %c8_146 = arith.constant 8 : index
    %c0_147 = arith.constant 0 : index
    %75 = vector.load %arg17[%c1_145, %c8_146, %c0_147] : memref<10x17x8xf32, #tpu.memory_space<vmem>>, vector<8x8x8xf32>
    %c0_148 = arith.constant 0 : index
    %c0_149 = arith.constant 0 : index
    %c32_150 = arith.constant 32 : index
    %76 = vector.load %arg23[%c0_148, %c0_149, %c32_150] : memref<16x16x144xf32, #tpu.memory_space<vmem>>, vector<8x8x8xf32>
    tpu.vector_store %arg23[%c0_148, %c0_149, %c32_150], %75 {strides = array<i32>} : memref<16x16x144xf32, #tpu.memory_space<vmem>>, vector<8x8x8xf32>,
    %c1_151 = arith.constant 1 : index
    %c9_152 = arith.constant 9 : index
    %c0_153 = arith.constant 0 : index
    %77 = vector.load %arg17[%c1_151, %c9_152, %c0_153] : memref<10x17x8xf32, #tpu.memory_space<vmem>>, vector<8x8x8xf32>
    %c0_154 = arith.constant 0 : index
    %c0_155 = arith.constant 0 : index
    %c40 = arith.constant 40 : index
    %78 = vector.load %arg23[%c0_154, %c0_155, %c40] : memref<16x16x144xf32, #tpu.memory_space<vmem>>, vector<8x8x8xf32>
    tpu.vector_store %arg23[%c0_154, %c0_155, %c40], %77 {strides = array<i32>} : memref<16x16x144xf32, #tpu.memory_space<vmem>>, vector<8x8x8xf32>,
    %c2_156 = arith.constant 2 : index
    %c7_157 = arith.constant 7 : index
    %c0_158 = arith.constant 0 : index
    %79 = vector.load %arg17[%c2_156, %c7_157, %c0_158] : memref<10x17x8xf32, #tpu.memory_space<vmem>>, vector<8x8x8xf32>
    %c0_159 = arith.constant 0 : index
    %c0_160 = arith.constant 0 : index
    %c48 = arith.constant 48 : index
    %80 = vector.load %arg23[%c0_159, %c0_160, %c48] : memref<16x16x144xf32, #tpu.memory_space<vmem>>, vector<8x8x8xf32>
    tpu.vector_store %arg23[%c0_159, %c0_160, %c48], %79 {strides = array<i32>} : memref<16x16x144xf32, #tpu.memory_space<vmem>>, vector<8x8x8xf32>,
    %c2_161 = arith.constant 2 : index
    %c8_162 = arith.constant 8 : index
    %c0_163 = arith.constant 0 : index
    %81 = vector.load %arg17[%c2_161, %c8_162, %c0_163] : memref<10x17x8xf32, #tpu.memory_space<vmem>>, vector<8x8x8xf32>
    %c0_164 = arith.constant 0 : index
    %c0_165 = arith.constant 0 : index
    %c56 = arith.constant 56 : index
    %82 = vector.load %arg23[%c0_164, %c0_165, %c56] : memref<16x16x144xf32, #tpu.memory_space<vmem>>, vector<8x8x8xf32>
    tpu.vector_store %arg23[%c0_164, %c0_165, %c56], %81 {strides = array<i32>} : memref<16x16x144xf32, #tpu.memory_space<vmem>>, vector<8x8x8xf32>,
    %c2_166 = arith.constant 2 : index
    %c9_167 = arith.constant 9 : index
    %c0_168 = arith.constant 0 : index
    %83 = vector.load %arg17[%c2_166, %c9_167, %c0_168] : memref<10x17x8xf32, #tpu.memory_space<vmem>>, vector<8x8x8xf32>
    %c0_169 = arith.constant 0 : index
    %c0_170 = arith.constant 0 : index
    %c64 = arith.constant 64 : index
    %84 = vector.load %arg23[%c0_169, %c0_170, %c64] : memref<16x16x144xf32, #tpu.memory_space<vmem>>, vector<8x8x8xf32>
    tpu.vector_store %arg23[%c0_169, %c0_170, %c64], %83 {strides = array<i32>} : memref<16x16x144xf32, #tpu.memory_space<vmem>>, vector<8x8x8xf32>,
    %c0_171 = arith.constant 0 : index
    %c0_172 = arith.constant 0 : index
    %c0_173 = arith.constant 0 : index
    %85 = vector.load %arg23[%c0_171, %c0_172, %c0_173] : memref<16x16x144xf32, #tpu.memory_space<vmem>>, vector<8x8x72xf32>
    %86 = vector.shape_cast %85 : vector<8x8x72xf32> to vector<64x72xf32>
    %87 = arith.truncf %86 : vector<64x72xf32> to vector<64x72xbf16>
    %c0_174 = arith.constant 0 : index
    %c0_175 = arith.constant 0 : index
    %88 = vector.load %arg4[%c0_174, %c0_175] : memref<72x8xbf16, #tpu.memory_space<vmem>>, vector<72x8xbf16>
    %cst_176 = arith.constant dense<0.000000e+00> : vector<64x8xf32>
    %89 = tpu.matmul %87, %88, %cst_176 {dimension_numbers = #tpu.dot_dimension_numbers<[1], [0], [0], [1], [0, 0, 1, 1], [], []>} : vector<64x72xbf16>, vector<72x8xbf16>, vector<64x8xf32> -> vector<64x8xf32>
    %c0_177 = arith.constant 0 : index
    %c0_178 = arith.constant 0 : index
    %90 = vector.load %arg5[%c0_177, %c0_178] : memref<1x8xf32, #tpu.memory_space<vmem>>, vector<1x8xf32>
    %91 = vector.broadcast %90 : vector<1x8xf32> to vector<64x8xf32>
    %92 = arith.addf %89, %91 : vector<64x8xf32>
    %cst_179 = arith.constant 0.000000e+00 : f32
    %93 = vector.broadcast %cst_179 : f32 to vector<64x8xf32>
    %94 = arith.maximumf %92, %93 : vector<64x8xf32>
    %95 = vector.shape_cast %94 : vector<64x8xf32> to vector<8x8x8xf32>
    %c1_180 = arith.constant 1 : index
    %c8_181 = arith.constant 8 : index
    %c0_182 = arith.constant 0 : index
    %96 = vector.load %arg18[%c1_180, %c8_181, %c0_182] : memref<10x17x8xf32, #tpu.memory_space<vmem>>, vector<8x8x8xf32>
    tpu.vector_store %arg18[%c1_180, %c8_181, %c0_182], %95 {strides = array<i32>} : memref<10x17x8xf32, #tpu.memory_space<vmem>>, vector<8x8x8xf32>,
    %c0_183 = arith.constant 0 : index
    %c7_184 = arith.constant 7 : index
    %c0_185 = arith.constant 0 : index
    %97 = tpu.strided_load %arg18[%c0_183, %c7_184, %c0_185] {strides = array<i32: 2, 2, 1>} : memref<10x17x8xf32, #tpu.memory_space<vmem>>, vector<4x4x8xf32>
    %c0_186 = arith.constant 0 : index
    %c8_187 = arith.constant 8 : index
    %c0_188 = arith.constant 0 : index
    %98 = tpu.strided_load %arg18[%c0_186, %c8_187, %c0_188] {strides = array<i32: 2, 2, 1>} : memref<10x17x8xf32, #tpu.memory_space<vmem>>, vector<4x4x8xf32>
    %99 = arith.maximumf %97, %98 : vector<4x4x8xf32>
    %c0_189 = arith.constant 0 : index
    %c9_190 = arith.constant 9 : index
    %c0_191 = arith.constant 0 : index
    %100 = tpu.strided_load %arg18[%c0_189, %c9_190, %c0_191] {strides = array<i32: 2, 2, 1>} : memref<10x17x8xf32, #tpu.memory_space<vmem>>, vector<4x4x8xf32>
    %101 = arith.maximumf %99, %100 : vector<4x4x8xf32>
    %c1_192 = arith.constant 1 : index
    %c7_193 = arith.constant 7 : index
    %c0_194 = arith.constant 0 : index
    %102 = tpu.strided_load %arg18[%c1_192, %c7_193, %c0_194] {strides = array<i32: 2, 2, 1>} : memref<10x17x8xf32, #tpu.memory_space<vmem>>, vector<4x4x8xf32>
    %103 = arith.maximumf %101, %102 : vector<4x4x8xf32>
    %c1_195 = arith.constant 1 : index
    %c8_196 = arith.constant 8 : index
    %c0_197 = arith.constant 0 : index
    %104 = tpu.strided_load %arg18[%c1_195, %c8_196, %c0_197] {strides = array<i32: 2, 2, 1>} : memref<10x17x8xf32, #tpu.memory_space<vmem>>, vector<4x4x8xf32>
    %105 = arith.maximumf %103, %104 : vector<4x4x8xf32>
    %c1_198 = arith.constant 1 : index
    %c9_199 = arith.constant 9 : index
    %c0_200 = arith.constant 0 : index
    %106 = tpu.strided_load %arg18[%c1_198, %c9_199, %c0_200] {strides = array<i32: 2, 2, 1>} : memref<10x17x8xf32, #tpu.memory_space<vmem>>, vector<4x4x8xf32>
    %107 = arith.maximumf %105, %106 : vector<4x4x8xf32>
    %c2_201 = arith.constant 2 : index
    %c7_202 = arith.constant 7 : index
    %c0_203 = arith.constant 0 : index
    %108 = tpu.strided_load %arg18[%c2_201, %c7_202, %c0_203] {strides = array<i32: 2, 2, 1>} : memref<10x17x8xf32, #tpu.memory_space<vmem>>, vector<4x4x8xf32>
    %109 = arith.maximumf %107, %108 : vector<4x4x8xf32>
    %c2_204 = arith.constant 2 : index
    %c8_205 = arith.constant 8 : index
    %c0_206 = arith.constant 0 : index
    %110 = tpu.strided_load %arg18[%c2_204, %c8_205, %c0_206] {strides = array<i32: 2, 2, 1>} : memref<10x17x8xf32, #tpu.memory_space<vmem>>, vector<4x4x8xf32>
    %111 = arith.maximumf %109, %110 : vector<4x4x8xf32>
    %c2_207 = arith.constant 2 : index
    %c9_208 = arith.constant 9 : index
    %c0_209 = arith.constant 0 : index
    %112 = tpu.strided_load %arg18[%c2_207, %c9_208, %c0_209] {strides = array<i32: 2, 2, 1>} : memref<10x17x8xf32, #tpu.memory_space<vmem>>, vector<4x4x8xf32>
    %113 = arith.maximumf %111, %112 : vector<4x4x8xf32>
    %c1_210 = arith.constant 1 : index
    %c8_211 = arith.constant 8 : index
    %c0_212 = arith.constant 0 : index
    %114 = vector.load %arg19[%c1_210, %c8_211, %c0_212] : memref<6x13x8xf32, #tpu.memory_space<vmem>>, vector<4x4x8xf32>
    tpu.vector_store %arg19[%c1_210, %c8_211, %c0_212], %113 {strides = array<i32>} : memref<6x13x8xf32, #tpu.memory_space<vmem>>, vector<4x4x8xf32>,
    %c0_213 = arith.constant 0 : index
    %c7_214 = arith.constant 7 : index
    %c0_215 = arith.constant 0 : index
    %115 = vector.load %arg19[%c0_213, %c7_214, %c0_215] : memref<6x13x8xf32, #tpu.memory_space<vmem>>, vector<4x4x8xf32>
    %c0_216 = arith.constant 0 : index
    %c0_217 = arith.constant 0 : index
    %c0_218 = arith.constant 0 : index
    %116 = vector.load %arg23[%c0_216, %c0_217, %c0_218] : memref<16x16x144xf32, #tpu.memory_space<vmem>>, vector<4x4x8xf32>
    tpu.vector_store %arg23[%c0_216, %c0_217, %c0_218], %115 {strides = array<i32>} : memref<16x16x144xf32, #tpu.memory_space<vmem>>, vector<4x4x8xf32>,
    %c0_219 = arith.constant 0 : index
    %c8_220 = arith.constant 8 : index
    %c0_221 = arith.constant 0 : index
    %117 = vector.load %arg19[%c0_219, %c8_220, %c0_221] : memref<6x13x8xf32, #tpu.memory_space<vmem>>, vector<4x4x8xf32>
    %c0_222 = arith.constant 0 : index
    %c0_223 = arith.constant 0 : index
    %c8_224 = arith.constant 8 : index
    %118 = vector.load %arg23[%c0_222, %c0_223, %c8_224] : memref<16x16x144xf32, #tpu.memory_space<vmem>>, vector<4x4x8xf32>
    tpu.vector_store %arg23[%c0_222, %c0_223, %c8_224], %117 {strides = array<i32>} : memref<16x16x144xf32, #tpu.memory_space<vmem>>, vector<4x4x8xf32>,
    %c0_225 = arith.constant 0 : index
    %c9_226 = arith.constant 9 : index
    %c0_227 = arith.constant 0 : index
    %119 = vector.load %arg19[%c0_225, %c9_226, %c0_227] : memref<6x13x8xf32, #tpu.memory_space<vmem>>, vector<4x4x8xf32>
    %c0_228 = arith.constant 0 : index
    %c0_229 = arith.constant 0 : index
    %c16_230 = arith.constant 16 : index
    %120 = vector.load %arg23[%c0_228, %c0_229, %c16_230] : memref<16x16x144xf32, #tpu.memory_space<vmem>>, vector<4x4x8xf32>
    tpu.vector_store %arg23[%c0_228, %c0_229, %c16_230], %119 {strides = array<i32>} : memref<16x16x144xf32, #tpu.memory_space<vmem>>, vector<4x4x8xf32>,
    %c1_231 = arith.constant 1 : index
    %c7_232 = arith.constant 7 : index
    %c0_233 = arith.constant 0 : index
    %121 = vector.load %arg19[%c1_231, %c7_232, %c0_233] : memref<6x13x8xf32, #tpu.memory_space<vmem>>, vector<4x4x8xf32>
    %c0_234 = arith.constant 0 : index
    %c0_235 = arith.constant 0 : index
    %c24_236 = arith.constant 24 : index
    %122 = vector.load %arg23[%c0_234, %c0_235, %c24_236] : memref<16x16x144xf32, #tpu.memory_space<vmem>>, vector<4x4x8xf32>
    tpu.vector_store %arg23[%c0_234, %c0_235, %c24_236], %121 {strides = array<i32>} : memref<16x16x144xf32, #tpu.memory_space<vmem>>, vector<4x4x8xf32>,
    %c1_237 = arith.constant 1 : index
    %c8_238 = arith.constant 8 : index
    %c0_239 = arith.constant 0 : index
    %123 = vector.load %arg19[%c1_237, %c8_238, %c0_239] : memref<6x13x8xf32, #tpu.memory_space<vmem>>, vector<4x4x8xf32>
    %c0_240 = arith.constant 0 : index
    %c0_241 = arith.constant 0 : index
    %c32_242 = arith.constant 32 : index
    %124 = vector.load %arg23[%c0_240, %c0_241, %c32_242] : memref<16x16x144xf32, #tpu.memory_space<vmem>>, vector<4x4x8xf32>
    tpu.vector_store %arg23[%c0_240, %c0_241, %c32_242], %123 {strides = array<i32>} : memref<16x16x144xf32, #tpu.memory_space<vmem>>, vector<4x4x8xf32>,
    %c1_243 = arith.constant 1 : index
    %c9_244 = arith.constant 9 : index
    %c0_245 = arith.constant 0 : index
    %125 = vector.load %arg19[%c1_243, %c9_244, %c0_245] : memref<6x13x8xf32, #tpu.memory_space<vmem>>, vector<4x4x8xf32>
    %c0_246 = arith.constant 0 : index
    %c0_247 = arith.constant 0 : index
    %c40_248 = arith.constant 40 : index
    %126 = vector.load %arg23[%c0_246, %c0_247, %c40_248] : memref<16x16x144xf32, #tpu.memory_space<vmem>>, vector<4x4x8xf32>
    tpu.vector_store %arg23[%c0_246, %c0_247, %c40_248], %125 {strides = array<i32>} : memref<16x16x144xf32, #tpu.memory_space<vmem>>, vector<4x4x8xf32>,
    %c2_249 = arith.constant 2 : index
    %c7_250 = arith.constant 7 : index
    %c0_251 = arith.constant 0 : index
    %127 = vector.load %arg19[%c2_249, %c7_250, %c0_251] : memref<6x13x8xf32, #tpu.memory_space<vmem>>, vector<4x4x8xf32>
    %c0_252 = arith.constant 0 : index
    %c0_253 = arith.constant 0 : index
    %c48_254 = arith.constant 48 : index
    %128 = vector.load %arg23[%c0_252, %c0_253, %c48_254] : memref<16x16x144xf32, #tpu.memory_space<vmem>>, vector<4x4x8xf32>
    tpu.vector_store %arg23[%c0_252, %c0_253, %c48_254], %127 {strides = array<i32>} : memref<16x16x144xf32, #tpu.memory_space<vmem>>, vector<4x4x8xf32>,
    %c2_255 = arith.constant 2 : index
    %c8_256 = arith.constant 8 : index
    %c0_257 = arith.constant 0 : index
    %129 = vector.load %arg19[%c2_255, %c8_256, %c0_257] : memref<6x13x8xf32, #tpu.memory_space<vmem>>, vector<4x4x8xf32>
    %c0_258 = arith.constant 0 : index
    %c0_259 = arith.constant 0 : index
    %c56_260 = arith.constant 56 : index
    %130 = vector.load %arg23[%c0_258, %c0_259, %c56_260] : memref<16x16x144xf32, #tpu.memory_space<vmem>>, vector<4x4x8xf32>
    tpu.vector_store %arg23[%c0_258, %c0_259, %c56_260], %129 {strides = array<i32>} : memref<16x16x144xf32, #tpu.memory_space<vmem>>, vector<4x4x8xf32>,
    %c2_261 = arith.constant 2 : index
    %c9_262 = arith.constant 9 : index
    %c0_263 = arith.constant 0 : index
    %131 = vector.load %arg19[%c2_261, %c9_262, %c0_263] : memref<6x13x8xf32, #tpu.memory_space<vmem>>, vector<4x4x8xf32>
    %c0_264 = arith.constant 0 : index
    %c0_265 = arith.constant 0 : index
    %c64_266 = arith.constant 64 : index
    %132 = vector.load %arg23[%c0_264, %c0_265, %c64_266] : memref<16x16x144xf32, #tpu.memory_space<vmem>>, vector<4x4x8xf32>
    tpu.vector_store %arg23[%c0_264, %c0_265, %c64_266], %131 {strides = array<i32>} : memref<16x16x144xf32, #tpu.memory_space<vmem>>, vector<4x4x8xf32>,
    %c0_267 = arith.constant 0 : index
    %c0_268 = arith.constant 0 : index
    %c0_269 = arith.constant 0 : index
    %133 = vector.load %arg23[%c0_267, %c0_268, %c0_269] : memref<16x16x144xf32, #tpu.memory_space<vmem>>, vector<4x4x72xf32>
    %134 = vector.shape_cast %133 : vector<4x4x72xf32> to vector<16x72xf32>
    %135 = arith.truncf %134 : vector<16x72xf32> to vector<16x72xbf16>
    %c0_270 = arith.constant 0 : index
    %c0_271 = arith.constant 0 : index
    %136 = vector.load %arg6[%c0_270, %c0_271] : memref<72x16xbf16, #tpu.memory_space<vmem>>, vector<72x16xbf16>
    %cst_272 = arith.constant dense<0.000000e+00> : vector<16x16xf32>
    %137 = tpu.matmul %135, %136, %cst_272 {dimension_numbers = #tpu.dot_dimension_numbers<[1], [0], [0], [1], [0, 0, 1, 1], [], []>} : vector<16x72xbf16>, vector<72x16xbf16>, vector<16x16xf32> -> vector<16x16xf32>
    %c0_273 = arith.constant 0 : index
    %c0_274 = arith.constant 0 : index
    %138 = vector.load %arg7[%c0_273, %c0_274] : memref<1x16xf32, #tpu.memory_space<vmem>>, vector<1x16xf32>
    %139 = vector.broadcast %138 : vector<1x16xf32> to vector<16x16xf32>
    %140 = arith.addf %137, %139 : vector<16x16xf32>
    %cst_275 = arith.constant 0.000000e+00 : f32
    %141 = vector.broadcast %cst_275 : f32 to vector<16x16xf32>
    %142 = arith.maximumf %140, %141 : vector<16x16xf32>
    %143 = vector.shape_cast %142 : vector<16x16xf32> to vector<4x4x16xf32>
    %c1_276 = arith.constant 1 : index
    %c8_277 = arith.constant 8 : index
    %c0_278 = arith.constant 0 : index
    %144 = vector.load %arg20[%c1_276, %c8_277, %c0_278] : memref<6x13x16xf32, #tpu.memory_space<vmem>>, vector<4x4x16xf32>
    tpu.vector_store %arg20[%c1_276, %c8_277, %c0_278], %143 {strides = array<i32>} : memref<6x13x16xf32, #tpu.memory_space<vmem>>, vector<4x4x16xf32>,
    %c0_279 = arith.constant 0 : index
    %c7_280 = arith.constant 7 : index
    %c0_281 = arith.constant 0 : index
    %145 = tpu.strided_load %arg20[%c0_279, %c7_280, %c0_281] {strides = array<i32: 2, 2, 1>} : memref<6x13x16xf32, #tpu.memory_space<vmem>>, vector<2x2x16xf32>
    %c0_282 = arith.constant 0 : index
    %c8_283 = arith.constant 8 : index
    %c0_284 = arith.constant 0 : index
    %146 = tpu.strided_load %arg20[%c0_282, %c8_283, %c0_284] {strides = array<i32: 2, 2, 1>} : memref<6x13x16xf32, #tpu.memory_space<vmem>>, vector<2x2x16xf32>
    %147 = arith.maximumf %145, %146 : vector<2x2x16xf32>
    %c0_285 = arith.constant 0 : index
    %c9_286 = arith.constant 9 : index
    %c0_287 = arith.constant 0 : index
    %148 = tpu.strided_load %arg20[%c0_285, %c9_286, %c0_287] {strides = array<i32: 2, 2, 1>} : memref<6x13x16xf32, #tpu.memory_space<vmem>>, vector<2x2x16xf32>
    %149 = arith.maximumf %147, %148 : vector<2x2x16xf32>
    %c1_288 = arith.constant 1 : index
    %c7_289 = arith.constant 7 : index
    %c0_290 = arith.constant 0 : index
    %150 = tpu.strided_load %arg20[%c1_288, %c7_289, %c0_290] {strides = array<i32: 2, 2, 1>} : memref<6x13x16xf32, #tpu.memory_space<vmem>>, vector<2x2x16xf32>
    %151 = arith.maximumf %149, %150 : vector<2x2x16xf32>
    %c1_291 = arith.constant 1 : index
    %c8_292 = arith.constant 8 : index
    %c0_293 = arith.constant 0 : index
    %152 = tpu.strided_load %arg20[%c1_291, %c8_292, %c0_293] {strides = array<i32: 2, 2, 1>} : memref<6x13x16xf32, #tpu.memory_space<vmem>>, vector<2x2x16xf32>
    %153 = arith.maximumf %151, %152 : vector<2x2x16xf32>
    %c1_294 = arith.constant 1 : index
    %c9_295 = arith.constant 9 : index
    %c0_296 = arith.constant 0 : index
    %154 = tpu.strided_load %arg20[%c1_294, %c9_295, %c0_296] {strides = array<i32: 2, 2, 1>} : memref<6x13x16xf32, #tpu.memory_space<vmem>>, vector<2x2x16xf32>
    %155 = arith.maximumf %153, %154 : vector<2x2x16xf32>
    %c2_297 = arith.constant 2 : index
    %c7_298 = arith.constant 7 : index
    %c0_299 = arith.constant 0 : index
    %156 = tpu.strided_load %arg20[%c2_297, %c7_298, %c0_299] {strides = array<i32: 2, 2, 1>} : memref<6x13x16xf32, #tpu.memory_space<vmem>>, vector<2x2x16xf32>
    %157 = arith.maximumf %155, %156 : vector<2x2x16xf32>
    %c2_300 = arith.constant 2 : index
    %c8_301 = arith.constant 8 : index
    %c0_302 = arith.constant 0 : index
    %158 = tpu.strided_load %arg20[%c2_300, %c8_301, %c0_302] {strides = array<i32: 2, 2, 1>} : memref<6x13x16xf32, #tpu.memory_space<vmem>>, vector<2x2x16xf32>
    %159 = arith.maximumf %157, %158 : vector<2x2x16xf32>
    %c2_303 = arith.constant 2 : index
    %c9_304 = arith.constant 9 : index
    %c0_305 = arith.constant 0 : index
    %160 = tpu.strided_load %arg20[%c2_303, %c9_304, %c0_305] {strides = array<i32: 2, 2, 1>} : memref<6x13x16xf32, #tpu.memory_space<vmem>>, vector<2x2x16xf32>
    %161 = arith.maximumf %159, %160 : vector<2x2x16xf32>
    %c1_306 = arith.constant 1 : index
    %c8_307 = arith.constant 8 : index
    %c0_308 = arith.constant 0 : index
    %162 = vector.load %arg21[%c1_306, %c8_307, %c0_308] : memref<4x11x16xf32, #tpu.memory_space<vmem>>, vector<2x2x16xf32>
    tpu.vector_store %arg21[%c1_306, %c8_307, %c0_308], %161 {strides = array<i32>} : memref<4x11x16xf32, #tpu.memory_space<vmem>>, vector<2x2x16xf32>,
    %c0_309 = arith.constant 0 : index
    %c7_310 = arith.constant 7 : index
    %c0_311 = arith.constant 0 : index
    %163 = vector.load %arg21[%c0_309, %c7_310, %c0_311] : memref<4x11x16xf32, #tpu.memory_space<vmem>>, vector<2x2x16xf32>
    %c0_312 = arith.constant 0 : index
    %c0_313 = arith.constant 0 : index
    %c0_314 = arith.constant 0 : index
    %164 = vector.load %arg23[%c0_312, %c0_313, %c0_314] : memref<16x16x144xf32, #tpu.memory_space<vmem>>, vector<2x2x16xf32>
    tpu.vector_store %arg23[%c0_312, %c0_313, %c0_314], %163 {strides = array<i32>} : memref<16x16x144xf32, #tpu.memory_space<vmem>>, vector<2x2x16xf32>,
    %c0_315 = arith.constant 0 : index
    %c8_316 = arith.constant 8 : index
    %c0_317 = arith.constant 0 : index
    %165 = vector.load %arg21[%c0_315, %c8_316, %c0_317] : memref<4x11x16xf32, #tpu.memory_space<vmem>>, vector<2x2x16xf32>
    %c0_318 = arith.constant 0 : index
    %c0_319 = arith.constant 0 : index
    %c16_320 = arith.constant 16 : index
    %166 = vector.load %arg23[%c0_318, %c0_319, %c16_320] : memref<16x16x144xf32, #tpu.memory_space<vmem>>, vector<2x2x16xf32>
    tpu.vector_store %arg23[%c0_318, %c0_319, %c16_320], %165 {strides = array<i32>} : memref<16x16x144xf32, #tpu.memory_space<vmem>>, vector<2x2x16xf32>,
    %c0_321 = arith.constant 0 : index
    %c9_322 = arith.constant 9 : index
    %c0_323 = arith.constant 0 : index
    %167 = vector.load %arg21[%c0_321, %c9_322, %c0_323] : memref<4x11x16xf32, #tpu.memory_space<vmem>>, vector<2x2x16xf32>
    %c0_324 = arith.constant 0 : index
    %c0_325 = arith.constant 0 : index
    %c32_326 = arith.constant 32 : index
    %168 = vector.load %arg23[%c0_324, %c0_325, %c32_326] : memref<16x16x144xf32, #tpu.memory_space<vmem>>, vector<2x2x16xf32>
    tpu.vector_store %arg23[%c0_324, %c0_325, %c32_326], %167 {strides = array<i32>} : memref<16x16x144xf32, #tpu.memory_space<vmem>>, vector<2x2x16xf32>,
    %c1_327 = arith.constant 1 : index
    %c7_328 = arith.constant 7 : index
    %c0_329 = arith.constant 0 : index
    %169 = vector.load %arg21[%c1_327, %c7_328, %c0_329] : memref<4x11x16xf32, #tpu.memory_space<vmem>>, vector<2x2x16xf32>
    %c0_330 = arith.constant 0 : index
    %c0_331 = arith.constant 0 : index
    %c48_332 = arith.constant 48 : index
    %170 = vector.load %arg23[%c0_330, %c0_331, %c48_332] : memref<16x16x144xf32, #tpu.memory_space<vmem>>, vector<2x2x16xf32>
    tpu.vector_store %arg23[%c0_330, %c0_331, %c48_332], %169 {strides = array<i32>} : memref<16x16x144xf32, #tpu.memory_space<vmem>>, vector<2x2x16xf32>,
    %c1_333 = arith.constant 1 : index
    %c8_334 = arith.constant 8 : index
    %c0_335 = arith.constant 0 : index
    %171 = vector.load %arg21[%c1_333, %c8_334, %c0_335] : memref<4x11x16xf32, #tpu.memory_space<vmem>>, vector<2x2x16xf32>
    %c0_336 = arith.constant 0 : index
    %c0_337 = arith.constant 0 : index
    %c64_338 = arith.constant 64 : index
    %172 = vector.load %arg23[%c0_336, %c0_337, %c64_338] : memref<16x16x144xf32, #tpu.memory_space<vmem>>, vector<2x2x16xf32>
    tpu.vector_store %arg23[%c0_336, %c0_337, %c64_338], %171 {strides = array<i32>} : memref<16x16x144xf32, #tpu.memory_space<vmem>>, vector<2x2x16xf32>,
    %c1_339 = arith.constant 1 : index
    %c9_340 = arith.constant 9 : index
    %c0_341 = arith.constant 0 : index
    %173 = vector.load %arg21[%c1_339, %c9_340, %c0_341] : memref<4x11x16xf32, #tpu.memory_space<vmem>>, vector<2x2x16xf32>
    %c0_342 = arith.constant 0 : index
    %c0_343 = arith.constant 0 : index
    %c80 = arith.constant 80 : index
    %174 = vector.load %arg23[%c0_342, %c0_343, %c80] : memref<16x16x144xf32, #tpu.memory_space<vmem>>, vector<2x2x16xf32>
    tpu.vector_store %arg23[%c0_342, %c0_343, %c80], %173 {strides = array<i32>} : memref<16x16x144xf32, #tpu.memory_space<vmem>>, vector<2x2x16xf32>,
    %c2_344 = arith.constant 2 : index
    %c7_345 = arith.constant 7 : index
    %c0_346 = arith.constant 0 : index
    %175 = vector.load %arg21[%c2_344, %c7_345, %c0_346] : memref<4x11x16xf32, #tpu.memory_space<vmem>>, vector<2x2x16xf32>
    %c0_347 = arith.constant 0 : index
    %c0_348 = arith.constant 0 : index
    %c96 = arith.constant 96 : index
    %176 = vector.load %arg23[%c0_347, %c0_348, %c96] : memref<16x16x144xf32, #tpu.memory_space<vmem>>, vector<2x2x16xf32>
    tpu.vector_store %arg23[%c0_347, %c0_348, %c96], %175 {strides = array<i32>} : memref<16x16x144xf32, #tpu.memory_space<vmem>>, vector<2x2x16xf32>,
    %c2_349 = arith.constant 2 : index
    %c8_350 = arith.constant 8 : index
    %c0_351 = arith.constant 0 : index
    %177 = vector.load %arg21[%c2_349, %c8_350, %c0_351] : memref<4x11x16xf32, #tpu.memory_space<vmem>>, vector<2x2x16xf32>
    %c0_352 = arith.constant 0 : index
    %c0_353 = arith.constant 0 : index
    %c112 = arith.constant 112 : index
    %178 = vector.load %arg23[%c0_352, %c0_353, %c112] : memref<16x16x144xf32, #tpu.memory_space<vmem>>, vector<2x2x16xf32>
    tpu.vector_store %arg23[%c0_352, %c0_353, %c112], %177 {strides = array<i32>} : memref<16x16x144xf32, #tpu.memory_space<vmem>>, vector<2x2x16xf32>,
    %c2_354 = arith.constant 2 : index
    %c9_355 = arith.constant 9 : index
    %c0_356 = arith.constant 0 : index
    %179 = vector.load %arg21[%c2_354, %c9_355, %c0_356] : memref<4x11x16xf32, #tpu.memory_space<vmem>>, vector<2x2x16xf32>
    %c0_357 = arith.constant 0 : index
    %c0_358 = arith.constant 0 : index
    %c128 = arith.constant 128 : index
    %180 = vector.load %arg23[%c0_357, %c0_358, %c128] : memref<16x16x144xf32, #tpu.memory_space<vmem>>, vector<2x2x16xf32>
    tpu.vector_store %arg23[%c0_357, %c0_358, %c128], %179 {strides = array<i32>} : memref<16x16x144xf32, #tpu.memory_space<vmem>>, vector<2x2x16xf32>,
    %c0_359 = arith.constant 0 : index
    %c0_360 = arith.constant 0 : index
    %c0_361 = arith.constant 0 : index
    %181 = vector.load %arg23[%c0_359, %c0_360, %c0_361] : memref<16x16x144xf32, #tpu.memory_space<vmem>>, vector<2x2x144xf32>
    %182 = vector.shape_cast %181 : vector<2x2x144xf32> to vector<4x144xf32>
    %183 = arith.truncf %182 : vector<4x144xf32> to vector<4x144xbf16>
    %c0_362 = arith.constant 0 : index
    %c0_363 = arith.constant 0 : index
    %184 = vector.load %arg8[%c0_362, %c0_363] : memref<144x16xbf16, #tpu.memory_space<vmem>>, vector<144x16xbf16>
    %cst_364 = arith.constant dense<0.000000e+00> : vector<4x16xf32>
    %185 = tpu.matmul %183, %184, %cst_364 {dimension_numbers = #tpu.dot_dimension_numbers<[1], [0], [0], [1], [0, 0, 1, 1], [], []>} : vector<4x144xbf16>, vector<144x16xbf16>, vector<4x16xf32> -> vector<4x16xf32>
    %c0_365 = arith.constant 0 : index
    %c0_366 = arith.constant 0 : index
    %186 = vector.load %arg9[%c0_365, %c0_366] : memref<1x16xf32, #tpu.memory_space<vmem>>, vector<1x16xf32>
    %187 = vector.broadcast %186 : vector<1x16xf32> to vector<4x16xf32>
    %188 = arith.addf %185, %187 : vector<4x16xf32>
    %cst_367 = arith.constant 0.000000e+00 : f32
    %189 = vector.broadcast %cst_367 : f32 to vector<4x16xf32>
    %190 = arith.maximumf %188, %189 : vector<4x16xf32>
    %191 = vector.shape_cast %190 : vector<4x16xf32> to vector<2x2x16xf32>
    %c1_368 = arith.constant 1 : index
    %c8_369 = arith.constant 8 : index
    %c0_370 = arith.constant 0 : index
    %192 = vector.load %arg22[%c1_368, %c8_369, %c0_370] : memref<4x11x16xf32, #tpu.memory_space<vmem>>, vector<2x2x16xf32>
    tpu.vector_store %arg22[%c1_368, %c8_369, %c0_370], %191 {strides = array<i32>} : memref<4x11x16xf32, #tpu.memory_space<vmem>>, vector<2x2x16xf32>,
    %c0_371 = arith.constant 0 : index
    %c7_372 = arith.constant 7 : index
    %c0_373 = arith.constant 0 : index
    %193 = tpu.strided_load %arg22[%c0_371, %c7_372, %c0_373] {strides = array<i32: 2, 2, 1>} : memref<4x11x16xf32, #tpu.memory_space<vmem>>, vector<1x1x16xf32>
    %c0_374 = arith.constant 0 : index
    %c8_375 = arith.constant 8 : index
    %c0_376 = arith.constant 0 : index
    %194 = tpu.strided_load %arg22[%c0_374, %c8_375, %c0_376] {strides = array<i32: 2, 2, 1>} : memref<4x11x16xf32, #tpu.memory_space<vmem>>, vector<1x1x16xf32>
    %195 = arith.maximumf %193, %194 : vector<1x1x16xf32>
    %c0_377 = arith.constant 0 : index
    %c9_378 = arith.constant 9 : index
    %c0_379 = arith.constant 0 : index
    %196 = tpu.strided_load %arg22[%c0_377, %c9_378, %c0_379] {strides = array<i32: 2, 2, 1>} : memref<4x11x16xf32, #tpu.memory_space<vmem>>, vector<1x1x16xf32>
    %197 = arith.maximumf %195, %196 : vector<1x1x16xf32>
    %c1_380 = arith.constant 1 : index
    %c7_381 = arith.constant 7 : index
    %c0_382 = arith.constant 0 : index
    %198 = tpu.strided_load %arg22[%c1_380, %c7_381, %c0_382] {strides = array<i32: 2, 2, 1>} : memref<4x11x16xf32, #tpu.memory_space<vmem>>, vector<1x1x16xf32>
    %199 = arith.maximumf %197, %198 : vector<1x1x16xf32>
    %c1_383 = arith.constant 1 : index
    %c8_384 = arith.constant 8 : index
    %c0_385 = arith.constant 0 : index
    %200 = tpu.strided_load %arg22[%c1_383, %c8_384, %c0_385] {strides = array<i32: 2, 2, 1>} : memref<4x11x16xf32, #tpu.memory_space<vmem>>, vector<1x1x16xf32>
    %201 = arith.maximumf %199, %200 : vector<1x1x16xf32>
    %c1_386 = arith.constant 1 : index
    %c9_387 = arith.constant 9 : index
    %c0_388 = arith.constant 0 : index
    %202 = tpu.strided_load %arg22[%c1_386, %c9_387, %c0_388] {strides = array<i32: 2, 2, 1>} : memref<4x11x16xf32, #tpu.memory_space<vmem>>, vector<1x1x16xf32>
    %203 = arith.maximumf %201, %202 : vector<1x1x16xf32>
    %c2_389 = arith.constant 2 : index
    %c7_390 = arith.constant 7 : index
    %c0_391 = arith.constant 0 : index
    %204 = tpu.strided_load %arg22[%c2_389, %c7_390, %c0_391] {strides = array<i32: 2, 2, 1>} : memref<4x11x16xf32, #tpu.memory_space<vmem>>, vector<1x1x16xf32>
    %205 = arith.maximumf %203, %204 : vector<1x1x16xf32>
    %c2_392 = arith.constant 2 : index
    %c8_393 = arith.constant 8 : index
    %c0_394 = arith.constant 0 : index
    %206 = tpu.strided_load %arg22[%c2_392, %c8_393, %c0_394] {strides = array<i32: 2, 2, 1>} : memref<4x11x16xf32, #tpu.memory_space<vmem>>, vector<1x1x16xf32>
    %207 = arith.maximumf %205, %206 : vector<1x1x16xf32>
    %c2_395 = arith.constant 2 : index
    %c9_396 = arith.constant 9 : index
    %c0_397 = arith.constant 0 : index
    %208 = tpu.strided_load %arg22[%c2_395, %c9_396, %c0_397] {strides = array<i32: 2, 2, 1>} : memref<4x11x16xf32, #tpu.memory_space<vmem>>, vector<1x1x16xf32>
    %209 = arith.maximumf %207, %208 : vector<1x1x16xf32>
    %210 = vector.shape_cast %209 : vector<1x1x16xf32> to vector<1x16xf32>
    %211 = arith.truncf %210 : vector<1x16xf32> to vector<1x16xbf16>
    %c0_398 = arith.constant 0 : index
    %c0_399 = arith.constant 0 : index
    %212 = vector.load %arg10[%c0_398, %c0_399] : memref<16x32xbf16, #tpu.memory_space<vmem>>, vector<16x32xbf16>
    %cst_400 = arith.constant dense<0.000000e+00> : vector<1x32xf32>
    %213 = tpu.matmul %211, %212, %cst_400 {dimension_numbers = #tpu.dot_dimension_numbers<[1], [0], [0], [1], [0, 0, 1, 1], [], []>} : vector<1x16xbf16>, vector<16x32xbf16>, vector<1x32xf32> -> vector<1x32xf32>
    %c0_401 = arith.constant 0 : index
    %c0_402 = arith.constant 0 : index
    %214 = vector.load %arg11[%c0_401, %c0_402] : memref<1x32xf32, #tpu.memory_space<vmem>>, vector<1x32xf32>
    %215 = arith.addf %213, %214 : vector<1x32xf32>
    %cst_403 = arith.constant 0.000000e+00 : f32
    %216 = vector.broadcast %cst_403 : f32 to vector<1x32xf32>
    %217 = arith.maximumf %215, %216 : vector<1x32xf32>
    %218 = arith.truncf %217 : vector<1x32xf32> to vector<1x32xbf16>
    %c0_404 = arith.constant 0 : index
    %c0_405 = arith.constant 0 : index
    %219 = vector.load %arg12[%c0_404, %c0_405] : memref<32x10xbf16, #tpu.memory_space<vmem>>, vector<32x10xbf16>
    %cst_406 = arith.constant dense<0.000000e+00> : vector<1x10xf32>
    %220 = tpu.matmul %218, %219, %cst_406 {dimension_numbers = #tpu.dot_dimension_numbers<[1], [0], [0], [1], [0, 0, 1, 1], [], []>} : vector<1x32xbf16>, vector<32x10xbf16>, vector<1x10xf32> -> vector<1x10xf32>
    %c0_407 = arith.constant 0 : index
    %c0_408 = arith.constant 0 : index
    %221 = vector.load %arg13[%c0_407, %c0_408] : memref<1x10xf32, #tpu.memory_space<vmem>>, vector<1x10xf32>
    %222 = arith.addf %220, %221 : vector<1x10xf32>
    %cst_409 = arith.constant dense<0xFF800000> : vector<1xf32>
    %223 = vector.multi_reduction <maximumf>, %222, %cst_409 [1] : vector<1x10xf32> to vector<1xf32>
    %224 = vector.shape_cast %223 : vector<1xf32> to vector<1x1xf32>
    %225 = vector.broadcast %224 : vector<1x1xf32> to vector<1x10xf32>
    %226 = arith.subf %222, %225 : vector<1x10xf32>
    %227 = math.exp %226 : vector<1x10xf32>
    %cst_410 = arith.constant dense<0.000000e+00> : vector<1xf32>
    %228 = vector.multi_reduction <add>, %227, %cst_410 [1] : vector<1x10xf32> to vector<1xf32>
    %229 = vector.shape_cast %228 : vector<1xf32> to vector<1x1xf32>
    %230 = tpu.reciprocal %229 {approx = true} : vector<1x1xf32> -> vector<1x1xf32>
    %231 = vector.broadcast %230 : vector<1x1xf32> to vector<1x10xf32>
    %232 = arith.mulf %227, %231 : vector<1x10xf32>
    %233 = vector.shape_cast %232 : vector<1x10xf32> to vector<1x1x10xf32>
    %c0_411 = arith.constant 0 : index
    %c0_412 = arith.constant 0 : index
    %c0_413 = arith.constant 0 : index
    %234 = vector.load %arg14[%c0_411, %c0_412, %c0_413] : memref<1x1x10xf32, #tpu.memory_space<vmem>>, vector<1x1x10xf32>
    tpu.vector_store %arg14[%c0_411, %c0_412, %c0_413], %233 {strides = array<i32>} : memref<1x1x10xf32, #tpu.memory_space<vmem>>, vector<1x1x10xf32>,
    return
  }
  func.func @transform_0(%arg0: i32) -> (i32, i32, i32, i32) {
    %c0_i32 = arith.constant 0 : i32
    %c0_i32_0 = arith.constant 0 : i32
    %c0_i32_1 = arith.constant 0 : i32
    %c0_i32_2 = arith.constant 0 : i32
    return %arg0, %c0_i32, %c0_i32_0, %c0_i32_1 : i32, i32, i32, i32
  }
  func.func @transform_1(%arg0: i32) -> (i32, i32) {
    %c0_i32 = arith.constant 0 : i32
    %c0_i32_0 = arith.constant 0 : i32
    %c0_i32_1 = arith.constant 0 : i32
    return %c0_i32, %c0_i32_0 : i32, i32
  }
  func.func @transform_2(%arg0: i32) -> (i32, i32) {
    %c0_i32 = arith.constant 0 : i32
    %c0_i32_0 = arith.constant 0 : i32
    %c0_i32_1 = arith.constant 0 : i32
    return %c0_i32, %c0_i32_0 : i32, i32
  }
  func.func @transform_3(%arg0: i32) -> (i32, i32) {
    %c0_i32 = arith.constant 0 : i32
    %c0_i32_0 = arith.constant 0 : i32
    %c0_i32_1 = arith.constant 0 : i32
    return %c0_i32, %c0_i32_0 : i32, i32
  }
  func.func @transform_4(%arg0: i32) -> (i32, i32) {
    %c0_i32 = arith.constant 0 : i32
    %c0_i32_0 = arith.constant 0 : i32
    %c0_i32_1 = arith.constant 0 : i32
    return %c0_i32, %c0_i32_0 : i32, i32
  }
  func.func @transform_5(%arg0: i32) -> (i32, i32) {
    %c0_i32 = arith.constant 0 : i32
    %c0_i32_0 = arith.constant 0 : i32
    %c0_i32_1 = arith.constant 0 : i32
    return %c0_i32, %c0_i32_0 : i32, i32
  }
  func.func @transform_6(%arg0: i32) -> (i32, i32) {
    %c0_i32 = arith.constant 0 : i32
    %c0_i32_0 = arith.constant 0 : i32
    %c0_i32_1 = arith.constant 0 : i32
    return %c0_i32, %c0_i32_0 : i32, i32
  }
  func.func @transform_7(%arg0: i32) -> (i32, i32) {
    %c0_i32 = arith.constant 0 : i32
    %c0_i32_0 = arith.constant 0 : i32
    %c0_i32_1 = arith.constant 0 : i32
    return %c0_i32, %c0_i32_0 : i32, i32
  }
  func.func @transform_8(%arg0: i32) -> (i32, i32) {
    %c0_i32 = arith.constant 0 : i32
    %c0_i32_0 = arith.constant 0 : i32
    %c0_i32_1 = arith.constant 0 : i32
    return %c0_i32, %c0_i32_0 : i32, i32
  }
  func.func @transform_9(%arg0: i32) -> (i32, i32) {
    %c0_i32 = arith.constant 0 : i32
    %c0_i32_0 = arith.constant 0 : i32
    %c0_i32_1 = arith.constant 0 : i32
    return %c0_i32, %c0_i32_0 : i32, i32
  }
  func.func @transform_10(%arg0: i32) -> (i32, i32) {
    %c0_i32 = arith.constant 0 : i32
    %c0_i32_0 = arith.constant 0 : i32
    %c0_i32_1 = arith.constant 0 : i32
    return %c0_i32, %c0_i32_0 : i32, i32
  }
  func.func @transform_11(%arg0: i32) -> (i32, i32) {
    %c0_i32 = arith.constant 0 : i32
    %c0_i32_0 = arith.constant 0 : i32
    %c0_i32_1 = arith.constant 0 : i32
    return %c0_i32, %c0_i32_0 : i32, i32
  }
  func.func @transform_12(%arg0: i32) -> (i32, i32) {
    %c0_i32 = arith.constant 0 : i32
    %c0_i32_0 = arith.constant 0 : i32
    %c0_i32_1 = arith.constant 0 : i32
    return %c0_i32, %c0_i32_0 : i32, i32
  }
  func.func @transform_13(%arg0: i32) -> (i32, i32, i32) {
    %c0_i32 = arith.constant 0 : i32
    %c0_i32_0 = arith.constant 0 : i32
    %c0_i32_1 = arith.constant 0 : i32
    return %arg0, %c0_i32, %c0_i32_0 : i32, i32, i32
  }
}

</mosaic_0001>

<llo_original>
// kernel: cnn_forward.1
$region0: #{cnn_forward.1}
  #allocation0 [shape = 'u32[]', space=smem, size = 0x4, offset = 0x4, fixed_abs, tag = 'smem constant byte address 0x4 - core index']
  #allocation1 [shape = 'u32[72,128]{1,0:T(1,128)}', space=vmem, size = 0x9000, scoped, tag = 'internal scratch']
  #allocation2 [shape = 'f32[18,25,4]{2,1,0:T(8,128)}', space=vmem, size = 0x48000, scoped, tag = 'scratch operand']
  #allocation3 [shape = 'f32[18,25,8]{2,1,0:T(8,128)}', space=vmem, size = 0x48000, scoped, tag = 'scratch operand']
  #allocation4 [shape = 'f32[10,17,8]{2,1,0:T(8,128)}', space=vmem, size = 0x1e000, scoped, tag = 'scratch operand']
  #allocation5 [shape = 'f32[10,17,8]{2,1,0:T(8,128)}', space=vmem, size = 0x1e000, scoped, tag = 'scratch operand']
  #allocation6 [shape = 'f32[6,13,8]{2,1,0:T(8,128)}', space=vmem, size = 0xc000, scoped, tag = 'scratch operand']
  #allocation7 [shape = 'f32[6,13,16]{2,1,0:T(8,128)}', space=vmem, size = 0xc000, scoped, tag = 'scratch operand']
  #allocation8 [shape = 'f32[4,11,16]{2,1,0:T(8,128)}', space=vmem, size = 0x8000, scoped, tag = 'scratch operand']
  #allocation9 [shape = 'f32[4,11,16]{2,1,0:T(8,128)}', space=vmem, size = 0x8000, scoped, tag = 'scratch operand']
  #allocation10 [shape = 'f32[16,16,144]{2,1,0:T(8,128)}', space=vmem, size = 0x40000, scoped, tag = 'scratch operand']
  %s0 = inlined_call_operand.vmem [shape: f32[2,16,16,4], index: 0, kind: input, shape index: {}]
  %s1 = inlined_call_operand.vmem [shape: bf16[36,8], index: 1, kind: input, shape index: {}]
  %s2 = inlined_call_operand.vmem [shape: f32[1,8], index: 2, kind: input, shape index: {}]
  %s3 = inlined_call_operand.vmem [shape: bf16[72,8], index: 3, kind: input, shape index: {}]
  %s4 = inlined_call_operand.vmem [shape: f32[1,8], index: 4, kind: input, shape index: {}]
  %s5 = inlined_call_operand.vmem [shape: bf16[72,16], index: 5, kind: input, shape index: {}]
  %s6 = inlined_call_operand.vmem [shape: f32[1,16], index: 6, kind: input, shape index: {}]
  %s7 = inlined_call_operand.vmem [shape: bf16[144,16], index: 7, kind: input, shape index: {}]
  %s8 = inlined_call_operand.vmem [shape: f32[1,16], index: 8, kind: input, shape index: {}]
  %s9 = inlined_call_operand.vmem [shape: bf16[16,32], index: 9, kind: input, shape index: {}]
  %s10 = inlined_call_operand.vmem [shape: f32[1,32], index: 10, kind: input, shape index: {}]
  %s11 = inlined_call_operand.vmem [shape: bf16[32,10], index: 11, kind: input, shape index: {}]
  %s12 = inlined_call_operand.vmem [shape: f32[1,10], index: 12, kind: input, shape index: {}]
  %s13 = inlined_call_operand.hbm [shape: f32[2,1,10], index: 13, kind: output, shape index: {}]
  %s14 = sld [smem:[#allocation0]]
  $region85: #{cnn_forward.1} parent=0
    _
  %s16 = ssub.s32 1, %s14
  %s17 = scalar_select 0, %s16, %s14
  $region1: #{cnn_forward.1} parent=0
    #allocation11 [shape = 'u8[1024]{0}', space=vmem, size = 0x400, scoped, tag = 'output window, operand 0']
    #allocation12 [shape = 's32[2]{0}', space=sflag, size = 0x8, scoped, tag = 'scoped memory for cnn_forward.1']
    %18 = vsyncpa [#allocation12], 0
    %s19 = scalar_lea.sflag [#allocation12], 1
    %20 = vsyncpa %s19, 0
    loop: start=0, step=1, limit=4
    $region2: #{cnn_forward.1} parent=1 // loop_pre_header
      _
    $region3: #{cnn_forward.1} parent=1 // loop_header
      %s22 = sphi 0, %s26
      %p23 = scmp.ge.s32.totalorder %s22, 4
      %s32 = sphi 0, %s34
      %s35 = sphi 0, %s32
      %s36 = sphi 0, %s35
      %s52 = sphi 0, %s36
      %s56 = sphi 0, %s56
      %s58 = sphi 0, %s56
      %s59 = sphi 0, %s58
      %s73 = sphi 0, %s59
      %s77 = sphi 0, %s77
      %s79 = sphi 0, %s77
      %s80 = sphi 0, %s79
      %s94 = sphi 0, %s80
      %s98 = sphi 0, %s98
      %s100 = sphi 0, %s98
      %s101 = sphi 0, %s100
      %s115 = sphi 0, %s101
      %s119 = sphi 0, %s119
      %s121 = sphi 0, %s119
      %s122 = sphi 0, %s121
      %s136 = sphi 0, %s122
      %s140 = sphi 0, %s140
      %s142 = sphi 0, %s140
      %s143 = sphi 0, %s142
      %s157 = sphi 0, %s143
      %s161 = sphi 0, %s161
      %s163 = sphi 0, %s161
      %s164 = sphi 0, %s163
      %s178 = sphi 0, %s164
      %s182 = sphi 0, %s182
      %s184 = sphi 0, %s182
      %s185 = sphi 0, %s184
      %s199 = sphi 0, %s185
      %s203 = sphi 0, %s203
      %s205 = sphi 0, %s203
      %s206 = sphi 0, %s205
      %s220 = sphi 0, %s206
      %s224 = sphi 0, %s224
      %s226 = sphi 0, %s224
      %s227 = sphi 0, %s226
      %s241 = sphi 0, %s227
      %s245 = sphi 0, %s245
      %s247 = sphi 0, %s245
      %s248 = sphi 0, %s247
      %s262 = sphi 0, %s248
      %s266 = sphi 0, %s266
      %s268 = sphi 0, %s266
      %s269 = sphi 0, %s268
      %s283 = sphi 0, %s269
      %s287 = sphi 0, %s287
      %s289 = sphi 0, %s287
      %s290 = sphi 0, %s289
      %s304 = sphi 0, %s290
      %s310 = sphi 0, %s312
      %s313 = sphi 0, %s310
      %s314 = sphi 0, %s313
      %s330 = sphi 0, %s314
    $region4: #{cnn_forward.1} parent=1 // loop_header_branch
      %25 = sbr.rel (%p23) target = $region8
    $region5: #{cnn_forward.1} parent=1 // loop_body
      %s27 = ssub.s32 %s22, 1
      %s28 = ssub.s32 %s22, 2
      %s29 = sadd.s32 %s22, 1
      %s30 = ssub.s32 %s22, %s29
      %p31 = scmp.eq.s32.totalorder %s30, 0
      %s33 = sadd.s32 %s32, 1
      %s34 = scalar_select %p31, %s32, %s33
      %p37 = pneg %p31
      %p38 = scmp.eq.s32.totalorder %s22, 1
      %p39 = por %p37, %p38
      %p40 = scmp.ne.s32.totalorder %s32, %s35
      %p41 = scmp.eq.s32.totalorder %s22, 0
      %p42 = por %p40, %p41
      %p43 = scmp.ne.s32.totalorder %s32, %s35
      %p44 = scmp.eq.s32.totalorder %s27, 1
      %p45 = por %p43, %p44
      %p46 = scmp.ne.s32.totalorder %s35, %s36
      %p47 = scmp.eq.s32.totalorder %s27, 0
      %p48 = por %p46, %p47
      %p49 = scmp.ne.s32.totalorder %s35, %s36
      %p50 = scmp.eq.s32.totalorder %s28, 1
      %p51 = por %p49, %p50
      %p53 = scmp.ne.s32.totalorder %s36, %s52
      %p54 = scmp.eq.s32.totalorder %s28, 0
      %p55 = por %p53, %p54
      %s57 = sadd.s32 %s56, 1
      %p60 = scmp.eq.s32.totalorder %s22, 1
      %p61 = scmp.ne.s32.totalorder %s56, %s58
      %p62 = scmp.eq.s32.totalorder %s22, 0
      %p63 = por %p61, %p62
      %p64 = scmp.ne.s32.totalorder %s56, %s58
      %p65 = scmp.eq.s32.totalorder %s27, 1
      %p66 = por %p64, %p65
      %p67 = scmp.ne.s32.totalorder %s58, %s59
      %p68 = scmp.eq.s32.totalorder %s27, 0
      %p69 = por %p67, %p68
      %p70 = scmp.ne.s32.totalorder %s58, %s59
      %p71 = scmp.eq.s32.totalorder %s28, 1
      %p72 = por %p70, %p71
      %p74 = scmp.ne.s32.totalorder %s59, %s73
      %p75 = scmp.eq.s32.totalorder %s28, 0
      %p76 = por %p74, %p75
      %s78 = sadd.s32 %s77, 1
      %p81 = scmp.eq.s32.totalorder %s22, 1
      %p82 = scmp.ne.s32.totalorder %s77, %s79
      %p83 = scmp.eq.s32.totalorder %s22, 0
      %p84 = por %p82, %p83
      %p85 = scmp.ne.s32.totalorder %s77, %s79
      %p86 = scmp.eq.s32.totalorder %s27, 1
      %p87 = por %p85, %p86
      %p88 = scmp.ne.s32.totalorder %s79, %s80
      %p89 = scmp.eq.s32.totalorder %s27, 0
      %p90 = por %p88, %p89
      %p91 = scmp.ne.s32.totalorder %s79, %s80
      %p92 = scmp.eq.s32.totalorder %s28, 1
      %p93 = por %p91, %p92
      %p95 = scmp.ne.s32.totalorder %s80, %s94
      %p96 = scmp.eq.s32.totalorder %s28, 0
      %p97 = por %p95, %p96
      %s99 = sadd.s32 %s98, 1
      %p102 = scmp.eq.s32.totalorder %s22, 1
      %p103 = scmp.ne.s32.totalorder %s98, %s100
      %p104 = scmp.eq.s32.totalorder %s22, 0
      %p105 = por %p103, %p104
      %p106 = scmp.ne.s32.totalorder %s98, %s100
      %p107 = scmp.eq.s32.totalorder %s27, 1
      %p108 = por %p106, %p107
      %p109 = scmp.ne.s32.totalorder %s100, %s101
      %p110 = scmp.eq.s32.totalorder %s27, 0
      %p111 = por %p109, %p110
      %p112 = scmp.ne.s32.totalorder %s100, %s101
      %p113 = scmp.eq.s32.totalorder %s28, 1
      %p114 = por %p112, %p113
      %p116 = scmp.ne.s32.totalorder %s101, %s115
      %p117 = scmp.eq.s32.totalorder %s28, 0
      %p118 = por %p116, %p117
      %s120 = sadd.s32 %s119, 1
      %p123 = scmp.eq.s32.totalorder %s22, 1
      %p124 = scmp.ne.s32.totalorder %s119, %s121
      %p125 = scmp.eq.s32.totalorder %s22, 0
      %p126 = por %p124, %p125
      %p127 = scmp.ne.s32.totalorder %s119, %s121
      %p128 = scmp.eq.s32.totalorder %s27, 1
      %p129 = por %p127, %p128
      %p130 = scmp.ne.s32.totalorder %s121, %s122
      %p131 = scmp.eq.s32.totalorder %s27, 0
      %p132 = por %p130, %p131
      %p133 = scmp.ne.s32.totalorder %s121, %s122
      %p134 = scmp.eq.s32.totalorder %s28, 1
      %p135 = por %p133, %p134
      %p137 = scmp.ne.s32.totalorder %s122, %s136
      %p138 = scmp.eq.s32.totalorder %s28, 0
      %p139 = por %p137, %p138
      %s141 = sadd.s32 %s140, 1
      %p144 = scmp.eq.s32.totalorder %s22, 1
      %p145 = scmp.ne.s32.totalorder %s140, %s142
      %p146 = scmp.eq.s32.totalorder %s22, 0
      %p147 = por %p145, %p146
      %p148 = scmp.ne.s32.totalorder %s140, %s142
      %p149 = scmp.eq.s32.totalorder %s27, 1
      %p150 = por %p148, %p149
      %p151 = scmp.ne.s32.totalorder %s142, %s143
      %p152 = scmp.eq.s32.totalorder %s27, 0
      %p153 = por %p151, %p152
      %p154 = scmp.ne.s32.totalorder %s142, %s143
      %p155 = scmp.eq.s32.totalorder %s28, 1
      %p156 = por %p154, %p155
      %p158 = scmp.ne.s32.totalorder %s143, %s157
      %p159 = scmp.eq.s32.totalorder %s28, 0
      %p160 = por %p158, %p159
      %s162 = sadd.s32 %s161, 1
      %p165 = scmp.eq.s32.totalorder %s22, 1
      %p166 = scmp.ne.s32.totalorder %s161, %s163
      %p167 = scmp.eq.s32.totalorder %s22, 0
      %p168 = por %p166, %p167
      %p169 = scmp.ne.s32.totalorder %s161, %s163
      %p170 = scmp.eq.s32.totalorder %s27, 1
      %p171 = por %p169, %p170
      %p172 = scmp.ne.s32.totalorder %s163, %s164
      %p173 = scmp.eq.s32.totalorder %s27, 0
      %p174 = por %p172, %p173
      %p175 = scmp.ne.s32.totalorder %s163, %s164
      %p176 = scmp.eq.s32.totalorder %s28, 1
      %p177 = por %p175, %p176
      %p179 = scmp.ne.s32.totalorder %s164, %s178
      %p180 = scmp.eq.s32.totalorder %s28, 0
      %p181 = por %p179, %p180
      %s183 = sadd.s32 %s182, 1
      %p186 = scmp.eq.s32.totalorder %s22, 1
      %p187 = scmp.ne.s32.totalorder %s182, %s184
      %p188 = scmp.eq.s32.totalorder %s22, 0
      %p189 = por %p187, %p188
      %p190 = scmp.ne.s32.totalorder %s182, %s184
      %p191 = scmp.eq.s32.totalorder %s27, 1
      %p192 = por %p190, %p191
      %p193 = scmp.ne.s32.totalorder %s184, %s185
      %p194 = scmp.eq.s32.totalorder %s27, 0
      %p195 = por %p193, %p194
      %p196 = scmp.ne.s32.totalorder %s184, %s185
      %p197 = scmp.eq.s32.totalorder %s28, 1
      %p198 = por %p196, %p197
      %p200 = scmp.ne.s32.totalorder %s185, %s199
      %p201 = scmp.eq.s32.totalorder %s28, 0
      %p202 = por %p200, %p201
      %s204 = sadd.s32 %s203, 1
      %p207 = scmp.eq.s32.totalorder %s22, 1
      %p208 = scmp.ne.s32.totalorder %s203, %s205
      %p209 = scmp.eq.s32.totalorder %s22, 0
      %p210 = por %p208, %p209
      %p211 = scmp.ne.s32.totalorder %s203, %s205
      %p212 = scmp.eq.s32.totalorder %s27, 1
      %p213 = por %p211, %p212
      %p214 = scmp.ne.s32.totalorder %s205, %s206
      %p215 = scmp.eq.s32.totalorder %s27, 0
      %p216 = por %p214, %p215
      %p217 = scmp.ne.s32.totalorder %s205, %s206
      %p218 = scmp.eq.s32.totalorder %s28, 1
      %p219 = por %p217, %p218
      %p221 = scmp.ne.s32.totalorder %s206, %s220
      %p222 = scmp.eq.s32.totalorder %s28, 0
      %p223 = por %p221, %p222
      %s225 = sadd.s32 %s224, 1
      %p228 = scmp.eq.s32.totalorder %s22, 1
      %p229 = scmp.ne.s32.totalorder %s224, %s226
      %p230 = scmp.eq.s32.totalorder %s22, 0
      %p231 = por %p229, %p230
      %p232 = scmp.ne.s32.totalorder %s224, %s226
      %p233 = scmp.eq.s32.totalorder %s27, 1
      %p234 = por %p232, %p233
      %p235 = scmp.ne.s32.totalorder %s226, %s227
      %p236 = scmp.eq.s32.totalorder %s27, 0
      %p237 = por %p235, %p236
      %p238 = scmp.ne.s32.totalorder %s226, %s227
      %p239 = scmp.eq.s32.totalorder %s28, 1
      %p240 = por %p238, %p239
      %p242 = scmp.ne.s32.totalorder %s227, %s241
      %p243 = scmp.eq.s32.totalorder %s28, 0
      %p244 = por %p242, %p243
      %s246 = sadd.s32 %s245, 1
      %p249 = scmp.eq.s32.totalorder %s22, 1
      %p250 = scmp.ne.s32.totalorder %s245, %s247
      %p251 = scmp.eq.s32.totalorder %s22, 0
      %p252 = por %p250, %p251
      %p253 = scmp.ne.s32.totalorder %s245, %s247
      %p254 = scmp.eq.s32.totalorder %s27, 1
      %p255 = por %p253, %p254
      %p256 = scmp.ne.s32.totalorder %s247, %s248
      %p257 = scmp.eq.s32.totalorder %s27, 0
      %p258 = por %p256, %p257
      %p259 = scmp.ne.s32.totalorder %s247, %s248
      %p260 = scmp.eq.s32.totalorder %s28, 1
      %p261 = por %p259, %p260
      %p263 = scmp.ne.s32.totalorder %s248, %s262
      %p264 = scmp.eq.s32.totalorder %s28, 0
      %p265 = por %p263, %p264
      %s267 = sadd.s32 %s266, 1
      %p270 = scmp.eq.s32.totalorder %s22, 1
      %p271 = scmp.ne.s32.totalorder %s266, %s268
      %p272 = scmp.eq.s32.totalorder %s22, 0
      %p273 = por %p271, %p272
      %p274 = scmp.ne.s32.totalorder %s266, %s268
      %p275 = scmp.eq.s32.totalorder %s27, 1
      %p276 = por %p274, %p275
      %p277 = scmp.ne.s32.totalorder %s268, %s269
      %p278 = scmp.eq.s32.totalorder %s27, 0
      %p279 = por %p277, %p278
      %p280 = scmp.ne.s32.totalorder %s268, %s269
      %p281 = scmp.eq.s32.totalorder %s28, 1
      %p282 = por %p280, %p281
      %p284 = scmp.ne.s32.totalorder %s269, %s283
      %p285 = scmp.eq.s32.totalorder %s28, 0
      %p286 = por %p284, %p285
      %s288 = sadd.s32 %s287, 1
      %p291 = scmp.eq.s32.totalorder %s22, 1
      %p292 = scmp.ne.s32.totalorder %s287, %s289
      %p293 = scmp.eq.s32.totalorder %s22, 0
      %p294 = por %p292, %p293
      %p295 = scmp.ne.s32.totalorder %s287, %s289
      %p296 = scmp.eq.s32.totalorder %s27, 1
      %p297 = por %p295, %p296
      %p298 = scmp.ne.s32.totalorder %s289, %s290
      %p299 = scmp.eq.s32.totalorder %s27, 0
      %p300 = por %p298, %p299
      %p301 = scmp.ne.s32.totalorder %s289, %s290
      %p302 = scmp.eq.s32.totalorder %s28, 1
      %p303 = por %p301, %p302
      %p305 = scmp.ne.s32.totalorder %s290, %s304
      %p306 = scmp.eq.s32.totalorder %s28, 0
      %p307 = por %p305, %p306
      %s308 = ssub.s32 %s22, %s29
      %p309 = scmp.eq.s32.totalorder %s308, 0
      %s311 = sadd.s32 %s310, 1
      %s312 = scalar_select %p309, %s310, %s311
      %p315 = pneg %p309
      %p316 = scmp.eq.s32.totalorder %s22, 1
      %p317 = por %p315, %p316
      %p318 = scmp.ne.s32.totalorder %s310, %s313
      %p319 = scmp.eq.s32.totalorder %s22, 0
      %p320 = por %p318, %p319
      %p321 = scmp.ne.s32.totalorder %s310, %s313
      %p322 = scmp.eq.s32.totalorder %s27, 1
      %p323 = por %p321, %p322
      %p324 = scmp.ne.s32.totalorder %s313, %s314
      %p325 = scmp.eq.s32.totalorder %s27, 0
      %p326 = por %p324, %p325
      %p327 = scmp.ne.s32.totalorder %s313, %s314
      %p328 = scmp.eq.s32.totalorder %s28, 1
      %p329 = por %p327, %p328
      %p331 = scmp.ne.s32.totalorder %s314, %s330
      %p332 = scmp.eq.s32.totalorder %s28, 0
      %p333 = por %p331, %p332
      %p334 = scmp.le.s32.totalorder 1, %s22
      %p335 = scmp.lt.s32.totalorder %s22, 3
      %p336 = pnand %p334, %p335
      %p337 = pneg %p336
      // Predicated region
      $region9: #{cnn_forward.1} parent=5 // pred_check
        _
      $region10: #{cnn_forward.1} parent=5 // pred_check_branch
        %339 = sbr.rel (%p336) target = $region12
      $region11: #{cnn_forward.1} parent=5 // pred_region
        %s340 = ssub.s32 %s22, 1
        // Predicated region
        $region13: #{cnn_forward.1} parent=11 // pred_check
          %p341 = pneg %p69
        $region14: #{cnn_forward.1} parent=11 // pred_check_branch
          %343 = sbr.rel (%p341) target = $region16
        $region15: #{cnn_forward.1} parent=11 // pred_region
          _
        $region16: #{cnn_forward.1} parent=11 // pred_fallthru
          _
        // Predicated region
        $region17: #{cnn_forward.1} parent=11 // pred_check
          %p344 = pneg %p90
        $region18: #{cnn_forward.1} parent=11 // pred_check_branch
          %346 = sbr.rel (%p344) target = $region20
        $region19: #{cnn_forward.1} parent=11 // pred_region
          _
        $region20: #{cnn_forward.1} parent=11 // pred_fallthru
          _
        // Predicated region
        $region21: #{cnn_forward.1} parent=11 // pred_check
          %p347 = pneg %p111
        $region22: #{cnn_forward.1} parent=11 // pred_check_branch
          %349 = sbr.rel (%p347) target = $region24
        $region23: #{cnn_forward.1} parent=11 // pred_region
          _
        $region24: #{cnn_forward.1} parent=11 // pred_fallthru
          _
        // Predicated region
        $region25: #{cnn_forward.1} parent=11 // pred_check
          %p350 = pneg %p132
        $region26: #{cnn_forward.1} parent=11 // pred_check_branch
          %352 = sbr.rel (%p350) target = $region28
        $region27: #{cnn_forward.1} parent=11 // pred_region
          _
        $region28: #{cnn_forward.1} parent=11 // pred_fallthru
          _
        // Predicated region
        $region29: #{cnn_forward.1} parent=11 // pred_check
          %p353 = pneg %p153
        $region30: #{cnn_forward.1} parent=11 // pred_check_branch
          %355 = sbr.rel (%p353) target = $region32
        $region31: #{cnn_forward.1} parent=11 // pred_region
          _
        $region32: #{cnn_forward.1} parent=11 // pred_fallthru
          _
        // Predicated region
        $region33: #{cnn_forward.1} parent=11 // pred_check
          %p356 = pneg %p174
        $region34: #{cnn_forward.1} parent=11 // pred_check_branch
          %358 = sbr.rel (%p356) target = $region36
        $region35: #{cnn_forward.1} parent=11 // pred_region
          _
        $region36: #{cnn_forward.1} parent=11 // pred_fallthru
          _
        // Predicated region
        $region37: #{cnn_forward.1} parent=11 // pred_check
          %p359 = pneg %p195
        $region38: #{cnn_forward.1} parent=11 // pred_check_branch
          %361 = sbr.rel (%p359) target = $region40
        $region39: #{cnn_forward.1} parent=11 // pred_region
          _
        $region40: #{cnn_forward.1} parent=11 // pred_fallthru
          _
        // Predicated region
        $region41: #{cnn_forward.1} parent=11 // pred_check
          %p362 = pneg %p216
        $region42: #{cnn_forward.1} parent=11 // pred_check_branch
          %364 = sbr.rel (%p362) target = $region44
        $region43: #{cnn_forward.1} parent=11 // pred_region
          _
        $region44: #{cnn_forward.1} parent=11 // pred_fallthru
          _
        // Predicated region
        $region45: #{cnn_forward.1} parent=11 // pred_check
          %p365 = pneg %p237
        $region46: #{cnn_forward.1} parent=11 // pred_check_branch
          %367 = sbr.rel (%p365) target = $region48
        $region47: #{cnn_forward.1} parent=11 // pred_region
          _
        $region48: #{cnn_forward.1} parent=11 // pred_fallthru
          _
        // Predicated region
        $region49: #{cnn_forward.1} parent=11 // pred_check
          %p368 = pneg %p258
        $region50: #{cnn_forward.1} parent=11 // pred_check_branch
          %370 = sbr.rel (%p368) target = $region52
        $region51: #{cnn_forward.1} parent=11 // pred_region
          _
        $region52: #{cnn_forward.1} parent=11 // pred_fallthru
          _
        // Predicated region
        $region53: #{cnn_forward.1} parent=11 // pred_check
          %p371 = pneg %p279
        $region54: #{cnn_forward.1} parent=11 // pred_check_branch
          %373 = sbr.rel (%p371) target = $region56
        $region55: #{cnn_forward.1} parent=11 // pred_region
          _
        $region56: #{cnn_forward.1} parent=11 // pred_fallthru
          _
        // Predicated region
        $region57: #{cnn_forward.1} parent=11 // pred_check
          %p374 = pneg %p300
        $region58: #{cnn_forward.1} parent=11 // pred_check_branch
          %376 = sbr.rel (%p374) target = $region60
        $region59: #{cnn_forward.1} parent=11 // pred_region
          _
        $region60: #{cnn_forward.1} parent=11 // pred_fallthru
          _
      $region12: #{cnn_forward.1} parent=5 // pred_fallthru
        _
      %p377 = scmp.lt.s32.totalorder %s22, 2
      // Predicated region
      $region61: #{cnn_forward.1} parent=5 // pred_check
        %p378 = pneg %p377
      $region62: #{cnn_forward.1} parent=5 // pred_check_branch
        %380 = sbr.rel (%p378) target = $region64
      $region63: #{cnn_forward.1} parent=5 // pred_region
        // Predicated region
        $region65: #{cnn_forward.1} parent=63 // pred_check
          %p381 = pneg %p42
        $region66: #{cnn_forward.1} parent=63 // pred_check_branch
          %383 = sbr.rel (%p381) target = $region68
        $region67: #{cnn_forward.1} parent=63 // pred_region
          %p384 = scmp.lt.s32.totalorder %s22, 1
          %s385 = scalar_select %p384, %s22, 1
          %s386 = smul.addr %s385, 32
          %s387 = smul.addr %s386, 8
          %s388 = scalar_lea.vmem %s0, %s387
        $region68: #{cnn_forward.1} parent=63 // pred_fallthru
          _
      $region64: #{cnn_forward.1} parent=5 // pred_fallthru
        _
      %p389 = scmp.le.s32.totalorder 1, %s22
      %p390 = scmp.lt.s32.totalorder %s22, 3
      %p391 = pnand %p389, %p390
      %p392 = pneg %p391
      // Predicated region
      $region69: #{cnn_forward.1} parent=5 // pred_check
        _
      $region70: #{cnn_forward.1} parent=5 // pred_check_branch
        %394 = sbr.rel (%p391) target = $region72
      $region71: #{cnn_forward.1} parent=5 // pred_region
        %s395 = ssub.s32 %s22, 1
        %p396 = scmp.lt.s32.totalorder %s27, 1
        %s397 = scalar_select %p396, %s27, 1
        %s398 = smul.addr %s397, 32
        %s399 = smul.addr %s398, 8
        %s400 = scalar_lea.vmem %s0, %s399
        %p401 = pneg %p48
        %p402 = pneg %p45
        %p403 = pneg %p69
        %p404 = pneg %p66
        %p405 = pneg %p90
        %p406 = pneg %p87
        %p407 = pneg %p111
        %p408 = pneg %p108
        %p409 = pneg %p132
        %p410 = pneg %p129
        %p411 = pneg %p153
        %p412 = pneg %p150
        %p413 = pneg %p174
        %p414 = pneg %p171
        %p415 = pneg %p195
        %p416 = pneg %p192
        %p417 = pneg %p216
        %p418 = pneg %p213
        %p419 = pneg %p237
        %p420 = pneg %p234
        %p421 = pneg %p258
        %p422 = pneg %p255
        %p423 = pneg %p279
        %p424 = pneg %p276
        %p425 = pneg %p300
        %p426 = pneg %p297
        %p427 = pneg %p326
        %p428 = pneg %p323
        %s429 = sand.u32 %s313, 1
        %s430 = scalar_lea.sflag [#allocation12], %s429
        %s431 = sand.u32 %s313, 1
        %s432 = scalar_lea.vmem [#allocation11], %s431
        %p433 = scmp.lt.s32.totalorder %s27, 1
        %s434 = scalar_select %p433, %s27, 1
        %s435 = smul.addr %s434, 32
        %s436 = smul.addr %s435, 8
        %s437 = scalar_lea.vmem %s0, %s436
        %vm439 = vcmask 31744
        %440 = vst.msk [vmem:[#allocation2] sm:$0xff] %vm439, 0.0
        %441 = vst.msk [vmem:[#allocation2 + $0x8] sm:$0xff] %vm439, 0.0
        %442 = vst.msk [vmem:[#allocation2 + $0x10] sm:$0xff] %vm439, 0.0
        %vm443 = vcmask 24576
        %444 = vst.msk [vmem:[#allocation2 + $0x18] sm:$0x1] %vm443, 0.0
        %445 = vst.msk [vmem:[#allocation2 + $0x20] sm:$0xff] %vm439, 0.0
        %446 = vst.msk [vmem:[#allocation2 + $0x28] sm:$0xff] %vm439, 0.0
        %447 = vst.msk [vmem:[#allocation2 + $0x30] sm:$0xff] %vm439, 0.0
        %448 = vst.msk [vmem:[#allocation2 + $0x38] sm:$0x1] %vm443, 0.0
        %449 = vst.msk [vmem:[#allocation2 + $0x40] sm:$0xff] %vm439, 0.0
        %450 = vst.msk [vmem:[#allocation2 + $0x48] sm:$0xff] %vm439, 0.0
        %451 = vst.msk [vmem:[#allocation2 + $0x50] sm:$0xff] %vm439, 0.0
        %452 = vst.msk [vmem:[#allocation2 + $0x58] sm:$0x1] %vm443, 0.0
        %453 = vst.msk [vmem:[#allocation2 + $0x60] sm:$0xff] %vm439, 0.0
        %454 = vst.msk [vmem:[#allocation2 + $0x68] sm:$0xff] %vm439, 0.0
        %455 = vst.msk [vmem:[#allocation2 + $0x70] sm:$0xff] %vm439, 0.0
        %456 = vst.msk [vmem:[#allocation2 + $0x78] sm:$0x1] %vm443, 0.0
        %457 = vst.msk [vmem:[#allocation2 + $0x80] sm:$0xff] %vm439, 0.0
        %458 = vst.msk [vmem:[#allocation2 + $0x88] sm:$0xff] %vm439, 0.0
        %459 = vst.msk [vmem:[#allocation2 + $0x90] sm:$0xff] %vm439, 0.0
        %460 = vst.msk [vmem:[#allocation2 + $0x98] sm:$0x1] %vm443, 0.0
        %461 = vst.msk [vmem:[#allocation2 + $0xa0] sm:$0xff] %vm439, 0.0
        %462 = vst.msk [vmem:[#allocation2 + $0xa8] sm:$0xff] %vm439, 0.0
        %463 = vst.msk [vmem:[#allocation2 + $0xb0] sm:$0xff] %vm439, 0.0
        %464 = vst.msk [vmem:[#allocation2 + $0xb8] sm:$0x1] %vm443, 0.0
        %465 = vst.msk [vmem:[#allocation2 + $0xc0] sm:$0xff] %vm439, 0.0
        %466 = vst.msk [vmem:[#allocation2 + $0xc8] sm:$0xff] %vm439, 0.0
        %467 = vst.msk [vmem:[#allocation2 + $0xd0] sm:$0xff] %vm439, 0.0
        %468 = vst.msk [vmem:[#allocation2 + $0xd8] sm:$0x1] %vm443, 0.0
        %469 = vst.msk [vmem:[#allocation2 + $0xe0] sm:$0xff] %vm439, 0.0
        %470 = vst.msk [vmem:[#allocation2 + $0xe8] sm:$0xff] %vm439, 0.0
        %471 = vst.msk [vmem:[#allocation2 + $0xf0] sm:$0xff] %vm439, 0.0
        %472 = vst.msk [vmem:[#allocation2 + $0xf8] sm:$0x1] %vm443, 0.0
        %473 = vst.msk [vmem:[#allocation2 + $0x100] sm:$0xff] %vm439, 0.0
        %474 = vst.msk [vmem:[#allocation2 + $0x108] sm:$0xff] %vm439, 0.0
        %475 = vst.msk [vmem:[#allocation2 + $0x110] sm:$0xff] %vm439, 0.0
        %476 = vst.msk [vmem:[#allocation2 + $0x118] sm:$0x1] %vm443, 0.0
        %477 = vst.msk [vmem:[#allocation2 + $0x120] sm:$0xff] %vm439, 0.0
        %478 = vst.msk [vmem:[#allocation2 + $0x128] sm:$0xff] %vm439, 0.0
        %479 = vst.msk [vmem:[#allocation2 + $0x130] sm:$0xff] %vm439, 0.0
        %480 = vst.msk [vmem:[#allocation2 + $0x138] sm:$0x1] %vm443, 0.0
        %481 = vst.msk [vmem:[#allocation2 + $0x140] sm:$0xff] %vm439, 0.0
        %482 = vst.msk [vmem:[#allocation2 + $0x148] sm:$0xff] %vm439, 0.0
        %483 = vst.msk [vmem:[#allocation2 + $0x150] sm:$0xff] %vm439, 0.0
        %484 = vst.msk [vmem:[#allocation2 + $0x158] sm:$0x1] %vm443, 0.0
        %485 = vst.msk [vmem:[#allocation2 + $0x160] sm:$0xff] %vm439, 0.0
        %486 = vst.msk [vmem:[#allocation2 + $0x168] sm:$0xff] %vm439, 0.0
        %487 = vst.msk [vmem:[#allocation2 + $0x170] sm:$0xff] %vm439, 0.0
        %488 = vst.msk [vmem:[#allocation2 + $0x178] sm:$0x1] %vm443, 0.0
        %489 = vst.msk [vmem:[#allocation2 + $0x180] sm:$0xff] %vm439, 0.0
        %490 = vst.msk [vmem:[#allocation2 + $0x188] sm:$0xff] %vm439, 0.0
        %491 = vst.msk [vmem:[#allocation2 + $0x190] sm:$0xff] %vm439, 0.0
        %492 = vst.msk [vmem:[#allocation2 + $0x198] sm:$0x1] %vm443, 0.0
        %493 = vst.msk [vmem:[#allocation2 + $0x1a0] sm:$0xff] %vm439, 0.0
        %494 = vst.msk [vmem:[#allocation2 + $0x1a8] sm:$0xff] %vm439, 0.0
        %495 = vst.msk [vmem:[#allocation2 + $0x1b0] sm:$0xff] %vm439, 0.0
        %496 = vst.msk [vmem:[#allocation2 + $0x1b8] sm:$0x1] %vm443, 0.0
        %497 = vst.msk [vmem:[#allocation2 + $0x1c0] sm:$0xff] %vm439, 0.0
        %498 = vst.msk [vmem:[#allocation2 + $0x1c8] sm:$0xff] %vm439, 0.0
        %499 = vst.msk [vmem:[#allocation2 + $0x1d0] sm:$0xff] %vm439, 0.0
        %500 = vst.msk [vmem:[#allocation2 + $0x1d8] sm:$0x1] %vm443, 0.0
        %501 = vst.msk [vmem:[#allocation2 + $0x1e0] sm:$0xff] %vm439, 0.0
        %502 = vst.msk [vmem:[#allocation2 + $0x1e8] sm:$0xff] %vm439, 0.0
        %503 = vst.msk [vmem:[#allocation2 + $0x1f0] sm:$0xff] %vm439, 0.0
        %504 = vst.msk [vmem:[#allocation2 + $0x1f8] sm:$0x1] %vm443, 0.0
        %505 = vst.msk [vmem:[#allocation2 + $0x200] sm:$0xff] %vm439, 0.0
        %506 = vst.msk [vmem:[#allocation2 + $0x208] sm:$0xff] %vm439, 0.0
        %507 = vst.msk [vmem:[#allocation2 + $0x210] sm:$0xff] %vm439, 0.0
        %508 = vst.msk [vmem:[#allocation2 + $0x218] sm:$0x1] %vm443, 0.0
        %509 = vst.msk [vmem:[#allocation2 + $0x220] sm:$0xff] %vm439, 0.0
        %510 = vst.msk [vmem:[#allocation2 + $0x228] sm:$0xff] %vm439, 0.0
        %511 = vst.msk [vmem:[#allocation2 + $0x230] sm:$0xff] %vm439, 0.0
        %512 = vst.msk [vmem:[#allocation2 + $0x238] sm:$0x1] %vm443, 0.0
        %vm513 = vcmask 64512
        %514 = vst.msk [vmem:[#allocation4] sm:$0xff] %vm513, 0.0
        %515 = vst.msk [vmem:[#allocation4 + $0x8] sm:$0xff] %vm513, 0.0
        %vm516 = vcmask 57344
        %517 = vst.msk [vmem:[#allocation4 + $0x10] sm:$0x1] %vm516, 0.0
        %518 = vst.msk [vmem:[#allocation4 + $0x18] sm:$0xff] %vm513, 0.0
        %519 = vst.msk [vmem:[#allocation4 + $0x20] sm:$0xff] %vm513, 0.0
        %520 = vst.msk [vmem:[#allocation4 + $0x28] sm:$0x1] %vm516, 0.0
        %521 = vst.msk [vmem:[#allocation4 + $0x30] sm:$0xff] %vm513, 0.0
        %522 = vst.msk [vmem:[#allocation4 + $0x38] sm:$0xff] %vm513, 0.0
        %523 = vst.msk [vmem:[#allocation4 + $0x40] sm:$0x1] %vm516, 0.0
        %524 = vst.msk [vmem:[#allocation4 + $0x48] sm:$0xff] %vm513, 0.0
        %525 = vst.msk [vmem:[#allocation4 + $0x50] sm:$0xff] %vm513, 0.0
        %526 = vst.msk [vmem:[#allocation4 + $0x58] sm:$0x1] %vm516, 0.0
        %527 = vst.msk [vmem:[#allocation4 + $0x60] sm:$0xff] %vm513, 0.0
        %528 = vst.msk [vmem:[#allocation4 + $0x68] sm:$0xff] %vm513, 0.0
        %529 = vst.msk [vmem:[#allocation4 + $0x70] sm:$0x1] %vm516, 0.0
        %530 = vst.msk [vmem:[#allocation4 + $0x78] sm:$0xff] %vm513, 0.0
        %531 = vst.msk [vmem:[#allocation4 + $0x80] sm:$0xff] %vm513, 0.0
        %532 = vst.msk [vmem:[#allocation4 + $0x88] sm:$0x1] %vm516, 0.0
        %533 = vst.msk [vmem:[#allocation4 + $0x90] sm:$0xff] %vm513, 0.0
        %534 = vst.msk [vmem:[#allocation4 + $0x98] sm:$0xff] %vm513, 0.0
        %535 = vst.msk [vmem:[#allocation4 + $0xa0] sm:$0x1] %vm516, 0.0
        %536 = vst.msk [vmem:[#allocation4 + $0xa8] sm:$0xff] %vm513, 0.0
        %537 = vst.msk [vmem:[#allocation4 + $0xb0] sm:$0xff] %vm513, 0.0
        %538 = vst.msk [vmem:[#allocation4 + $0xb8] sm:$0x1] %vm516, 0.0
        %539 = vst.msk [vmem:[#allocation4 + $0xc0] sm:$0xff] %vm513, 0.0
        %540 = vst.msk [vmem:[#allocation4 + $0xc8] sm:$0xff] %vm513, 0.0
        %541 = vst.msk [vmem:[#allocation4 + $0xd0] sm:$0x1] %vm516, 0.0
        %542 = vst.msk [vmem:[#allocation4 + $0xd8] sm:$0xff] %vm513, 0.0
        %543 = vst.msk [vmem:[#allocation4 + $0xe0] sm:$0xff] %vm513, 0.0
        %544 = vst.msk [vmem:[#allocation4 + $0xe8] sm:$0x1] %vm516, 0.0
        %545 = vst.msk [vmem:[#allocation6] sm:$0xff] %vm513, 0.0
        %vm546 = vcmask 61440
        %547 = vst.msk [vmem:[#allocation6 + $0x8] sm:$0x1f] %vm546, 0.0
        %548 = vst.msk [vmem:[#allocation6 + $0x10] sm:$0xff] %vm513, 0.0
        %549 = vst.msk [vmem:[#allocation6 + $0x18] sm:$0x1f] %vm546, 0.0
        %550 = vst.msk [vmem:[#allocation6 + $0x20] sm:$0xff] %vm513, 0.0
        %551 = vst.msk [vmem:[#allocation6 + $0x28] sm:$0x1f] %vm546, 0.0
        %552 = vst.msk [vmem:[#allocation6 + $0x30] sm:$0xff] %vm513, 0.0
        %553 = vst.msk [vmem:[#allocation6 + $0x38] sm:$0x1f] %vm546, 0.0
        %554 = vst.msk [vmem:[#allocation6 + $0x40] sm:$0xff] %vm513, 0.0
        %555 = vst.msk [vmem:[#allocation6 + $0x48] sm:$0x1f] %vm546, 0.0
        %556 = vst.msk [vmem:[#allocation6 + $0x50] sm:$0xff] %vm513, 0.0
        %557 = vst.msk [vmem:[#allocation6 + $0x58] sm:$0x1f] %vm546, 0.0
        %vm558 = vcmask 130048
        %559 = vst.msk [vmem:[#allocation8] sm:$0xff] %vm558, 0.0
        %vm560 = vcmask 124928
        %561 = vst.msk [vmem:[#allocation8 + $0x8] sm:$0x7] %vm560, 0.0
        %562 = vst.msk [vmem:[#allocation8 + $0x10] sm:$0xff] %vm558, 0.0
        %563 = vst.msk [vmem:[#allocation8 + $0x18] sm:$0x7] %vm560, 0.0
        %564 = vst.msk [vmem:[#allocation8 + $0x20] sm:$0xff] %vm558, 0.0
        %565 = vst.msk [vmem:[#allocation8 + $0x28] sm:$0x7] %vm560, 0.0
        %566 = vst.msk [vmem:[#allocation8 + $0x30] sm:$0xff] %vm558, 0.0
        %567 = vst.msk [vmem:[#allocation8 + $0x38] sm:$0x7] %vm560, 0.0
        %568 = vst.msk [vmem:[#allocation3] sm:$0xff] %vm513, 0.0
        %569 = vst.msk [vmem:[#allocation3 + $0x8] sm:$0xff] %vm513, 0.0
        %570 = vst.msk [vmem:[#allocation3 + $0x10] sm:$0xff] %vm513, 0.0
        %571 = vst.msk [vmem:[#allocation3 + $0x18] sm:$0x1] %vm516, 0.0
        %572 = vst.msk [vmem:[#allocation3 + $0x20] sm:$0xff] %vm513, 0.0
        %573 = vst.msk [vmem:[#allocation3 + $0x28] sm:$0xff] %vm513, 0.0
        %574 = vst.msk [vmem:[#allocation3 + $0x30] sm:$0xff] %vm513, 0.0
        %575 = vst.msk [vmem:[#allocation3 + $0x38] sm:$0x1] %vm516, 0.0
        %576 = vst.msk [vmem:[#allocation3 + $0x40] sm:$0xff] %vm513, 0.0
        %577 = vst.msk [vmem:[#allocation3 + $0x48] sm:$0xff] %vm513, 0.0
        %578 = vst.msk [vmem:[#allocation3 + $0x50] sm:$0xff] %vm513, 0.0
        %579 = vst.msk [vmem:[#allocation3 + $0x58] sm:$0x1] %vm516, 0.0
        %580 = vst.msk [vmem:[#allocation3 + $0x60] sm:$0xff] %vm513, 0.0
        %581 = vst.msk [vmem:[#allocation3 + $0x68] sm:$0xff] %vm513, 0.0
        %582 = vst.msk [vmem:[#allocation3 + $0x70] sm:$0xff] %vm513, 0.0
        %583 = vst.msk [vmem:[#allocation3 + $0x78] sm:$0x1] %vm516, 0.0
        %584 = vst.msk [vmem:[#allocation3 + $0x80] sm:$0xff] %vm513, 0.0
        %585 = vst.msk [vmem:[#allocation3 + $0x88] sm:$0xff] %vm513, 0.0
        %586 = vst.msk [vmem:[#allocation3 + $0x90] sm:$0xff] %vm513, 0.0
        %587 = vst.msk [vmem:[#allocation3 + $0x98] sm:$0x1] %vm516, 0.0
        %588 = vst.msk [vmem:[#allocation3 + $0xa0] sm:$0xff] %vm513, 0.0
        %589 = vst.msk [vmem:[#allocation3 + $0xa8] sm:$0xff] %vm513, 0.0
        %590 = vst.msk [vmem:[#allocation3 + $0xb0] sm:$0xff] %vm513, 0.0
        %591 = vst.msk [vmem:[#allocation3 + $0xb8] sm:$0x1] %vm516, 0.0
        %592 = vst.msk [vmem:[#allocation3 + $0xc0] sm:$0xff] %vm513, 0.0
        %593 = vst.msk [vmem:[#allocation3 + $0xc8] sm:$0xff] %vm513, 0.0
        %594 = vst.msk [vmem:[#allocation3 + $0xd0] sm:$0xff] %vm513, 0.0
        %595 = vst.msk [vmem:[#allocation3 + $0xd8] sm:$0x1] %vm516, 0.0
        %596 = vst.msk [vmem:[#allocation3 + $0xe0] sm:$0xff] %vm513, 0.0
        %597 = vst.msk [vmem:[#allocation3 + $0xe8] sm:$0xff] %vm513, 0.0
        %598 = vst.msk [vmem:[#allocation3 + $0xf0] sm:$0xff] %vm513, 0.0
        %599 = vst.msk [vmem:[#allocation3 + $0xf8] sm:$0x1] %vm516, 0.0
        %600 = vst.msk [vmem:[#allocation3 + $0x100] sm:$0xff] %vm513, 0.0
        %601 = vst.msk [vmem:[#allocation3 + $0x108] sm:$0xff] %vm513, 0.0
        %602 = vst.msk [vmem:[#allocation3 + $0x110] sm:$0xff] %vm513, 0.0
        %603 = vst.msk [vmem:[#allocation3 + $0x118] sm:$0x1] %vm516, 0.0
        %604 = vst.msk [vmem:[#allocation3 + $0x120] sm:$0xff] %vm513, 0.0
        %605 = vst.msk [vmem:[#allocation3 + $0x128] sm:$0xff] %vm513, 0.0
        %606 = vst.msk [vmem:[#allocation3 + $0x130] sm:$0xff] %vm513, 0.0
        %607 = vst.msk [vmem:[#allocation3 + $0x138] sm:$0x1] %vm516, 0.0
        %608 = vst.msk [vmem:[#allocation3 + $0x140] sm:$0xff] %vm513, 0.0
        %609 = vst.msk [vmem:[#allocation3 + $0x148] sm:$0xff] %vm513, 0.0
        %610 = vst.msk [vmem:[#allocation3 + $0x150] sm:$0xff] %vm513, 0.0
        %611 = vst.msk [vmem:[#allocation3 + $0x158] sm:$0x1] %vm516, 0.0
        %612 = vst.msk [vmem:[#allocation3 + $0x160] sm:$0xff] %vm513, 0.0
        %613 = vst.msk [vmem:[#allocation3 + $0x168] sm:$0xff] %vm513, 0.0
        %614 = vst.msk [vmem:[#allocation3 + $0x170] sm:$0xff] %vm513, 0.0
        %615 = vst.msk [vmem:[#allocation3 + $0x178] sm:$0x1] %vm516, 0.0
        %616 = vst.msk [vmem:[#allocation3 + $0x180] sm:$0xff] %vm513, 0.0
        %617 = vst.msk [vmem:[#allocation3 + $0x188] sm:$0xff] %vm513, 0.0
        %618 = vst.msk [vmem:[#allocation3 + $0x190] sm:$0xff] %vm513, 0.0
        %619 = vst.msk [vmem:[#allocation3 + $0x198] sm:$0x1] %vm516, 0.0
        %620 = vst.msk [vmem:[#allocation3 + $0x1a0] sm:$0xff] %vm513, 0.0
        %621 = vst.msk [vmem:[#allocation3 + $0x1a8] sm:$0xff] %vm513, 0.0
        %622 = vst.msk [vmem:[#allocation3 + $0x1b0] sm:$0xff] %vm513, 0.0
        %623 = vst.msk [vmem:[#allocation3 + $0x1b8] sm:$0x1] %vm516, 0.0
        %624 = vst.msk [vmem:[#allocation3 + $0x1c0] sm:$0xff] %vm513, 0.0
        %625 = vst.msk [vmem:[#allocation3 + $0x1c8] sm:$0xff] %vm513, 0.0
        %626 = vst.msk [vmem:[#allocation3 + $0x1d0] sm:$0xff] %vm513, 0.0
        %627 = vst.msk [vmem:[#allocation3 + $0x1d8] sm:$0x1] %vm516, 0.0
        %628 = vst.msk [vmem:[#allocation3 + $0x1e0] sm:$0xff] %vm513, 0.0
        %629 = vst.msk [vmem:[#allocation3 + $0x1e8] sm:$0xff] %vm513, 0.0
        %630 = vst.msk [vmem:[#allocation3 + $0x1f0] sm:$0xff] %vm513, 0.0
        %631 = vst.msk [vmem:[#allocation3 + $0x1f8] sm:$0x1] %vm516, 0.0
        %632 = vst.msk [vmem:[#allocation3 + $0x200] sm:$0xff] %vm513, 0.0
        %633 = vst.msk [vmem:[#allocation3 + $0x208] sm:$0xff] %vm513, 0.0
        %634 = vst.msk [vmem:[#allocation3 + $0x210] sm:$0xff] %vm513, 0.0
        %635 = vst.msk [vmem:[#allocation3 + $0x218] sm:$0x1] %vm516, 0.0
        %636 = vst.msk [vmem:[#allocation3 + $0x220] sm:$0xff] %vm513, 0.0
        %637 = vst.msk [vmem:[#allocation3 + $0x228] sm:$0xff] %vm513, 0.0
        %638 = vst.msk [vmem:[#allocation3 + $0x230] sm:$0xff] %vm513, 0.0
        %639 = vst.msk [vmem:[#allocation3 + $0x238] sm:$0x1] %vm516, 0.0
        %640 = vst.msk [vmem:[#allocation5] sm:$0xff] %vm513, 0.0
        %641 = vst.msk [vmem:[#allocation5 + $0x8] sm:$0xff] %vm513, 0.0
        %642 = vst.msk [vmem:[#allocation5 + $0x10] sm:$0x1] %vm516, 0.0
        %643 = vst.msk [vmem:[#allocation5 + $0x18] sm:$0xff] %vm513, 0.0
        %644 = vst.msk [vmem:[#allocation5 + $0x20] sm:$0xff] %vm513, 0.0
        %645 = vst.msk [vmem:[#allocation5 + $0x28] sm:$0x1] %vm516, 0.0
        %646 = vst.msk [vmem:[#allocation5 + $0x30] sm:$0xff] %vm513, 0.0
        %647 = vst.msk [vmem:[#allocation5 + $0x38] sm:$0xff] %vm513, 0.0
        %648 = vst.msk [vmem:[#allocation5 + $0x40] sm:$0x1] %vm516, 0.0
        %649 = vst.msk [vmem:[#allocation5 + $0x48] sm:$0xff] %vm513, 0.0
        %650 = vst.msk [vmem:[#allocation5 + $0x50] sm:$0xff] %vm513, 0.0
        %651 = vst.msk [vmem:[#allocation5 + $0x58] sm:$0x1] %vm516, 0.0
        %652 = vst.msk [vmem:[#allocation5 + $0x60] sm:$0xff] %vm513, 0.0
        %653 = vst.msk [vmem:[#allocation5 + $0x68] sm:$0xff] %vm513, 0.0
        %654 = vst.msk [vmem:[#allocation5 + $0x70] sm:$0x1] %vm516, 0.0
        %655 = vst.msk [vmem:[#allocation5 + $0x78] sm:$0xff] %vm513, 0.0
        %656 = vst.msk [vmem:[#allocation5 + $0x80] sm:$0xff] %vm513, 0.0
        %657 = vst.msk [vmem:[#allocation5 + $0x88] sm:$0x1] %vm516, 0.0
        %658 = vst.msk [vmem:[#allocation5 + $0x90] sm:$0xff] %vm513, 0.0
        %659 = vst.msk [vmem:[#allocation5 + $0x98] sm:$0xff] %vm513, 0.0
        %660 = vst.msk [vmem:[#allocation5 + $0xa0] sm:$0x1] %vm516, 0.0
        %661 = vst.msk [vmem:[#allocation5 + $0xa8] sm:$0xff] %vm513, 0.0
        %662 = vst.msk [vmem:[#allocation5 + $0xb0] sm:$0xff] %vm513, 0.0
        %663 = vst.msk [vmem:[#allocation5 + $0xb8] sm:$0x1] %vm516, 0.0
        %664 = vst.msk [vmem:[#allocation5 + $0xc0] sm:$0xff] %vm513, 0.0
        %665 = vst.msk [vmem:[#allocation5 + $0xc8] sm:$0xff] %vm513, 0.0
        %666 = vst.msk [vmem:[#allocation5 + $0xd0] sm:$0x1] %vm516, 0.0
        %667 = vst.msk [vmem:[#allocation5 + $0xd8] sm:$0xff] %vm513, 0.0
        %668 = vst.msk [vmem:[#allocation5 + $0xe0] sm:$0xff] %vm513, 0.0
        %669 = vst.msk [vmem:[#allocation5 + $0xe8] sm:$0x1] %vm516, 0.0
        %670 = vst.msk [vmem:[#allocation7] sm:$0xff] %vm558, 0.0
        %vm671 = vcmask 126976
        %672 = vst.msk [vmem:[#allocation7 + $0x8] sm:$0x1f] %vm671, 0.0
        %673 = vst.msk [vmem:[#allocation7 + $0x10] sm:$0xff] %vm558, 0.0
        %674 = vst.msk [vmem:[#allocation7 + $0x18] sm:$0x1f] %vm671, 0.0
        %675 = vst.msk [vmem:[#allocation7 + $0x20] sm:$0xff] %vm558, 0.0
        %676 = vst.msk [vmem:[#allocation7 + $0x28] sm:$0x1f] %vm671, 0.0
        %677 = vst.msk [vmem:[#allocation7 + $0x30] sm:$0xff] %vm558, 0.0
        %678 = vst.msk [vmem:[#allocation7 + $0x38] sm:$0x1f] %vm671, 0.0
        %679 = vst.msk [vmem:[#allocation7 + $0x40] sm:$0xff] %vm558, 0.0
        %680 = vst.msk [vmem:[#allocation7 + $0x48] sm:$0x1f] %vm671, 0.0
        %681 = vst.msk [vmem:[#allocation7 + $0x50] sm:$0xff] %vm558, 0.0
        %682 = vst.msk [vmem:[#allocation7 + $0x58] sm:$0x1f] %vm671, 0.0
        %683 = vst.msk [vmem:[#allocation9] sm:$0xff] %vm558, 0.0
        %684 = vst.msk [vmem:[#allocation9 + $0x8] sm:$0x7] %vm560, 0.0
        %685 = vst.msk [vmem:[#allocation9 + $0x10] sm:$0xff] %vm558, 0.0
        %686 = vst.msk [vmem:[#allocation9 + $0x18] sm:$0x7] %vm560, 0.0
        %687 = vst.msk [vmem:[#allocation9 + $0x20] sm:$0xff] %vm558, 0.0
        %688 = vst.msk [vmem:[#allocation9 + $0x28] sm:$0x7] %vm560, 0.0
        %689 = vst.msk [vmem:[#allocation9 + $0x30] sm:$0xff] %vm558, 0.0
        %690 = vst.msk [vmem:[#allocation9 + $0x38] sm:$0x7] %vm560, 0.0
        %v691 = vld [vmem:[%s437] sm:$0xff]
        %v692 = vld [vmem:[%s437 + $0x8] sm:$0xff]
        %v693 = vld [vmem:[%s437 + $0x10] sm:$0xff]
        %v694 = vld [vmem:[%s437 + $0x18] sm:$0xff]
        %v695 = vld [vmem:[%s437 + $0x20] sm:$0xff]
        %v696 = vld [vmem:[%s437 + $0x28] sm:$0xff]
        %v697 = vld [vmem:[%s437 + $0x30] sm:$0xff]
        %v698 = vld [vmem:[%s437 + $0x38] sm:$0xff]
        %v699 = vld [vmem:[%s437 + $0x40] sm:$0xff]
        %v700 = vld [vmem:[%s437 + $0x48] sm:$0xff]
        %v701 = vld [vmem:[%s437 + $0x50] sm:$0xff]
        %v702 = vld [vmem:[%s437 + $0x58] sm:$0xff]
        %v703 = vld [vmem:[%s437 + $0x60] sm:$0xff]
        %v704 = vld [vmem:[%s437 + $0x68] sm:$0xff]
        %v705 = vld [vmem:[%s437 + $0x70] sm:$0xff]
        %v706 = vld [vmem:[%s437 + $0x78] sm:$0xff]
        %v707 = vld [vmem:[%s437 + $0x80] sm:$0xff]
        %v708 = vld [vmem:[%s437 + $0x88] sm:$0xff]
        %v709 = vld [vmem:[%s437 + $0x90] sm:$0xff]
        %v710 = vld [vmem:[%s437 + $0x98] sm:$0xff]
        %v711 = vld [vmem:[%s437 + $0xa0] sm:$0xff]
        %v712 = vld [vmem:[%s437 + $0xa8] sm:$0xff]
        %v713 = vld [vmem:[%s437 + $0xb0] sm:$0xff]
        %v714 = vld [vmem:[%s437 + $0xb8] sm:$0xff]
        %v715 = vld [vmem:[%s437 + $0xc0] sm:$0xff]
        %v716 = vld [vmem:[%s437 + $0xc8] sm:$0xff]
        %v717 = vld [vmem:[%s437 + $0xd0] sm:$0xff]
        %v718 = vld [vmem:[%s437 + $0xd8] sm:$0xff]
        %v719 = vld [vmem:[%s437 + $0xe0] sm:$0xff]
        %v720 = vld [vmem:[%s437 + $0xe8] sm:$0xff]
        %v721 = vld [vmem:[%s437 + $0xf0] sm:$0xff]
        %v722 = vld [vmem:[%s437 + $0xf8] sm:$0xff]
        %s723 = scalar_lea.vmem [#allocation2], 32
        %724 = vst.msk [vmem:[%s723 + $0x8] sm:$0xff] %vm439, %v691
        %725 = vst.msk [vmem:[%s723 + $0x10] sm:$0xff] %vm439, %v692
        %726 = vst.msk [vmem:[%s723 + $0x28] sm:$0xff] %vm439, %v693
        %727 = vst.msk [vmem:[%s723 + $0x30] sm:$0xff] %vm439, %v694
        %728 = vst.msk [vmem:[%s723 + $0x48] sm:$0xff] %vm439, %v695
        %729 = vst.msk [vmem:[%s723 + $0x50] sm:$0xff] %vm439, %v696
        %730 = vst.msk [vmem:[%s723 + $0x68] sm:$0xff] %vm439, %v697
        %731 = vst.msk [vmem:[%s723 + $0x70] sm:$0xff] %vm439, %v698
        %732 = vst.msk [vmem:[%s723 + $0x88] sm:$0xff] %vm439, %v699
        %733 = vst.msk [vmem:[%s723 + $0x90] sm:$0xff] %vm439, %v700
        %734 = vst.msk [vmem:[%s723 + $0xa8] sm:$0xff] %vm439, %v701
        %735 = vst.msk [vmem:[%s723 + $0xb0] sm:$0xff] %vm439, %v702
        %736 = vst.msk [vmem:[%s723 + $0xc8] sm:$0xff] %vm439, %v703
        %737 = vst.msk [vmem:[%s723 + $0xd0] sm:$0xff] %vm439, %v704
        %738 = vst.msk [vmem:[%s723 + $0xe8] sm:$0xff] %vm439, %v705
        %739 = vst.msk [vmem:[%s723 + $0xf0] sm:$0xff] %vm439, %v706
        %740 = vst.msk [vmem:[%s723 + $0x108] sm:$0xff] %vm439, %v707
        %741 = vst.msk [vmem:[%s723 + $0x110] sm:$0xff] %vm439, %v708
        %742 = vst.msk [vmem:[%s723 + $0x128] sm:$0xff] %vm439, %v709
        %743 = vst.msk [vmem:[%s723 + $0x130] sm:$0xff] %vm439, %v710
        %744 = vst.msk [vmem:[%s723 + $0x148] sm:$0xff] %vm439, %v711
        %745 = vst.msk [vmem:[%s723 + $0x150] sm:$0xff] %vm439, %v712
        %746 = vst.msk [vmem:[%s723 + $0x168] sm:$0xff] %vm439, %v713
        %747 = vst.msk [vmem:[%s723 + $0x170] sm:$0xff] %vm439, %v714
        %748 = vst.msk [vmem:[%s723 + $0x188] sm:$0xff] %vm439, %v715
        %749 = vst.msk [vmem:[%s723 + $0x190] sm:$0xff] %vm439, %v716
        %750 = vst.msk [vmem:[%s723 + $0x1a8] sm:$0xff] %vm439, %v717
        %751 = vst.msk [vmem:[%s723 + $0x1b0] sm:$0xff] %vm439, %v718
        %752 = vst.msk [vmem:[%s723 + $0x1c8] sm:$0xff] %vm439, %v719
        %753 = vst.msk [vmem:[%s723 + $0x1d0] sm:$0xff] %vm439, %v720
        %754 = vst.msk [vmem:[%s723 + $0x1e8] sm:$0xff] %vm439, %v721
        %755 = vst.msk [vmem:[%s723 + $0x1f0] sm:$0xff] %vm439, %v722
        %v756 = vld [vmem:[#allocation2 + $0x7] sm:$0xff]
        %v757 = vld [vmem:[#allocation2 + $0xf] sm:$0xff]
        %v758 = vld [vmem:[#allocation2 + $0x27] sm:$0xff]
        %v759 = vld [vmem:[#allocation2 + $0x2f] sm:$0xff]
        %v760 = vld [vmem:[#allocation2 + $0x47] sm:$0xff]
        %v761 = vld [vmem:[#allocation2 + $0x4f] sm:$0xff]
        %v762 = vld [vmem:[#allocation2 + $0x67] sm:$0xff]
        %v763 = vld [vmem:[#allocation2 + $0x6f] sm:$0xff]
        %v764 = vld [vmem:[#allocation2 + $0x87] sm:$0xff]
        %v765 = vld [vmem:[#allocation2 + $0x8f] sm:$0xff]
        %v766 = vld [vmem:[#allocation2 + $0xa7] sm:$0xff]
        %v767 = vld [vmem:[#allocation2 + $0xaf] sm:$0xff]
        %v768 = vld [vmem:[#allocation2 + $0xc7] sm:$0xff]
        %v769 = vld [vmem:[#allocation2 + $0xcf] sm:$0xff]
        %v770 = vld [vmem:[#allocation2 + $0xe7] sm:$0xff]
        %v771 = vld [vmem:[#allocation2 + $0xef] sm:$0xff]
        %v772 = vld [vmem:[#allocation2 + $0x107] sm:$0xff]
        %v773 = vld [vmem:[#allocation2 + $0x10f] sm:$0xff]
        %v774 = vld [vmem:[#allocation2 + $0x127] sm:$0xff]
        %v775 = vld [vmem:[#allocation2 + $0x12f] sm:$0xff]
        %v776 = vld [vmem:[#allocation2 + $0x147] sm:$0xff]
        %v777 = vld [vmem:[#allocation2 + $0x14f] sm:$0xff]
        %v778 = vld [vmem:[#allocation2 + $0x167] sm:$0xff]
        %v779 = vld [vmem:[#allocation2 + $0x16f] sm:$0xff]
        %v780 = vld [vmem:[#allocation2 + $0x187] sm:$0xff]
        %v781 = vld [vmem:[#allocation2 + $0x18f] sm:$0xff]
        %v782 = vld [vmem:[#allocation2 + $0x1a7] sm:$0xff]
        %v783 = vld [vmem:[#allocation2 + $0x1af] sm:$0xff]
        %v784 = vld [vmem:[#allocation2 + $0x1c7] sm:$0xff]
        %v785 = vld [vmem:[#allocation2 + $0x1cf] sm:$0xff]
        %v786 = vld [vmem:[#allocation2 + $0x1e7] sm:$0xff]
        %v787 = vld [vmem:[#allocation2 + $0x1ef] sm:$0xff]
        %788 = vst.msk [vmem:[#allocation10] sm:$0xff] %vm439, %v756
        %789 = vst.msk [vmem:[#allocation10 + $0x10] sm:$0xff] %vm439, %v757
        %790 = vst.msk [vmem:[#allocation10 + $0x20] sm:$0xff] %vm439, %v758
        %791 = vst.msk [vmem:[#allocation10 + $0x30] sm:$0xff] %vm439, %v759
        %792 = vst.msk [vmem:[#allocation10 + $0x40] sm:$0xff] %vm439, %v760
        %793 = vst.msk [vmem:[#allocation10 + $0x50] sm:$0xff] %vm439, %v761
        %794 = vst.msk [vmem:[#allocation10 + $0x60] sm:$0xff] %vm439, %v762
        %795 = vst.msk [vmem:[#allocation10 + $0x70] sm:$0xff] %vm439, %v763
        %796 = vst.msk [vmem:[#allocation10 + $0x80] sm:$0xff] %vm439, %v764
        %797 = vst.msk [vmem:[#allocation10 + $0x90] sm:$0xff] %vm439, %v765
        %798 = vst.msk [vmem:[#allocation10 + $0xa0] sm:$0xff] %vm439, %v766
        %799 = vst.msk [vmem:[#allocation10 + $0xb0] sm:$0xff] %vm439, %v767
        %800 = vst.msk [vmem:[#allocation10 + $0xc0] sm:$0xff] %vm439, %v768
        %801 = vst.msk [vmem:[#allocation10 + $0xd0] sm:$0xff] %vm439, %v769
        %802 = vst.msk [vmem:[#allocation10 + $0xe0] sm:$0xff] %vm439, %v770
        %803 = vst.msk [vmem:[#allocation10 + $0xf0] sm:$0xff] %vm439, %v771
        %804 = vst.msk [vmem:[#allocation10 + $0x100] sm:$0xff] %vm439, %v772
        %805 = vst.msk [vmem:[#allocation10 + $0x110] sm:$0xff] %vm439, %v773
        %806 = vst.msk [vmem:[#allocation10 + $0x120] sm:$0xff] %vm439, %v774
        %807 = vst.msk [vmem:[#allocation10 + $0x130] sm:$0xff] %vm439, %v775
        %808 = vst.msk [vmem:[#allocation10 + $0x140] sm:$0xff] %vm439, %v776
        %809 = vst.msk [vmem:[#allocation10 + $0x150] sm:$0xff] %vm439, %v777
        %810 = vst.msk [vmem:[#allocation10 + $0x160] sm:$0xff] %vm439, %v778
        %811 = vst.msk [vmem:[#allocation10 + $0x170] sm:$0xff] %vm439, %v779
        %812 = vst.msk [vmem:[#allocation10 + $0x180] sm:$0xff] %vm439, %v780
        %813 = vst.msk [vmem:[#allocation10 + $0x190] sm:$0xff] %vm439, %v781
        %814 = vst.msk [vmem:[#allocation10 + $0x1a0] sm:$0xff] %vm439, %v782
        %815 = vst.msk [vmem:[#allocation10 + $0x1b0] sm:$0xff] %vm439, %v783
        %816 = vst.msk [vmem:[#allocation10 + $0x1c0] sm:$0xff] %vm439, %v784
        %817 = vst.msk [vmem:[#allocation10 + $0x1d0] sm:$0xff] %vm439, %v785
        %818 = vst.msk [vmem:[#allocation10 + $0x1e0] sm:$0xff] %vm439, %v786
        %819 = vst.msk [vmem:[#allocation10 + $0x1f0] sm:$0xff] %vm439, %v787
        %v820 = vld [vmem:[#allocation2 + $0x8] sm:$0xff]
        %v821 = vld [vmem:[#allocation2 + $0x10] sm:$0xff]
        %v822 = vld [vmem:[#allocation2 + $0x28] sm:$0xff]
        %v823 = vld [vmem:[#allocation2 + $0x30] sm:$0xff]
        %v824 = vld [vmem:[#allocation2 + $0x48] sm:$0xff]
        %v825 = vld [vmem:[#allocation2 + $0x50] sm:$0xff]
        %v826 = vld [vmem:[#allocation2 + $0x68] sm:$0xff]
        %v827 = vld [vmem:[#allocation2 + $0x70] sm:$0xff]
        %v828 = vld [vmem:[#allocation2 + $0x88] sm:$0xff]
        %v829 = vld [vmem:[#allocation2 + $0x90] sm:$0xff]
        %v830 = vld [vmem:[#allocation2 + $0xa8] sm:$0xff]
        %v831 = vld [vmem:[#allocation2 + $0xb0] sm:$0xff]
        %v832 = vld [vmem:[#allocation2 + $0xc8] sm:$0xff]
        %v833 = vld [vmem:[#allocation2 + $0xd0] sm:$0xff]
        %v834 = vld [vmem:[#allocation2 + $0xe8] sm:$0xff]
        %v835 = vld [vmem:[#allocation2 + $0xf0] sm:$0xff]
        %v836 = vld [vmem:[#allocation2 + $0x108] sm:$0xff]
        %v837 = vld [vmem:[#allocation2 + $0x110] sm:$0xff]
        %v838 = vld [vmem:[#allocation2 + $0x128] sm:$0xff]
        %v839 = vld [vmem:[#allocation2 + $0x130] sm:$0xff]
        %v840 = vld [vmem:[#allocation2 + $0x148] sm:$0xff]
        %v841 = vld [vmem:[#allocation2 + $0x150] sm:$0xff]
        %v842 = vld [vmem:[#allocation2 + $0x168] sm:$0xff]
        %v843 = vld [vmem:[#allocation2 + $0x170] sm:$0xff]
        %v844 = vld [vmem:[#allocation2 + $0x188] sm:$0xff]
        %v845 = vld [vmem:[#allocation2 + $0x190] sm:$0xff]
        %v846 = vld [vmem:[#allocation2 + $0x1a8] sm:$0xff]
        %v847 = vld [vmem:[#allocation2 + $0x1b0] sm:$0xff]
        %v848 = vld [vmem:[#allocation2 + $0x1c8] sm:$0xff]
        %v849 = vld [vmem:[#allocation2 + $0x1d0] sm:$0xff]
        %v850 = vld [vmem:[#allocation2 + $0x1e8] sm:$0xff]
        %v851 = vld [vmem:[#allocation2 + $0x1f0] sm:$0xff]
        %884 = vrot.lane.b32.xlu0 %v820, 4
        %v885 = vpop.permute.xlu0 %884
        %886 = vrot.lane.b32.xlu0 %v821, 4
        %v887 = vpop.permute.xlu0 %886
        %888 = vrot.lane.b32.xlu0 %v822, 4
        %v889 = vpop.permute.xlu0 %888
        %890 = vrot.lane.b32.xlu0 %v823, 4
        %v891 = vpop.permute.xlu0 %890
        %892 = vrot.lane.b32.xlu0 %v824, 4
        %v893 = vpop.permute.xlu0 %892
        %894 = vrot.lane.b32.xlu0 %v825, 4
        %v895 = vpop.permute.xlu0 %894
        %896 = vrot.lane.b32.xlu0 %v826, 4
        %v897 = vpop.permute.xlu0 %896
        %898 = vrot.lane.b32.xlu0 %v827, 4
        %v899 = vpop.permute.xlu0 %898
        %900 = vrot.lane.b32.xlu0 %v828, 4
        %v901 = vpop.permute.xlu0 %900
        %902 = vrot.lane.b32.xlu0 %v829, 4
        %v903 = vpop.permute.xlu0 %902
        %904 = vrot.lane.b32.xlu0 %v830, 4
        %v905 = vpop.permute.xlu0 %904
        %906 = vrot.lane.b32.xlu0 %v831, 4
        %v907 = vpop.permute.xlu0 %906
        %908 = vrot.lane.b32.xlu0 %v832, 4
        %v909 = vpop.permute.xlu0 %908
        %910 = vrot.lane.b32.xlu0 %v833, 4
        %v911 = vpop.permute.xlu0 %910
        %912 = vrot.lane.b32.xlu0 %v834, 4
        %v913 = vpop.permute.xlu0 %912
        %914 = vrot.lane.b32.xlu0 %v835, 4
        %v915 = vpop.permute.xlu0 %914
        %916 = vrot.lane.b32.xlu0 %v836, 4
        %v917 = vpop.permute.xlu0 %916
        %918 = vrot.lane.b32.xlu0 %v837, 4
        %v919 = vpop.permute.xlu0 %918
        %920 = vrot.lane.b32.xlu0 %v838, 4
        %v921 = vpop.permute.xlu0 %920
        %922 = vrot.lane.b32.xlu0 %v839, 4
        %v923 = vpop.permute.xlu0 %922
        %924 = vrot.lane.b32.xlu0 %v840, 4
        %v925 = vpop.permute.xlu0 %924
        %926 = vrot.lane.b32.xlu0 %v841, 4
        %v927 = vpop.permute.xlu0 %926
        %928 = vrot.lane.b32.xlu0 %v842, 4
        %v929 = vpop.permute.xlu0 %928
        %930 = vrot.lane.b32.xlu0 %v843, 4
        %v931 = vpop.permute.xlu0 %930
        %932 = vrot.lane.b32.xlu0 %v844, 4
        %v933 = vpop.permute.xlu0 %932
        %934 = vrot.lane.b32.xlu0 %v845, 4
        %v935 = vpop.permute.xlu0 %934
        %936 = vrot.lane.b32.xlu0 %v846, 4
        %v937 = vpop.permute.xlu0 %936
        %938 = vrot.lane.b32.xlu0 %v847, 4
        %v939 = vpop.permute.xlu0 %938
        %940 = vrot.lane.b32.xlu0 %v848, 4
        %v941 = vpop.permute.xlu0 %940
        %942 = vrot.lane.b32.xlu0 %v849, 4
        %v943 = vpop.permute.xlu0 %942
        %944 = vrot.lane.b32.xlu0 %v850, 4
        %v945 = vpop.permute.xlu0 %944
        %946 = vrot.lane.b32.xlu0 %v851, 4
        %v947 = vpop.permute.xlu0 %946
        %vm980 = vcmask 64544
        %981 = vst.msk [vmem:[#allocation10] sm:$0xff] %vm980, %v885
        %982 = vst.msk [vmem:[#allocation10 + $0x10] sm:$0xff] %vm980, %v887
        %983 = vst.msk [vmem:[#allocation10 + $0x20] sm:$0xff] %vm980, %v889
        %984 = vst.msk [vmem:[#allocation10 + $0x30] sm:$0xff] %vm980, %v891
        %985 = vst.msk [vmem:[#allocation10 + $0x40] sm:$0xff] %vm980, %v893
        %986 = vst.msk [vmem:[#allocation10 + $0x50] sm:$0xff] %vm980, %v895
        %987 = vst.msk [vmem:[#allocation10 + $0x60] sm:$0xff] %vm980, %v897
        %988 = vst.msk [vmem:[#allocation10 + $0x70] sm:$0xff] %vm980, %v899
        %989 = vst.msk [vmem:[#allocation10 + $0x80] sm:$0xff] %vm980, %v901
        %990 = vst.msk [vmem:[#allocation10 + $0x90] sm:$0xff] %vm980, %v903
        %991 = vst.msk [vmem:[#allocation10 + $0xa0] sm:$0xff] %vm980, %v905
        %992 = vst.msk [vmem:[#allocation10 + $0xb0] sm:$0xff] %vm980, %v907
        %993 = vst.msk [vmem:[#allocation10 + $0xc0] sm:$0xff] %vm980, %v909
        %994 = vst.msk [vmem:[#allocation10 + $0xd0] sm:$0xff] %vm980, %v911
        %995 = vst.msk [vmem:[#allocation10 + $0xe0] sm:$0xff] %vm980, %v913
        %996 = vst.msk [vmem:[#allocation10 + $0xf0] sm:$0xff] %vm980, %v915
        %997 = vst.msk [vmem:[#allocation10 + $0x100] sm:$0xff] %vm980, %v917
        %998 = vst.msk [vmem:[#allocation10 + $0x110] sm:$0xff] %vm980, %v919
        %999 = vst.msk [vmem:[#allocation10 + $0x120] sm:$0xff] %vm980, %v921
        %1000 = vst.msk [vmem:[#allocation10 + $0x130] sm:$0xff] %vm980, %v923
        %1001 = vst.msk [vmem:[#allocation10 + $0x140] sm:$0xff] %vm980, %v925
        %1002 = vst.msk [vmem:[#allocation10 + $0x150] sm:$0xff] %vm980, %v927
        %1003 = vst.msk [vmem:[#allocation10 + $0x160] sm:$0xff] %vm980, %v929
        %1004 = vst.msk [vmem:[#allocation10 + $0x170] sm:$0xff] %vm980, %v931
        %1005 = vst.msk [vmem:[#allocation10 + $0x180] sm:$0xff] %vm980, %v933
        %1006 = vst.msk [vmem:[#allocation10 + $0x190] sm:$0xff] %vm980, %v935
        %1007 = vst.msk [vmem:[#allocation10 + $0x1a0] sm:$0xff] %vm980, %v937
        %1008 = vst.msk [vmem:[#allocation10 + $0x1b0] sm:$0xff] %vm980, %v939
        %1009 = vst.msk [vmem:[#allocation10 + $0x1c0] sm:$0xff] %vm980, %v941
        %1010 = vst.msk [vmem:[#allocation10 + $0x1d0] sm:$0xff] %vm980, %v943
        %1011 = vst.msk [vmem:[#allocation10 + $0x1e0] sm:$0xff] %vm980, %v945
        %1012 = vst.msk [vmem:[#allocation10 + $0x1f0] sm:$0xff] %vm980, %v947
        %v1013 = vld [vmem:[#allocation2 + $0x9] sm:$0xff]
        %v1014 = vld [vmem:[#allocation2 + $0x11] sm:$0xff]
        %v1015 = vld [vmem:[#allocation2 + $0x29] sm:$0xff]
        %v1016 = vld [vmem:[#allocation2 + $0x31] sm:$0xff]
        %v1017 = vld [vmem:[#allocation2 + $0x49] sm:$0xff]
        %v1018 = vld [vmem:[#allocation2 + $0x51] sm:$0xff]
        %v1019 = vld [vmem:[#allocation2 + $0x69] sm:$0xff]
        %v1020 = vld [vmem:[#allocation2 + $0x71] sm:$0xff]
        %v1021 = vld [vmem:[#allocation2 + $0x89] sm:$0xff]
        %v1022 = vld [vmem:[#allocation2 + $0x91] sm:$0xff]
        %v1023 = vld [vmem:[#allocation2 + $0xa9] sm:$0xff]
        %v1024 = vld [vmem:[#allocation2 + $0xb1] sm:$0xff]
        %v1025 = vld [vmem:[#allocation2 + $0xc9] sm:$0xff]
        %v1026 = vld [vmem:[#allocation2 + $0xd1] sm:$0xff]
        %v1027 = vld [vmem:[#allocation2 + $0xe9] sm:$0xff]
        %v1028 = vld [vmem:[#allocation2 + $0xf1] sm:$0xff]
        %v1029 = vld [vmem:[#allocation2 + $0x109] sm:$0xff]
        %v1030 = vld [vmem:[#allocation2 + $0x111] sm:$0xff]
        %v1031 = vld [vmem:[#allocation2 + $0x129] sm:$0xff]
        %v1032 = vld [vmem:[#allocation2 + $0x131] sm:$0xff]
        %v1033 = vld [vmem:[#allocation2 + $0x149] sm:$0xff]
        %v1034 = vld [vmem:[#allocation2 + $0x151] sm:$0xff]
        %v1035 = vld [vmem:[#allocation2 + $0x169] sm:$0xff]
        %v1036 = vld [vmem:[#allocation2 + $0x171] sm:$0xff]
        %v1037 = vld [vmem:[#allocation2 + $0x189] sm:$0xff]
        %v1038 = vld [vmem:[#allocation2 + $0x191] sm:$0xff]
        %v1039 = vld [vmem:[#allocation2 + $0x1a9] sm:$0xff]
        %v1040 = vld [vmem:[#allocation2 + $0x1b1] sm:$0xff]
        %v1041 = vld [vmem:[#allocation2 + $0x1c9] sm:$0xff]
        %v1042 = vld [vmem:[#allocation2 + $0x1d1] sm:$0xff]
        %v1043 = vld [vmem:[#allocation2 + $0x1e9] sm:$0xff]
        %v1044 = vld [vmem:[#allocation2 + $0x1f1] sm:$0xff]
        %1077 = vrot.lane.b32.xlu0 %v1013, 8
        %v1078 = vpop.permute.xlu0 %1077
        %1079 = vrot.lane.b32.xlu0 %v1014, 8
        %v1080 = vpop.permute.xlu0 %1079
        %1081 = vrot.lane.b32.xlu0 %v1015, 8
        %v1082 = vpop.permute.xlu0 %1081
        %1083 = vrot.lane.b32.xlu0 %v1016, 8
        %v1084 = vpop.permute.xlu0 %1083
        %1085 = vrot.lane.b32.xlu0 %v1017, 8
        %v1086 = vpop.permute.xlu0 %1085
        %1087 = vrot.lane.b32.xlu0 %v1018, 8
        %v1088 = vpop.permute.xlu0 %1087
        %1089 = vrot.lane.b32.xlu0 %v1019, 8
        %v1090 = vpop.permute.xlu0 %1089
        %1091 = vrot.lane.b32.xlu0 %v1020, 8
        %v1092 = vpop.permute.xlu0 %1091
        %1093 = vrot.lane.b32.xlu0 %v1021, 8
        %v1094 = vpop.permute.xlu0 %1093
        %1095 = vrot.lane.b32.xlu0 %v1022, 8
        %v1096 = vpop.permute.xlu0 %1095
        %1097 = vrot.lane.b32.xlu0 %v1023, 8
        %v1098 = vpop.permute.xlu0 %1097
        %1099 = vrot.lane.b32.xlu0 %v1024, 8
        %v1100 = vpop.permute.xlu0 %1099
        %1101 = vrot.lane.b32.xlu0 %v1025, 8
        %v1102 = vpop.permute.xlu0 %1101
        %1103 = vrot.lane.b32.xlu0 %v1026, 8
        %v1104 = vpop.permute.xlu0 %1103
        %1105 = vrot.lane.b32.xlu0 %v1027, 8
        %v1106 = vpop.permute.xlu0 %1105
        %1107 = vrot.lane.b32.xlu0 %v1028, 8
        %v1108 = vpop.permute.xlu0 %1107
        %1109 = vrot.lane.b32.xlu0 %v1029, 8
        %v1110 = vpop.permute.xlu0 %1109
        %1111 = vrot.lane.b32.xlu0 %v1030, 8
        %v1112 = vpop.permute.xlu0 %1111
        %1113 = vrot.lane.b32.xlu0 %v1031, 8
        %v1114 = vpop.permute.xlu0 %1113
        %1115 = vrot.lane.b32.xlu0 %v1032, 8
        %v1116 = vpop.permute.xlu0 %1115
        %1117 = vrot.lane.b32.xlu0 %v1033, 8
        %v1118 = vpop.permute.xlu0 %1117
        %1119 = vrot.lane.b32.xlu0 %v1034, 8
        %v1120 = vpop.permute.xlu0 %1119
        %1121 = vrot.lane.b32.xlu0 %v1035, 8
        %v1122 = vpop.permute.xlu0 %1121
        %1123 = vrot.lane.b32.xlu0 %v1036, 8
        %v1124 = vpop.permute.xlu0 %1123
        %1125 = vrot.lane.b32.xlu0 %v1037, 8
        %v1126 = vpop.permute.xlu0 %1125
        %1127 = vrot.lane.b32.xlu0 %v1038, 8
        %v1128 = vpop.permute.xlu0 %1127
        %1129 = vrot.lane.b32.xlu0 %v1039, 8
        %v1130 = vpop.permute.xlu0 %1129
        %1131 = vrot.lane.b32.xlu0 %v1040, 8
        %v1132 = vpop.permute.xlu0 %1131
        %1133 = vrot.lane.b32.xlu0 %v1041, 8
        %v1134 = vpop.permute.xlu0 %1133
        %1135 = vrot.lane.b32.xlu0 %v1042, 8
        %v1136 = vpop.permute.xlu0 %1135
        %1137 = vrot.lane.b32.xlu0 %v1043, 8
        %v1138 = vpop.permute.xlu0 %1137
        %1139 = vrot.lane.b32.xlu0 %v1044, 8
        %v1140 = vpop.permute.xlu0 %1139
        %vm1173 = vcmask 97344
        %1174 = vst.msk [vmem:[#allocation10] sm:$0xff] %vm1173, %v1078
        %1175 = vst.msk [vmem:[#allocation10 + $0x10] sm:$0xff] %vm1173, %v1080
        %1176 = vst.msk [vmem:[#allocation10 + $0x20] sm:$0xff] %vm1173, %v1082
        %1177 = vst.msk [vmem:[#allocation10 + $0x30] sm:$0xff] %vm1173, %v1084
        %1178 = vst.msk [vmem:[#allocation10 + $0x40] sm:$0xff] %vm1173, %v1086
        %1179 = vst.msk [vmem:[#allocation10 + $0x50] sm:$0xff] %vm1173, %v1088
        %1180 = vst.msk [vmem:[#allocation10 + $0x60] sm:$0xff] %vm1173, %v1090
        %1181 = vst.msk [vmem:[#allocation10 + $0x70] sm:$0xff] %vm1173, %v1092
        %1182 = vst.msk [vmem:[#allocation10 + $0x80] sm:$0xff] %vm1173, %v1094
        %1183 = vst.msk [vmem:[#allocation10 + $0x90] sm:$0xff] %vm1173, %v1096
        %1184 = vst.msk [vmem:[#allocation10 + $0xa0] sm:$0xff] %vm1173, %v1098
        %1185 = vst.msk [vmem:[#allocation10 + $0xb0] sm:$0xff] %vm1173, %v1100
        %1186 = vst.msk [vmem:[#allocation10 + $0xc0] sm:$0xff] %vm1173, %v1102
        %1187 = vst.msk [vmem:[#allocation10 + $0xd0] sm:$0xff] %vm1173, %v1104
        %1188 = vst.msk [vmem:[#allocation10 + $0xe0] sm:$0xff] %vm1173, %v1106
        %1189 = vst.msk [vmem:[#allocation10 + $0xf0] sm:$0xff] %vm1173, %v1108
        %1190 = vst.msk [vmem:[#allocation10 + $0x100] sm:$0xff] %vm1173, %v1110
        %1191 = vst.msk [vmem:[#allocation10 + $0x110] sm:$0xff] %vm1173, %v1112
        %1192 = vst.msk [vmem:[#allocation10 + $0x120] sm:$0xff] %vm1173, %v1114
        %1193 = vst.msk [vmem:[#allocation10 + $0x130] sm:$0xff] %vm1173, %v1116
        %1194 = vst.msk [vmem:[#allocation10 + $0x140] sm:$0xff] %vm1173, %v1118
        %1195 = vst.msk [vmem:[#allocation10 + $0x150] sm:$0xff] %vm1173, %v1120
        %1196 = vst.msk [vmem:[#allocation10 + $0x160] sm:$0xff] %vm1173, %v1122
        %1197 = vst.msk [vmem:[#allocation10 + $0x170] sm:$0xff] %vm1173, %v1124
        %1198 = vst.msk [vmem:[#allocation10 + $0x180] sm:$0xff] %vm1173, %v1126
        %1199 = vst.msk [vmem:[#allocation10 + $0x190] sm:$0xff] %vm1173, %v1128
        %1200 = vst.msk [vmem:[#allocation10 + $0x1a0] sm:$0xff] %vm1173, %v1130
        %1201 = vst.msk [vmem:[#allocation10 + $0x1b0] sm:$0xff] %vm1173, %v1132
        %1202 = vst.msk [vmem:[#allocation10 + $0x1c0] sm:$0xff] %vm1173, %v1134
        %1203 = vst.msk [vmem:[#allocation10 + $0x1d0] sm:$0xff] %vm1173, %v1136
        %1204 = vst.msk [vmem:[#allocation10 + $0x1e0] sm:$0xff] %vm1173, %v1138
        %1205 = vst.msk [vmem:[#allocation10 + $0x1f0] sm:$0xff] %vm1173, %v1140
        %v1206 = vld [vmem:[%s723 + $0x7] sm:$0xff]
        %v1207 = vld [vmem:[%s723 + $0xf] sm:$0xff]
        %v1208 = vld [vmem:[%s723 + $0x27] sm:$0xff]
        %v1209 = vld [vmem:[%s723 + $0x2f] sm:$0xff]
        %v1210 = vld [vmem:[%s723 + $0x47] sm:$0xff]
        %v1211 = vld [vmem:[%s723 + $0x4f] sm:$0xff]
        %v1212 = vld [vmem:[%s723 + $0x67] sm:$0xff]
        %v1213 = vld [vmem:[%s723 + $0x6f] sm:$0xff]
        %v1214 = vld [vmem:[%s723 + $0x87] sm:$0xff]
        %v1215 = vld [vmem:[%s723 + $0x8f] sm:$0xff]
        %v1216 = vld [vmem:[%s723 + $0xa7] sm:$0xff]
        %v1217 = vld [vmem:[%s723 + $0xaf] sm:$0xff]
        %v1218 = vld [vmem:[%s723 + $0xc7] sm:$0xff]
        %v1219 = vld [vmem:[%s723 + $0xcf] sm:$0xff]
        %v1220 = vld [vmem:[%s723 + $0xe7] sm:$0xff]
        %v1221 = vld [vmem:[%s723 + $0xef] sm:$0xff]
        %v1222 = vld [vmem:[%s723 + $0x107] sm:$0xff]
        %v1223 = vld [vmem:[%s723 + $0x10f] sm:$0xff]
        %v1224 = vld [vmem:[%s723 + $0x127] sm:$0xff]
        %v1225 = vld [vmem:[%s723 + $0x12f] sm:$0xff]
        %v1226 = vld [vmem:[%s723 + $0x147] sm:$0xff]
        %v1227 = vld [vmem:[%s723 + $0x14f] sm:$0xff]
        %v1228 = vld [vmem:[%s723 + $0x167] sm:$0xff]
        %v1229 = vld [vmem:[%s723 + $0x16f] sm:$0xff]
        %v1230 = vld [vmem:[%s723 + $0x187] sm:$0xff]
        %v1231 = vld [vmem:[%s723 + $0x18f] sm:$0xff]
        %v1232 = vld [vmem:[%s723 + $0x1a7] sm:$0xff]
        %v1233 = vld [vmem:[%s723 + $0x1af] sm:$0xff]
        %v1234 = vld [vmem:[%s723 + $0x1c7] sm:$0xff]
        %v1235 = vld [vmem:[%s723 + $0x1cf] sm:$0xff]
        %v1236 = vld [vmem:[%s723 + $0x1e7] sm:$0xff]
        %v1237 = vld [vmem:[%s723 + $0x1ef] sm:$0xff]
        %1270 = vrot.lane.b32.xlu0 %v1206, 12
        %v1271 = vpop.permute.xlu0 %1270
        %1272 = vrot.lane.b32.xlu0 %v1207, 12
        %v1273 = vpop.permute.xlu0 %1272
        %1274 = vrot.lane.b32.xlu0 %v1208, 12
        %v1275 = vpop.permute.xlu0 %1274
        %1276 = vrot.lane.b32.xlu0 %v1209, 12
        %v1277 = vpop.permute.xlu0 %1276
        %1278 = vrot.lane.b32.xlu0 %v1210, 12
        %v1279 = vpop.permute.xlu0 %1278
        %1280 = vrot.lane.b32.xlu0 %v1211, 12
        %v1281 = vpop.permute.xlu0 %1280
        %1282 = vrot.lane.b32.xlu0 %v1212, 12
        %v1283 = vpop.permute.xlu0 %1282
        %1284 = vrot.lane.b32.xlu0 %v1213, 12
        %v1285 = vpop.permute.xlu0 %1284
        %1286 = vrot.lane.b32.xlu0 %v1214, 12
        %v1287 = vpop.permute.xlu0 %1286
        %1288 = vrot.lane.b32.xlu0 %v1215, 12
        %v1289 = vpop.permute.xlu0 %1288
        %1290 = vrot.lane.b32.xlu0 %v1216, 12
        %v1291 = vpop.permute.xlu0 %1290
        %1292 = vrot.lane.b32.xlu0 %v1217, 12
        %v1293 = vpop.permute.xlu0 %1292
        %1294 = vrot.lane.b32.xlu0 %v1218, 12
        %v1295 = vpop.permute.xlu0 %1294
        %1296 = vrot.lane.b32.xlu0 %v1219, 12
        %v1297 = vpop.permute.xlu0 %1296
        %1298 = vrot.lane.b32.xlu0 %v1220, 12
        %v1299 = vpop.permute.xlu0 %1298
        %1300 = vrot.lane.b32.xlu0 %v1221, 12
        %v1301 = vpop.permute.xlu0 %1300
        %1302 = vrot.lane.b32.xlu0 %v1222, 12
        %v1303 = vpop.permute.xlu0 %1302
        %1304 = vrot.lane.b32.xlu0 %v1223, 12
        %v1305 = vpop.permute.xlu0 %1304
        %1306 = vrot.lane.b32.xlu0 %v1224, 12
        %v1307 = vpop.permute.xlu0 %1306
        %1308 = vrot.lane.b32.xlu0 %v1225, 12
        %v1309 = vpop.permute.xlu0 %1308
        %1310 = vrot.lane.b32.xlu0 %v1226, 12
        %v1311 = vpop.permute.xlu0 %1310
        %1312 = vrot.lane.b32.xlu0 %v1227, 12
        %v1313 = vpop.permute.xlu0 %1312
        %1314 = vrot.lane.b32.xlu0 %v1228, 12
        %v1315 = vpop.permute.xlu0 %1314
        %1316 = vrot.lane.b32.xlu0 %v1229, 12
        %v1317 = vpop.permute.xlu0 %1316
        %1318 = vrot.lane.b32.xlu0 %v1230, 12
        %v1319 = vpop.permute.xlu0 %1318
        %1320 = vrot.lane.b32.xlu0 %v1231, 12
        %v1321 = vpop.permute.xlu0 %1320
        %1322 = vrot.lane.b32.xlu0 %v1232, 12
        %v1323 = vpop.permute.xlu0 %1322
        %1324 = vrot.lane.b32.xlu0 %v1233, 12
        %v1325 = vpop.permute.xlu0 %1324
        %1326 = vrot.lane.b32.xlu0 %v1234, 12
        %v1327 = vpop.permute.xlu0 %1326
        %1328 = vrot.lane.b32.xlu0 %v1235, 12
        %v1329 = vpop.permute.xlu0 %1328
        %1330 = vrot.lane.b32.xlu0 %v1236, 12
        %v1331 = vpop.permute.xlu0 %1330
        %1332 = vrot.lane.b32.xlu0 %v1237, 12
        %v1333 = vpop.permute.xlu0 %1332
        %vm1366 = vcmask 130144
        %1367 = vst.msk [vmem:[#allocation10] sm:$0xff] %vm1366, %v1271
        %1368 = vst.msk [vmem:[#allocation10 + $0x10] sm:$0xff] %vm1366, %v1273
        %1369 = vst.msk [vmem:[#allocation10 + $0x20] sm:$0xff] %vm1366, %v1275
        %1370 = vst.msk [vmem:[#allocation10 + $0x30] sm:$0xff] %vm1366, %v1277
        %1371 = vst.msk [vmem:[#allocation10 + $0x40] sm:$0xff] %vm1366, %v1279
        %1372 = vst.msk [vmem:[#allocation10 + $0x50] sm:$0xff] %vm1366, %v1281
        %1373 = vst.msk [vmem:[#allocation10 + $0x60] sm:$0xff] %vm1366, %v1283
        %1374 = vst.msk [vmem:[#allocation10 + $0x70] sm:$0xff] %vm1366, %v1285
        %1375 = vst.msk [vmem:[#allocation10 + $0x80] sm:$0xff] %vm1366, %v1287
        %1376 = vst.msk [vmem:[#allocation10 + $0x90] sm:$0xff] %vm1366, %v1289
        %1377 = vst.msk [vmem:[#allocation10 + $0xa0] sm:$0xff] %vm1366, %v1291
        %1378 = vst.msk [vmem:[#allocation10 + $0xb0] sm:$0xff] %vm1366, %v1293
        %1379 = vst.msk [vmem:[#allocation10 + $0xc0] sm:$0xff] %vm1366, %v1295
        %1380 = vst.msk [vmem:[#allocation10 + $0xd0] sm:$0xff] %vm1366, %v1297
        %1381 = vst.msk [vmem:[#allocation10 + $0xe0] sm:$0xff] %vm1366, %v1299
        %1382 = vst.msk [vmem:[#allocation10 + $0xf0] sm:$0xff] %vm1366, %v1301
        %1383 = vst.msk [vmem:[#allocation10 + $0x100] sm:$0xff] %vm1366, %v1303
        %1384 = vst.msk [vmem:[#allocation10 + $0x110] sm:$0xff] %vm1366, %v1305
        %1385 = vst.msk [vmem:[#allocation10 + $0x120] sm:$0xff] %vm1366, %v1307
        %1386 = vst.msk [vmem:[#allocation10 + $0x130] sm:$0xff] %vm1366, %v1309
        %1387 = vst.msk [vmem:[#allocation10 + $0x140] sm:$0xff] %vm1366, %v1311
        %1388 = vst.msk [vmem:[#allocation10 + $0x150] sm:$0xff] %vm1366, %v1313
        %1389 = vst.msk [vmem:[#allocation10 + $0x160] sm:$0xff] %vm1366, %v1315
        %1390 = vst.msk [vmem:[#allocation10 + $0x170] sm:$0xff] %vm1366, %v1317
        %1391 = vst.msk [vmem:[#allocation10 + $0x180] sm:$0xff] %vm1366, %v1319
        %1392 = vst.msk [vmem:[#allocation10 + $0x190] sm:$0xff] %vm1366, %v1321
        %1393 = vst.msk [vmem:[#allocation10 + $0x1a0] sm:$0xff] %vm1366, %v1323
        %1394 = vst.msk [vmem:[#allocation10 + $0x1b0] sm:$0xff] %vm1366, %v1325
        %1395 = vst.msk [vmem:[#allocation10 + $0x1c0] sm:$0xff] %vm1366, %v1327
        %1396 = vst.msk [vmem:[#allocation10 + $0x1d0] sm:$0xff] %vm1366, %v1329
        %1397 = vst.msk [vmem:[#allocation10 + $0x1e0] sm:$0xff] %vm1366, %v1331
        %1398 = vst.msk [vmem:[#allocation10 + $0x1f0] sm:$0xff] %vm1366, %v1333
        %v1399 = vld [vmem:[%s723 + $0x8] sm:$0xff]
        %v1400 = vld [vmem:[%s723 + $0x10] sm:$0xff]
        %v1401 = vld [vmem:[%s723 + $0x28] sm:$0xff]
        %v1402 = vld [vmem:[%s723 + $0x30] sm:$0xff]
        %v1403 = vld [vmem:[%s723 + $0x48] sm:$0xff]
        %v1404 = vld [vmem:[%s723 + $0x50] sm:$0xff]
        %v1405 = vld [vmem:[%s723 + $0x68] sm:$0xff]
        %v1406 = vld [vmem:[%s723 + $0x70] sm:$0xff]
        %v1407 = vld [vmem:[%s723 + $0x88] sm:$0xff]
        %v1408 = vld [vmem:[%s723 + $0x90] sm:$0xff]
        %v1409 = vld [vmem:[%s723 + $0xa8] sm:$0xff]
        %v1410 = vld [vmem:[%s723 + $0xb0] sm:$0xff]
        %v1411 = vld [vmem:[%s723 + $0xc8] sm:$0xff]
        %v1412 = vld [vmem:[%s723 + $0xd0] sm:$0xff]
        %v1413 = vld [vmem:[%s723 + $0xe8] sm:$0xff]
        %v1414 = vld [vmem:[%s723 + $0xf0] sm:$0xff]
        %v1415 = vld [vmem:[%s723 + $0x108] sm:$0xff]
        %v1416 = vld [vmem:[%s723 + $0x110] sm:$0xff]
        %v1417 = vld [vmem:[%s723 + $0x128] sm:$0xff]
        %v1418 = vld [vmem:[%s723 + $0x130] sm:$0xff]
        %v1419 = vld [vmem:[%s723 + $0x148] sm:$0xff]
        %v1420 = vld [vmem:[%s723 + $0x150] sm:$0xff]
        %v1421 = vld [vmem:[%s723 + $0x168] sm:$0xff]
        %v1422 = vld [vmem:[%s723 + $0x170] sm:$0xff]
        %v1423 = vld [vmem:[%s723 + $0x188] sm:$0xff]
        %v1424 = vld [vmem:[%s723 + $0x190] sm:$0xff]
        %v1425 = vld [vmem:[%s723 + $0x1a8] sm:$0xff]
        %v1426 = vld [vmem:[%s723 + $0x1b0] sm:$0xff]
        %v1427 = vld [vmem:[%s723 + $0x1c8] sm:$0xff]
        %v1428 = vld [vmem:[%s723 + $0x1d0] sm:$0xff]
        %v1429 = vld [vmem:[%s723 + $0x1e8] sm:$0xff]
        %v1430 = vld [vmem:[%s723 + $0x1f0] sm:$0xff]
        %1463 = vrot.lane.b32.xlu0 %v1399, 16
        %v1464 = vpop.permute.xlu0 %1463
        %1465 = vrot.lane.b32.xlu0 %v1400, 16
        %v1466 = vpop.permute.xlu0 %1465
        %1467 = vrot.lane.b32.xlu0 %v1401, 16
        %v1468 = vpop.permute.xlu0 %1467
        %1469 = vrot.lane.b32.xlu0 %v1402, 16
        %v1470 = vpop.permute.xlu0 %1469
        %1471 = vrot.lane.b32.xlu0 %v1403, 16
        %v1472 = vpop.permute.xlu0 %1471
        %1473 = vrot.lane.b32.xlu0 %v1404, 16
        %v1474 = vpop.permute.xlu0 %1473
        %1475 = vrot.lane.b32.xlu0 %v1405, 16
        %v1476 = vpop.permute.xlu0 %1475
        %1477 = vrot.lane.b32.xlu0 %v1406, 16
        %v1478 = vpop.permute.xlu0 %1477
        %1479 = vrot.lane.b32.xlu0 %v1407, 16
        %v1480 = vpop.permute.xlu0 %1479
        %1481 = vrot.lane.b32.xlu0 %v1408, 16
        %v1482 = vpop.permute.xlu0 %1481
        %1483 = vrot.lane.b32.xlu0 %v1409, 16
        %v1484 = vpop.permute.xlu0 %1483
        %1485 = vrot.lane.b32.xlu0 %v1410, 16
        %v1486 = vpop.permute.xlu0 %1485
        %1487 = vrot.lane.b32.xlu0 %v1411, 16
        %v1488 = vpop.permute.xlu0 %1487
        %1489 = vrot.lane.b32.xlu0 %v1412, 16
        %v1490 = vpop.permute.xlu0 %1489
        %1491 = vrot.lane.b32.xlu0 %v1413, 16
        %v1492 = vpop.permute.xlu0 %1491
        %1493 = vrot.lane.b32.xlu0 %v1414, 16
        %v1494 = vpop.permute.xlu0 %1493
        %1495 = vrot.lane.b32.xlu0 %v1415, 16
        %v1496 = vpop.permute.xlu0 %1495
        %1497 = vrot.lane.b32.xlu0 %v1416, 16
        %v1498 = vpop.permute.xlu0 %1497
        %1499 = vrot.lane.b32.xlu0 %v1417, 16
        %v1500 = vpop.permute.xlu0 %1499
        %1501 = vrot.lane.b32.xlu0 %v1418, 16
        %v1502 = vpop.permute.xlu0 %1501
        %1503 = vrot.lane.b32.xlu0 %v1419, 16
        %v1504 = vpop.permute.xlu0 %1503
        %1505 = vrot.lane.b32.xlu0 %v1420, 16
        %v1506 = vpop.permute.xlu0 %1505
        %1507 = vrot.lane.b32.xlu0 %v1421, 16
        %v1508 = vpop.permute.xlu0 %1507
        %1509 = vrot.lane.b32.xlu0 %v1422, 16
        %v1510 = vpop.permute.xlu0 %1509
        %1511 = vrot.lane.b32.xlu0 %v1423, 16
        %v1512 = vpop.permute.xlu0 %1511
        %1513 = vrot.lane.b32.xlu0 %v1424, 16
        %v1514 = vpop.permute.xlu0 %1513
        %1515 = vrot.lane.b32.xlu0 %v1425, 16
        %v1516 = vpop.permute.xlu0 %1515
        %1517 = vrot.lane.b32.xlu0 %v1426, 16
        %v1518 = vpop.permute.xlu0 %1517
        %1519 = vrot.lane.b32.xlu0 %v1427, 16
        %v1520 = vpop.permute.xlu0 %1519
        %1521 = vrot.lane.b32.xlu0 %v1428, 16
        %v1522 = vpop.permute.xlu0 %1521
        %1523 = vrot.lane.b32.xlu0 %v1429, 16
        %v1524 = vpop.permute.xlu0 %1523
        %1525 = vrot.lane.b32.xlu0 %v1430, 16
        %v1526 = vpop.permute.xlu0 %1525
        %vm1559 = vcmask 162944
        %1560 = vst.msk [vmem:[#allocation10] sm:$0xff] %vm1559, %v1464
        %1561 = vst.msk [vmem:[#allocation10 + $0x10] sm:$0xff] %vm1559, %v1466
        %1562 = vst.msk [vmem:[#allocation10 + $0x20] sm:$0xff] %vm1559, %v1468
        %1563 = vst.msk [vmem:[#allocation10 + $0x30] sm:$0xff] %vm1559, %v1470
        %1564 = vst.msk [vmem:[#allocation10 + $0x40] sm:$0xff] %vm1559, %v1472
        %1565 = vst.msk [vmem:[#allocation10 + $0x50] sm:$0xff] %vm1559, %v1474
        %1566 = vst.msk [vmem:[#allocation10 + $0x60] sm:$0xff] %vm1559, %v1476
        %1567 = vst.msk [vmem:[#allocation10 + $0x70] sm:$0xff] %vm1559, %v1478
        %1568 = vst.msk [vmem:[#allocation10 + $0x80] sm:$0xff] %vm1559, %v1480
        %1569 = vst.msk [vmem:[#allocation10 + $0x90] sm:$0xff] %vm1559, %v1482
        %1570 = vst.msk [vmem:[#allocation10 + $0xa0] sm:$0xff] %vm1559, %v1484
        %1571 = vst.msk [vmem:[#allocation10 + $0xb0] sm:$0xff] %vm1559, %v1486
        %1572 = vst.msk [vmem:[#allocation10 + $0xc0] sm:$0xff] %vm1559, %v1488
        %1573 = vst.msk [vmem:[#allocation10 + $0xd0] sm:$0xff] %vm1559, %v1490
        %1574 = vst.msk [vmem:[#allocation10 + $0xe0] sm:$0xff] %vm1559, %v1492
        %1575 = vst.msk [vmem:[#allocation10 + $0xf0] sm:$0xff] %vm1559, %v1494
        %1576 = vst.msk [vmem:[#allocation10 + $0x100] sm:$0xff] %vm1559, %v1496
        %1577 = vst.msk [vmem:[#allocation10 + $0x110] sm:$0xff] %vm1559, %v1498
        %1578 = vst.msk [vmem:[#allocation10 + $0x120] sm:$0xff] %vm1559, %v1500
        %1579 = vst.msk [vmem:[#allocation10 + $0x130] sm:$0xff] %vm1559, %v1502
        %1580 = vst.msk [vmem:[#allocation10 + $0x140] sm:$0xff] %vm1559, %v1504
        %1581 = vst.msk [vmem:[#allocation10 + $0x150] sm:$0xff] %vm1559, %v1506
        %1582 = vst.msk [vmem:[#allocation10 + $0x160] sm:$0xff] %vm1559, %v1508
        %1583 = vst.msk [vmem:[#allocation10 + $0x170] sm:$0xff] %vm1559, %v1510
        %1584 = vst.msk [vmem:[#allocation10 + $0x180] sm:$0xff] %vm1559, %v1512
        %1585 = vst.msk [vmem:[#allocation10 + $0x190] sm:$0xff] %vm1559, %v1514
        %1586 = vst.msk [vmem:[#allocation10 + $0x1a0] sm:$0xff] %vm1559, %v1516
        %1587 = vst.msk [vmem:[#allocation10 + $0x1b0] sm:$0xff] %vm1559, %v1518
        %1588 = vst.msk [vmem:[#allocation10 + $0x1c0] sm:$0xff] %vm1559, %v1520
        %1589 = vst.msk [vmem:[#allocation10 + $0x1d0] sm:$0xff] %vm1559, %v1522
        %1590 = vst.msk [vmem:[#allocation10 + $0x1e0] sm:$0xff] %vm1559, %v1524
        %1591 = vst.msk [vmem:[#allocation10 + $0x1f0] sm:$0xff] %vm1559, %v1526
        %v1592 = vld [vmem:[%s723 + $0x9] sm:$0xff]
        %v1593 = vld [vmem:[%s723 + $0x11] sm:$0xff]
        %v1594 = vld [vmem:[%s723 + $0x29] sm:$0xff]
        %v1595 = vld [vmem:[%s723 + $0x31] sm:$0xff]
        %v1596 = vld [vmem:[%s723 + $0x49] sm:$0xff]
        %v1597 = vld [vmem:[%s723 + $0x51] sm:$0xff]
        %v1598 = vld [vmem:[%s723 + $0x69] sm:$0xff]
        %v1599 = vld [vmem:[%s723 + $0x71] sm:$0xff]
        %v1600 = vld [vmem:[%s723 + $0x89] sm:$0xff]
        %v1601 = vld [vmem:[%s723 + $0x91] sm:$0xff]
        %v1602 = vld [vmem:[%s723 + $0xa9] sm:$0xff]
        %v1603 = vld [vmem:[%s723 + $0xb1] sm:$0xff]
        %v1604 = vld [vmem:[%s723 + $0xc9] sm:$0xff]
        %v1605 = vld [vmem:[%s723 + $0xd1] sm:$0xff]
        %v1606 = vld [vmem:[%s723 + $0xe9] sm:$0xff]
        %v1607 = vld [vmem:[%s723 + $0xf1] sm:$0xff]
        %v1608 = vld [vmem:[%s723 + $0x109] sm:$0xff]
        %v1609 = vld [vmem:[%s723 + $0x111] sm:$0xff]
        %v1610 = vld [vmem:[%s723 + $0x129] sm:$0xff]
        %v1611 = vld [vmem:[%s723 + $0x131] sm:$0xff]
        %v1612 = vld [vmem:[%s723 + $0x149] sm:$0xff]
        %v1613 = vld [vmem:[%s723 + $0x151] sm:$0xff]
        %v1614 = vld [vmem:[%s723 + $0x169] sm:$0xff]
        %v1615 = vld [vmem:[%s723 + $0x171] sm:$0xff]
        %v1616 = vld [vmem:[%s723 + $0x189] sm:$0xff]
        %v1617 = vld [vmem:[%s723 + $0x191] sm:$0xff]
        %v1618 = vld [vmem:[%s723 + $0x1a9] sm:$0xff]
        %v1619 = vld [vmem:[%s723 + $0x1b1] sm:$0xff]
        %v1620 = vld [vmem:[%s723 + $0x1c9] sm:$0xff]
        %v1621 = vld [vmem:[%s723 + $0x1d1] sm:$0xff]
        %v1622 = vld [vmem:[%s723 + $0x1e9] sm:$0xff]
        %v1623 = vld [vmem:[%s723 + $0x1f1] sm:$0xff]
        %1656 = vrot.lane.b32.xlu0 %v1592, 20
        %v1657 = vpop.permute.xlu0 %1656
        %1658 = vrot.lane.b32.xlu0 %v1593, 20
        %v1659 = vpop.permute.xlu0 %1658
        %1660 = vrot.lane.b32.xlu0 %v1594, 20
        %v1661 = vpop.permute.xlu0 %1660
        %1662 = vrot.lane.b32.xlu0 %v1595, 20
        %v1663 = vpop.permute.xlu0 %1662
        %1664 = vrot.lane.b32.xlu0 %v1596, 20
        %v1665 = vpop.permute.xlu0 %1664
        %1666 = vrot.lane.b32.xlu0 %v1597, 20
        %v1667 = vpop.permute.xlu0 %1666
        %1668 = vrot.lane.b32.xlu0 %v1598, 20
        %v1669 = vpop.permute.xlu0 %1668
        %1670 = vrot.lane.b32.xlu0 %v1599, 20
        %v1671 = vpop.permute.xlu0 %1670
        %1672 = vrot.lane.b32.xlu0 %v1600, 20
        %v1673 = vpop.permute.xlu0 %1672
        %1674 = vrot.lane.b32.xlu0 %v1601, 20
        %v1675 = vpop.permute.xlu0 %1674
        %1676 = vrot.lane.b32.xlu0 %v1602, 20
        %v1677 = vpop.permute.xlu0 %1676
        %1678 = vrot.lane.b32.xlu0 %v1603, 20
        %v1679 = vpop.permute.xlu0 %1678
        %1680 = vrot.lane.b32.xlu0 %v1604, 20
        %v1681 = vpop.permute.xlu0 %1680
        %1682 = vrot.lane.b32.xlu0 %v1605, 20
        %v1683 = vpop.permute.xlu0 %1682
        %1684 = vrot.lane.b32.xlu0 %v1606, 20
        %v1685 = vpop.permute.xlu0 %1684
        %1686 = vrot.lane.b32.xlu0 %v1607, 20
        %v1687 = vpop.permute.xlu0 %1686
        %1688 = vrot.lane.b32.xlu0 %v1608, 20
        %v1689 = vpop.permute.xlu0 %1688
        %1690 = vrot.lane.b32.xlu0 %v1609, 20
        %v1691 = vpop.permute.xlu0 %1690
        %1692 = vrot.lane.b32.xlu0 %v1610, 20
        %v1693 = vpop.permute.xlu0 %1692
        %1694 = vrot.lane.b32.xlu0 %v1611, 20
        %v1695 = vpop.permute.xlu0 %1694
        %1696 = vrot.lane.b32.xlu0 %v1612, 20
        %v1697 = vpop.permute.xlu0 %1696
        %1698 = vrot.lane.b32.xlu0 %v1613, 20
        %v1699 = vpop.permute.xlu0 %1698
        %1700 = vrot.lane.b32.xlu0 %v1614, 20
        %v1701 = vpop.permute.xlu0 %1700
        %1702 = vrot.lane.b32.xlu0 %v1615, 20
        %v1703 = vpop.permute.xlu0 %1702
        %1704 = vrot.lane.b32.xlu0 %v1616, 20
        %v1705 = vpop.permute.xlu0 %1704
        %1706 = vrot.lane.b32.xlu0 %v1617, 20
        %v1707 = vpop.permute.xlu0 %1706
        %1708 = vrot.lane.b32.xlu0 %v1618, 20
        %v1709 = vpop.permute.xlu0 %1708
        %1710 = vrot.lane.b32.xlu0 %v1619, 20
        %v1711 = vpop.permute.xlu0 %1710
        %1712 = vrot.lane.b32.xlu0 %v1620, 20
        %v1713 = vpop.permute.xlu0 %1712
        %1714 = vrot.lane.b32.xlu0 %v1621, 20
        %v1715 = vpop.permute.xlu0 %1714
        %1716 = vrot.lane.b32.xlu0 %v1622, 20
        %v1717 = vpop.permute.xlu0 %1716
        %1718 = vrot.lane.b32.xlu0 %v1623, 20
        %v1719 = vpop.permute.xlu0 %1718
        %vm1752 = vcmask 195744
        %1753 = vst.msk [vmem:[#allocation10] sm:$0xff] %vm1752, %v1657
        %1754 = vst.msk [vmem:[#allocation10 + $0x10] sm:$0xff] %vm1752, %v1659
        %1755 = vst.msk [vmem:[#allocation10 + $0x20] sm:$0xff] %vm1752, %v1661
        %1756 = vst.msk [vmem:[#allocation10 + $0x30] sm:$0xff] %vm1752, %v1663
        %1757 = vst.msk [vmem:[#allocation10 + $0x40] sm:$0xff] %vm1752, %v1665
        %1758 = vst.msk [vmem:[#allocation10 + $0x50] sm:$0xff] %vm1752, %v1667
        %1759 = vst.msk [vmem:[#allocation10 + $0x60] sm:$0xff] %vm1752, %v1669
        %1760 = vst.msk [vmem:[#allocation10 + $0x70] sm:$0xff] %vm1752, %v1671
        %1761 = vst.msk [vmem:[#allocation10 + $0x80] sm:$0xff] %vm1752, %v1673
        %1762 = vst.msk [vmem:[#allocation10 + $0x90] sm:$0xff] %vm1752, %v1675
        %1763 = vst.msk [vmem:[#allocation10 + $0xa0] sm:$0xff] %vm1752, %v1677
        %1764 = vst.msk [vmem:[#allocation10 + $0xb0] sm:$0xff] %vm1752, %v1679
        %1765 = vst.msk [vmem:[#allocation10 + $0xc0] sm:$0xff] %vm1752, %v1681
        %1766 = vst.msk [vmem:[#allocation10 + $0xd0] sm:$0xff] %vm1752, %v1683
        %1767 = vst.msk [vmem:[#allocation10 + $0xe0] sm:$0xff] %vm1752, %v1685
        %1768 = vst.msk [vmem:[#allocation10 + $0xf0] sm:$0xff] %vm1752, %v1687
        %1769 = vst.msk [vmem:[#allocation10 + $0x100] sm:$0xff] %vm1752, %v1689
        %1770 = vst.msk [vmem:[#allocation10 + $0x110] sm:$0xff] %vm1752, %v1691
        %1771 = vst.msk [vmem:[#allocation10 + $0x120] sm:$0xff] %vm1752, %v1693
        %1772 = vst.msk [vmem:[#allocation10 + $0x130] sm:$0xff] %vm1752, %v1695
        %1773 = vst.msk [vmem:[#allocation10 + $0x140] sm:$0xff] %vm1752, %v1697
        %1774 = vst.msk [vmem:[#allocation10 + $0x150] sm:$0xff] %vm1752, %v1699
        %1775 = vst.msk [vmem:[#allocation10 + $0x160] sm:$0xff] %vm1752, %v1701
        %1776 = vst.msk [vmem:[#allocation10 + $0x170] sm:$0xff] %vm1752, %v1703
        %1777 = vst.msk [vmem:[#allocation10 + $0x180] sm:$0xff] %vm1752, %v1705
        %1778 = vst.msk [vmem:[#allocation10 + $0x190] sm:$0xff] %vm1752, %v1707
        %1779 = vst.msk [vmem:[#allocation10 + $0x1a0] sm:$0xff] %vm1752, %v1709
        %1780 = vst.msk [vmem:[#allocation10 + $0x1b0] sm:$0xff] %vm1752, %v1711
        %1781 = vst.msk [vmem:[#allocation10 + $0x1c0] sm:$0xff] %vm1752, %v1713
        %1782 = vst.msk [vmem:[#allocation10 + $0x1d0] sm:$0xff] %vm1752, %v1715
        %1783 = vst.msk [vmem:[#allocation10 + $0x1e0] sm:$0xff] %vm1752, %v1717
        %1784 = vst.msk [vmem:[#allocation10 + $0x1f0] sm:$0xff] %vm1752, %v1719
        %s1785 = scalar_lea.vmem [#allocation2], 64
        %v1786 = vld [vmem:[%s1785 + $0x7] sm:$0xff]
        %v1787 = vld [vmem:[%s1785 + $0xf] sm:$0xff]
        %v1788 = vld [vmem:[%s1785 + $0x27] sm:$0xff]
        %v1789 = vld [vmem:[%s1785 + $0x2f] sm:$0xff]
        %v1790 = vld [vmem:[%s1785 + $0x47] sm:$0xff]
        %v1791 = vld [vmem:[%s1785 + $0x4f] sm:$0xff]
        %v1792 = vld [vmem:[%s1785 + $0x67] sm:$0xff]
        %v1793 = vld [vmem:[%s1785 + $0x6f] sm:$0xff]
        %v1794 = vld [vmem:[%s1785 + $0x87] sm:$0xff]
        %v1795 = vld [vmem:[%s1785 + $0x8f] sm:$0xff]
        %v1796 = vld [vmem:[%s1785 + $0xa7] sm:$0xff]
        %v1797 = vld [vmem:[%s1785 + $0xaf] sm:$0xff]
        %v1798 = vld [vmem:[%s1785 + $0xc7] sm:$0xff]
        %v1799 = vld [vmem:[%s1785 + $0xcf] sm:$0xff]
        %v1800 = vld [vmem:[%s1785 + $0xe7] sm:$0xff]
        %v1801 = vld [vmem:[%s1785 + $0xef] sm:$0xff]
        %v1802 = vld [vmem:[%s1785 + $0x107] sm:$0xff]
        %v1803 = vld [vmem:[%s1785 + $0x10f] sm:$0xff]
        %v1804 = vld [vmem:[%s1785 + $0x127] sm:$0xff]
        %v1805 = vld [vmem:[%s1785 + $0x12f] sm:$0xff]
        %v1806 = vld [vmem:[%s1785 + $0x147] sm:$0xff]
        %v1807 = vld [vmem:[%s1785 + $0x14f] sm:$0xff]
        %v1808 = vld [vmem:[%s1785 + $0x167] sm:$0xff]
        %v1809 = vld [vmem:[%s1785 + $0x16f] sm:$0xff]
        %v1810 = vld [vmem:[%s1785 + $0x187] sm:$0xff]
        %v1811 = vld [vmem:[%s1785 + $0x18f] sm:$0xff]
        %v1812 = vld [vmem:[%s1785 + $0x1a7] sm:$0xff]
        %v1813 = vld [vmem:[%s1785 + $0x1af] sm:$0xff]
        %v1814 = vld [vmem:[%s1785 + $0x1c7] sm:$0xff]
        %v1815 = vld [vmem:[%s1785 + $0x1cf] sm:$0xff]
        %v1816 = vld [vmem:[%s1785 + $0x1e7] sm:$0xff]
        %v1817 = vld [vmem:[%s1785 + $0x1ef] sm:$0xff]
        %1850 = vrot.lane.b32.xlu0 %v1786, 24
        %v1851 = vpop.permute.xlu0 %1850
        %1852 = vrot.lane.b32.xlu0 %v1787, 24
        %v1853 = vpop.permute.xlu0 %1852
        %1854 = vrot.lane.b32.xlu0 %v1788, 24
        %v1855 = vpop.permute.xlu0 %1854
        %1856 = vrot.lane.b32.xlu0 %v1789, 24
        %v1857 = vpop.permute.xlu0 %1856
        %1858 = vrot.lane.b32.xlu0 %v1790, 24
        %v1859 = vpop.permute.xlu0 %1858
        %1860 = vrot.lane.b32.xlu0 %v1791, 24
        %v1861 = vpop.permute.xlu0 %1860
        %1862 = vrot.lane.b32.xlu0 %v1792, 24
        %v1863 = vpop.permute.xlu0 %1862
        %1864 = vrot.lane.b32.xlu0 %v1793, 24
        %v1865 = vpop.permute.xlu0 %1864
        %1866 = vrot.lane.b32.xlu0 %v1794, 24
        %v1867 = vpop.permute.xlu0 %1866
        %1868 = vrot.lane.b32.xlu0 %v1795, 24
        %v1869 = vpop.permute.xlu0 %1868
        %1870 = vrot.lane.b32.xlu0 %v1796, 24
        %v1871 = vpop.permute.xlu0 %1870
        %1872 = vrot.lane.b32.xlu0 %v1797, 24
        %v1873 = vpop.permute.xlu0 %1872
        %1874 = vrot.lane.b32.xlu0 %v1798, 24
        %v1875 = vpop.permute.xlu0 %1874
        %1876 = vrot.lane.b32.xlu0 %v1799, 24
        %v1877 = vpop.permute.xlu0 %1876
        %1878 = vrot.lane.b32.xlu0 %v1800, 24
        %v1879 = vpop.permute.xlu0 %1878
        %1880 = vrot.lane.b32.xlu0 %v1801, 24
        %v1881 = vpop.permute.xlu0 %1880
        %1882 = vrot.lane.b32.xlu0 %v1802, 24
        %v1883 = vpop.permute.xlu0 %1882
        %1884 = vrot.lane.b32.xlu0 %v1803, 24
        %v1885 = vpop.permute.xlu0 %1884
        %1886 = vrot.lane.b32.xlu0 %v1804, 24
        %v1887 = vpop.permute.xlu0 %1886
        %1888 = vrot.lane.b32.xlu0 %v1805, 24
        %v1889 = vpop.permute.xlu0 %1888
        %1890 = vrot.lane.b32.xlu0 %v1806, 24
        %v1891 = vpop.permute.xlu0 %1890
        %1892 = vrot.lane.b32.xlu0 %v1807, 24
        %v1893 = vpop.permute.xlu0 %1892
        %1894 = vrot.lane.b32.xlu0 %v1808, 24
        %v1895 = vpop.permute.xlu0 %1894
        %1896 = vrot.lane.b32.xlu0 %v1809, 24
        %v1897 = vpop.permute.xlu0 %1896
        %1898 = vrot.lane.b32.xlu0 %v1810, 24
        %v1899 = vpop.permute.xlu0 %1898
        %1900 = vrot.lane.b32.xlu0 %v1811, 24
        %v1901 = vpop.permute.xlu0 %1900
        %1902 = vrot.lane.b32.xlu0 %v1812, 24
        %v1903 = vpop.permute.xlu0 %1902
        %1904 = vrot.lane.b32.xlu0 %v1813, 24
        %v1905 = vpop.permute.xlu0 %1904
        %1906 = vrot.lane.b32.xlu0 %v1814, 24
        %v1907 = vpop.permute.xlu0 %1906
        %1908 = vrot.lane.b32.xlu0 %v1815, 24
        %v1909 = vpop.permute.xlu0 %1908
        %1910 = vrot.lane.b32.xlu0 %v1816, 24
        %v1911 = vpop.permute.xlu0 %1910
        %1912 = vrot.lane.b32.xlu0 %v1817, 24
        %v1913 = vpop.permute.xlu0 %1912
        %vm1946 = vcmask 228544
        %1947 = vst.msk [vmem:[#allocation10] sm:$0xff] %vm1946, %v1851
        %1948 = vst.msk [vmem:[#allocation10 + $0x10] sm:$0xff] %vm1946, %v1853
        %1949 = vst.msk [vmem:[#allocation10 + $0x20] sm:$0xff] %vm1946, %v1855
        %1950 = vst.msk [vmem:[#allocation10 + $0x30] sm:$0xff] %vm1946, %v1857
        %1951 = vst.msk [vmem:[#allocation10 + $0x40] sm:$0xff] %vm1946, %v1859
        %1952 = vst.msk [vmem:[#allocation10 + $0x50] sm:$0xff] %vm1946, %v1861
        %1953 = vst.msk [vmem:[#allocation10 + $0x60] sm:$0xff] %vm1946, %v1863
        %1954 = vst.msk [vmem:[#allocation10 + $0x70] sm:$0xff] %vm1946, %v1865
        %1955 = vst.msk [vmem:[#allocation10 + $0x80] sm:$0xff] %vm1946, %v1867
        %1956 = vst.msk [vmem:[#allocation10 + $0x90] sm:$0xff] %vm1946, %v1869
        %1957 = vst.msk [vmem:[#allocation10 + $0xa0] sm:$0xff] %vm1946, %v1871
        %1958 = vst.msk [vmem:[#allocation10 + $0xb0] sm:$0xff] %vm1946, %v1873
        %1959 = vst.msk [vmem:[#allocation10 + $0xc0] sm:$0xff] %vm1946, %v1875
        %1960 = vst.msk [vmem:[#allocation10 + $0xd0] sm:$0xff] %vm1946, %v1877
        %1961 = vst.msk [vmem:[#allocation10 + $0xe0] sm:$0xff] %vm1946, %v1879
        %1962 = vst.msk [vmem:[#allocation10 + $0xf0] sm:$0xff] %vm1946, %v1881
        %1963 = vst.msk [vmem:[#allocation10 + $0x100] sm:$0xff] %vm1946, %v1883
        %1964 = vst.msk [vmem:[#allocation10 + $0x110] sm:$0xff] %vm1946, %v1885
        %1965 = vst.msk [vmem:[#allocation10 + $0x120] sm:$0xff] %vm1946, %v1887
        %1966 = vst.msk [vmem:[#allocation10 + $0x130] sm:$0xff] %vm1946, %v1889
        %1967 = vst.msk [vmem:[#allocation10 + $0x140] sm:$0xff] %vm1946, %v1891
        %1968 = vst.msk [vmem:[#allocation10 + $0x150] sm:$0xff] %vm1946, %v1893
        %1969 = vst.msk [vmem:[#allocation10 + $0x160] sm:$0xff] %vm1946, %v1895
        %1970 = vst.msk [vmem:[#allocation10 + $0x170] sm:$0xff] %vm1946, %v1897
        %1971 = vst.msk [vmem:[#allocation10 + $0x180] sm:$0xff] %vm1946, %v1899
        %1972 = vst.msk [vmem:[#allocation10 + $0x190] sm:$0xff] %vm1946, %v1901
        %1973 = vst.msk [vmem:[#allocation10 + $0x1a0] sm:$0xff] %vm1946, %v1903
        %1974 = vst.msk [vmem:[#allocation10 + $0x1b0] sm:$0xff] %vm1946, %v1905
        %1975 = vst.msk [vmem:[#allocation10 + $0x1c0] sm:$0xff] %vm1946, %v1907
        %1976 = vst.msk [vmem:[#allocation10 + $0x1d0] sm:$0xff] %vm1946, %v1909
        %1977 = vst.msk [vmem:[#allocation10 + $0x1e0] sm:$0xff] %vm1946, %v1911
        %1978 = vst.msk [vmem:[#allocation10 + $0x1f0] sm:$0xff] %vm1946, %v1913
        %v1979 = vld [vmem:[%s1785 + $0x8] sm:$0xff]
        %v1980 = vld [vmem:[%s1785 + $0x10] sm:$0xff]
        %v1981 = vld [vmem:[%s1785 + $0x28] sm:$0xff]
        %v1982 = vld [vmem:[%s1785 + $0x30] sm:$0xff]
        %v1983 = vld [vmem:[%s1785 + $0x48] sm:$0xff]
        %v1984 = vld [vmem:[%s1785 + $0x50] sm:$0xff]
        %v1985 = vld [vmem:[%s1785 + $0x68] sm:$0xff]
        %v1986 = vld [vmem:[%s1785 + $0x70] sm:$0xff]
        %v1987 = vld [vmem:[%s1785 + $0x88] sm:$0xff]
        %v1988 = vld [vmem:[%s1785 + $0x90] sm:$0xff]
        %v1989 = vld [vmem:[%s1785 + $0xa8] sm:$0xff]
        %v1990 = vld [vmem:[%s1785 + $0xb0] sm:$0xff]
        %v1991 = vld [vmem:[%s1785 + $0xc8] sm:$0xff]
        %v1992 = vld [vmem:[%s1785 + $0xd0] sm:$0xff]
        %v1993 = vld [vmem:[%s1785 + $0xe8] sm:$0xff]
        %v1994 = vld [vmem:[%s1785 + $0xf0] sm:$0xff]
        %v1995 = vld [vmem:[%s1785 + $0x108] sm:$0xff]
        %v1996 = vld [vmem:[%s1785 + $0x110] sm:$0xff]
        %v1997 = vld [vmem:[%s1785 + $0x128] sm:$0xff]
        %v1998 = vld [vmem:[%s1785 + $0x130] sm:$0xff]
        %v1999 = vld [vmem:[%s1785 + $0x148] sm:$0xff]
        %v2000 = vld [vmem:[%s1785 + $0x150] sm:$0xff]
        %v2001 = vld [vmem:[%s1785 + $0x168] sm:$0xff]
        %v2002 = vld [vmem:[%s1785 + $0x170] sm:$0xff]
        %v2003 = vld [vmem:[%s1785 + $0x188] sm:$0xff]
        %v2004 = vld [vmem:[%s1785 + $0x190] sm:$0xff]
        %v2005 = vld [vmem:[%s1785 + $0x1a8] sm:$0xff]
        %v2006 = vld [vmem:[%s1785 + $0x1b0] sm:$0xff]
        %v2007 = vld [vmem:[%s1785 + $0x1c8] sm:$0xff]
        %v2008 = vld [vmem:[%s1785 + $0x1d0] sm:$0xff]
        %v2009 = vld [vmem:[%s1785 + $0x1e8] sm:$0xff]
        %v2010 = vld [vmem:[%s1785 + $0x1f0] sm:$0xff]
        %2043 = vrot.lane.b32.xlu0 %v1979, 28
        %v2044 = vpop.permute.xlu0 %2043
        %2045 = vrot.lane.b32.xlu0 %v1980, 28
        %v2046 = vpop.permute.xlu0 %2045
        %2047 = vrot.lane.b32.xlu0 %v1981, 28
        %v2048 = vpop.permute.xlu0 %2047
        %2049 = vrot.lane.b32.xlu0 %v1982, 28
        %v2050 = vpop.permute.xlu0 %2049
        %2051 = vrot.lane.b32.xlu0 %v1983, 28
        %v2052 = vpop.permute.xlu0 %2051
        %2053 = vrot.lane.b32.xlu0 %v1984, 28
        %v2054 = vpop.permute.xlu0 %2053
        %2055 = vrot.lane.b32.xlu0 %v1985, 28
        %v2056 = vpop.permute.xlu0 %2055
        %2057 = vrot.lane.b32.xlu0 %v1986, 28
        %v2058 = vpop.permute.xlu0 %2057
        %2059 = vrot.lane.b32.xlu0 %v1987, 28
        %v2060 = vpop.permute.xlu0 %2059
        %2061 = vrot.lane.b32.xlu0 %v1988, 28
        %v2062 = vpop.permute.xlu0 %2061
        %2063 = vrot.lane.b32.xlu0 %v1989, 28
        %v2064 = vpop.permute.xlu0 %2063
        %2065 = vrot.lane.b32.xlu0 %v1990, 28
        %v2066 = vpop.permute.xlu0 %2065
        %2067 = vrot.lane.b32.xlu0 %v1991, 28
        %v2068 = vpop.permute.xlu0 %2067
        %2069 = vrot.lane.b32.xlu0 %v1992, 28
        %v2070 = vpop.permute.xlu0 %2069
        %2071 = vrot.lane.b32.xlu0 %v1993, 28
        %v2072 = vpop.permute.xlu0 %2071
        %2073 = vrot.lane.b32.xlu0 %v1994, 28
        %v2074 = vpop.permute.xlu0 %2073
        %2075 = vrot.lane.b32.xlu0 %v1995, 28
        %v2076 = vpop.permute.xlu0 %2075
        %2077 = vrot.lane.b32.xlu0 %v1996, 28
        %v2078 = vpop.permute.xlu0 %2077
        %2079 = vrot.lane.b32.xlu0 %v1997, 28
        %v2080 = vpop.permute.xlu0 %2079
        %2081 = vrot.lane.b32.xlu0 %v1998, 28
        %v2082 = vpop.permute.xlu0 %2081
        %2083 = vrot.lane.b32.xlu0 %v1999, 28
        %v2084 = vpop.permute.xlu0 %2083
        %2085 = vrot.lane.b32.xlu0 %v2000, 28
        %v2086 = vpop.permute.xlu0 %2085
        %2087 = vrot.lane.b32.xlu0 %v2001, 28
        %v2088 = vpop.permute.xlu0 %2087
        %2089 = vrot.lane.b32.xlu0 %v2002, 28
        %v2090 = vpop.permute.xlu0 %2089
        %2091 = vrot.lane.b32.xlu0 %v2003, 28
        %v2092 = vpop.permute.xlu0 %2091
        %2093 = vrot.lane.b32.xlu0 %v2004, 28
        %v2094 = vpop.permute.xlu0 %2093
        %2095 = vrot.lane.b32.xlu0 %v2005, 28
        %v2096 = vpop.permute.xlu0 %2095
        %2097 = vrot.lane.b32.xlu0 %v2006, 28
        %v2098 = vpop.permute.xlu0 %2097
        %2099 = vrot.lane.b32.xlu0 %v2007, 28
        %v2100 = vpop.permute.xlu0 %2099
        %2101 = vrot.lane.b32.xlu0 %v2008, 28
        %v2102 = vpop.permute.xlu0 %2101
        %2103 = vrot.lane.b32.xlu0 %v2009, 28
        %v2104 = vpop.permute.xlu0 %2103
        %2105 = vrot.lane.b32.xlu0 %v2010, 28
        %v2106 = vpop.permute.xlu0 %2105
        %vm2139 = vcmask 261344
        %2140 = vst.msk [vmem:[#allocation10] sm:$0xff] %vm2139, %v2044
        %2141 = vst.msk [vmem:[#allocation10 + $0x10] sm:$0xff] %vm2139, %v2046
        %2142 = vst.msk [vmem:[#allocation10 + $0x20] sm:$0xff] %vm2139, %v2048
        %2143 = vst.msk [vmem:[#allocation10 + $0x30] sm:$0xff] %vm2139, %v2050
        %2144 = vst.msk [vmem:[#allocation10 + $0x40] sm:$0xff] %vm2139, %v2052
        %2145 = vst.msk [vmem:[#allocation10 + $0x50] sm:$0xff] %vm2139, %v2054
        %2146 = vst.msk [vmem:[#allocation10 + $0x60] sm:$0xff] %vm2139, %v2056
        %2147 = vst.msk [vmem:[#allocation10 + $0x70] sm:$0xff] %vm2139, %v2058
        %2148 = vst.msk [vmem:[#allocation10 + $0x80] sm:$0xff] %vm2139, %v2060
        %2149 = vst.msk [vmem:[#allocation10 + $0x90] sm:$0xff] %vm2139, %v2062
        %2150 = vst.msk [vmem:[#allocation10 + $0xa0] sm:$0xff] %vm2139, %v2064
        %2151 = vst.msk [vmem:[#allocation10 + $0xb0] sm:$0xff] %vm2139, %v2066
        %2152 = vst.msk [vmem:[#allocation10 + $0xc0] sm:$0xff] %vm2139, %v2068
        %2153 = vst.msk [vmem:[#allocation10 + $0xd0] sm:$0xff] %vm2139, %v2070
        %2154 = vst.msk [vmem:[#allocation10 + $0xe0] sm:$0xff] %vm2139, %v2072
        %2155 = vst.msk [vmem:[#allocation10 + $0xf0] sm:$0xff] %vm2139, %v2074
        %2156 = vst.msk [vmem:[#allocation10 + $0x100] sm:$0xff] %vm2139, %v2076
        %2157 = vst.msk [vmem:[#allocation10 + $0x110] sm:$0xff] %vm2139, %v2078
        %2158 = vst.msk [vmem:[#allocation10 + $0x120] sm:$0xff] %vm2139, %v2080
        %2159 = vst.msk [vmem:[#allocation10 + $0x130] sm:$0xff] %vm2139, %v2082
        %2160 = vst.msk [vmem:[#allocation10 + $0x140] sm:$0xff] %vm2139, %v2084
        %2161 = vst.msk [vmem:[#allocation10 + $0x150] sm:$0xff] %vm2139, %v2086
        %2162 = vst.msk [vmem:[#allocation10 + $0x160] sm:$0xff] %vm2139, %v2088
        %2163 = vst.msk [vmem:[#allocation10 + $0x170] sm:$0xff] %vm2139, %v2090
        %2164 = vst.msk [vmem:[#allocation10 + $0x180] sm:$0xff] %vm2139, %v2092
        %2165 = vst.msk [vmem:[#allocation10 + $0x190] sm:$0xff] %vm2139, %v2094
        %2166 = vst.msk [vmem:[#allocation10 + $0x1a0] sm:$0xff] %vm2139, %v2096
        %2167 = vst.msk [vmem:[#allocation10 + $0x1b0] sm:$0xff] %vm2139, %v2098
        %2168 = vst.msk [vmem:[#allocation10 + $0x1c0] sm:$0xff] %vm2139, %v2100
        %2169 = vst.msk [vmem:[#allocation10 + $0x1d0] sm:$0xff] %vm2139, %v2102
        %2170 = vst.msk [vmem:[#allocation10 + $0x1e0] sm:$0xff] %vm2139, %v2104
        %2171 = vst.msk [vmem:[#allocation10 + $0x1f0] sm:$0xff] %vm2139, %v2106
        %v2172 = vld [vmem:[%s1785 + $0x9] sm:$0xff]
        %v2173 = vld [vmem:[%s1785 + $0x11] sm:$0xff]
        %v2174 = vld [vmem:[%s1785 + $0x29] sm:$0xff]
        %v2175 = vld [vmem:[%s1785 + $0x31] sm:$0xff]
        %v2176 = vld [vmem:[%s1785 + $0x49] sm:$0xff]
        %v2177 = vld [vmem:[%s1785 + $0x51] sm:$0xff]
        %v2178 = vld [vmem:[%s1785 + $0x69] sm:$0xff]
        %v2179 = vld [vmem:[%s1785 + $0x71] sm:$0xff]
        %v2180 = vld [vmem:[%s1785 + $0x89] sm:$0xff]
        %v2181 = vld [vmem:[%s1785 + $0x91] sm:$0xff]
        %v2182 = vld [vmem:[%s1785 + $0xa9] sm:$0xff]
        %v2183 = vld [vmem:[%s1785 + $0xb1] sm:$0xff]
        %v2184 = vld [vmem:[%s1785 + $0xc9] sm:$0xff]
        %v2185 = vld [vmem:[%s1785 + $0xd1] sm:$0xff]
        %v2186 = vld [vmem:[%s1785 + $0xe9] sm:$0xff]
        %v2187 = vld [vmem:[%s1785 + $0xf1] sm:$0xff]
        %v2188 = vld [vmem:[%s1785 + $0x109] sm:$0xff]
        %v2189 = vld [vmem:[%s1785 + $0x111] sm:$0xff]
        %v2190 = vld [vmem:[%s1785 + $0x129] sm:$0xff]
        %v2191 = vld [vmem:[%s1785 + $0x131] sm:$0xff]
        %v2192 = vld [vmem:[%s1785 + $0x149] sm:$0xff]
        %v2193 = vld [vmem:[%s1785 + $0x151] sm:$0xff]
        %v2194 = vld [vmem:[%s1785 + $0x169] sm:$0xff]
        %v2195 = vld [vmem:[%s1785 + $0x171] sm:$0xff]
        %v2196 = vld [vmem:[%s1785 + $0x189] sm:$0xff]
        %v2197 = vld [vmem:[%s1785 + $0x191] sm:$0xff]
        %v2198 = vld [vmem:[%s1785 + $0x1a9] sm:$0xff]
        %v2199 = vld [vmem:[%s1785 + $0x1b1] sm:$0xff]
        %v2200 = vld [vmem:[%s1785 + $0x1c9] sm:$0xff]
        %v2201 = vld [vmem:[%s1785 + $0x1d1] sm:$0xff]
        %v2202 = vld [vmem:[%s1785 + $0x1e9] sm:$0xff]
        %v2203 = vld [vmem:[%s1785 + $0x1f1] sm:$0xff]
        %2236 = vrot.lane.b32.xlu0 %v2172, 32
        %v2237 = vpop.permute.xlu0 %2236
        %2238 = vrot.lane.b32.xlu0 %v2173, 32
        %v2239 = vpop.permute.xlu0 %2238
        %2240 = vrot.lane.b32.xlu0 %v2174, 32
        %v2241 = vpop.permute.xlu0 %2240
        %2242 = vrot.lane.b32.xlu0 %v2175, 32
        %v2243 = vpop.permute.xlu0 %2242
        %2244 = vrot.lane.b32.xlu0 %v2176, 32
        %v2245 = vpop.permute.xlu0 %2244
        %2246 = vrot.lane.b32.xlu0 %v2177, 32
        %v2247 = vpop.permute.xlu0 %2246
        %2248 = vrot.lane.b32.xlu0 %v2178, 32
        %v2249 = vpop.permute.xlu0 %2248
        %2250 = vrot.lane.b32.xlu0 %v2179, 32
        %v2251 = vpop.permute.xlu0 %2250
        %2252 = vrot.lane.b32.xlu0 %v2180, 32
        %v2253 = vpop.permute.xlu0 %2252
        %2254 = vrot.lane.b32.xlu0 %v2181, 32
        %v2255 = vpop.permute.xlu0 %2254
        %2256 = vrot.lane.b32.xlu0 %v2182, 32
        %v2257 = vpop.permute.xlu0 %2256
        %2258 = vrot.lane.b32.xlu0 %v2183, 32
        %v2259 = vpop.permute.xlu0 %2258
        %2260 = vrot.lane.b32.xlu0 %v2184, 32
        %v2261 = vpop.permute.xlu0 %2260
        %2262 = vrot.lane.b32.xlu0 %v2185, 32
        %v2263 = vpop.permute.xlu0 %2262
        %2264 = vrot.lane.b32.xlu0 %v2186, 32
        %v2265 = vpop.permute.xlu0 %2264
        %2266 = vrot.lane.b32.xlu0 %v2187, 32
        %v2267 = vpop.permute.xlu0 %2266
        %2268 = vrot.lane.b32.xlu0 %v2188, 32
        %v2269 = vpop.permute.xlu0 %2268
        %2270 = vrot.lane.b32.xlu0 %v2189, 32
        %v2271 = vpop.permute.xlu0 %2270
        %2272 = vrot.lane.b32.xlu0 %v2190, 32
        %v2273 = vpop.permute.xlu0 %2272
        %2274 = vrot.lane.b32.xlu0 %v2191, 32
        %v2275 = vpop.permute.xlu0 %2274
        %2276 = vrot.lane.b32.xlu0 %v2192, 32
        %v2277 = vpop.permute.xlu0 %2276
        %2278 = vrot.lane.b32.xlu0 %v2193, 32
        %v2279 = vpop.permute.xlu0 %2278
        %2280 = vrot.lane.b32.xlu0 %v2194, 32
        %v2281 = vpop.permute.xlu0 %2280
        %2282 = vrot.lane.b32.xlu0 %v2195, 32
        %v2283 = vpop.permute.xlu0 %2282
        %2284 = vrot.lane.b32.xlu0 %v2196, 32
        %v2285 = vpop.permute.xlu0 %2284
        %2286 = vrot.lane.b32.xlu0 %v2197, 32
        %v2287 = vpop.permute.xlu0 %2286
        %2288 = vrot.lane.b32.xlu0 %v2198, 32
        %v2289 = vpop.permute.xlu0 %2288
        %2290 = vrot.lane.b32.xlu0 %v2199, 32
        %v2291 = vpop.permute.xlu0 %2290
        %2292 = vrot.lane.b32.xlu0 %v2200, 32
        %v2293 = vpop.permute.xlu0 %2292
        %2294 = vrot.lane.b32.xlu0 %v2201, 32
        %v2295 = vpop.permute.xlu0 %2294
        %2296 = vrot.lane.b32.xlu0 %v2202, 32
        %v2297 = vpop.permute.xlu0 %2296
        %2298 = vrot.lane.b32.xlu0 %v2203, 32
        %v2299 = vpop.permute.xlu0 %2298
        %vm2332 = vcmask 294144
        %2333 = vst.msk [vmem:[#allocation10] sm:$0xff] %vm2332, %v2237
        %2334 = vst.msk [vmem:[#allocation10 + $0x10] sm:$0xff] %vm2332, %v2239
        %2335 = vst.msk [vmem:[#allocation10 + $0x20] sm:$0xff] %vm2332, %v2241
        %2336 = vst.msk [vmem:[#allocation10 + $0x30] sm:$0xff] %vm2332, %v2243
        %2337 = vst.msk [vmem:[#allocation10 + $0x40] sm:$0xff] %vm2332, %v2245
        %2338 = vst.msk [vmem:[#allocation10 + $0x50] sm:$0xff] %vm2332, %v2247
        %2339 = vst.msk [vmem:[#allocation10 + $0x60] sm:$0xff] %vm2332, %v2249
        %2340 = vst.msk [vmem:[#allocation10 + $0x70] sm:$0xff] %vm2332, %v2251
        %2341 = vst.msk [vmem:[#allocation10 + $0x80] sm:$0xff] %vm2332, %v2253
        %2342 = vst.msk [vmem:[#allocation10 + $0x90] sm:$0xff] %vm2332, %v2255
        %2343 = vst.msk [vmem:[#allocation10 + $0xa0] sm:$0xff] %vm2332, %v2257
        %2344 = vst.msk [vmem:[#allocation10 + $0xb0] sm:$0xff] %vm2332, %v2259
        %2345 = vst.msk [vmem:[#allocation10 + $0xc0] sm:$0xff] %vm2332, %v2261
        %2346 = vst.msk [vmem:[#allocation10 + $0xd0] sm:$0xff] %vm2332, %v2263
        %2347 = vst.msk [vmem:[#allocation10 + $0xe0] sm:$0xff] %vm2332, %v2265
        %2348 = vst.msk [vmem:[#allocation10 + $0xf0] sm:$0xff] %vm2332, %v2267
        %2349 = vst.msk [vmem:[#allocation10 + $0x100] sm:$0xff] %vm2332, %v2269
        %2350 = vst.msk [vmem:[#allocation10 + $0x110] sm:$0xff] %vm2332, %v2271
        %2351 = vst.msk [vmem:[#allocation10 + $0x120] sm:$0xff] %vm2332, %v2273
        %2352 = vst.msk [vmem:[#allocation10 + $0x130] sm:$0xff] %vm2332, %v2275
        %2353 = vst.msk [vmem:[#allocation10 + $0x140] sm:$0xff] %vm2332, %v2277
        %2354 = vst.msk [vmem:[#allocation10 + $0x150] sm:$0xff] %vm2332, %v2279
        %2355 = vst.msk [vmem:[#allocation10 + $0x160] sm:$0xff] %vm2332, %v2281
        %2356 = vst.msk [vmem:[#allocation10 + $0x170] sm:$0xff] %vm2332, %v2283
        %2357 = vst.msk [vmem:[#allocation10 + $0x180] sm:$0xff] %vm2332, %v2285
        %2358 = vst.msk [vmem:[#allocation10 + $0x190] sm:$0xff] %vm2332, %v2287
        %2359 = vst.msk [vmem:[#allocation10 + $0x1a0] sm:$0xff] %vm2332, %v2289
        %2360 = vst.msk [vmem:[#allocation10 + $0x1b0] sm:$0xff] %vm2332, %v2291
        %2361 = vst.msk [vmem:[#allocation10 + $0x1c0] sm:$0xff] %vm2332, %v2293
        %2362 = vst.msk [vmem:[#allocation10 + $0x1d0] sm:$0xff] %vm2332, %v2295
        %2363 = vst.msk [vmem:[#allocation10 + $0x1e0] sm:$0xff] %vm2332, %v2297
        %2364 = vst.msk [vmem:[#allocation10 + $0x1f0] sm:$0xff] %vm2332, %v2299
        %v2365 = vld [vmem:[#allocation10] sm:$0xff]
        %v2366 = vld [vmem:[#allocation10 + $0x10] sm:$0xff]
        %v2367 = vld [vmem:[#allocation10 + $0x20] sm:$0xff]
        %v2368 = vld [vmem:[#allocation10 + $0x30] sm:$0xff]
        %v2369 = vld [vmem:[#allocation10 + $0x40] sm:$0xff]
        %v2370 = vld [vmem:[#allocation10 + $0x50] sm:$0xff]
        %v2371 = vld [vmem:[#allocation10 + $0x60] sm:$0xff]
        %v2372 = vld [vmem:[#allocation10 + $0x70] sm:$0xff]
        %v2373 = vld [vmem:[#allocation10 + $0x80] sm:$0xff]
        %v2374 = vld [vmem:[#allocation10 + $0x90] sm:$0xff]
        %v2375 = vld [vmem:[#allocation10 + $0xa0] sm:$0xff]
        %v2376 = vld [vmem:[#allocation10 + $0xb0] sm:$0xff]
        %v2377 = vld [vmem:[#allocation10 + $0xc0] sm:$0xff]
        %v2378 = vld [vmem:[#allocation10 + $0xd0] sm:$0xff]
        %v2379 = vld [vmem:[#allocation10 + $0xe0] sm:$0xff]
        %v2380 = vld [vmem:[#allocation10 + $0xf0] sm:$0xff]
        %v2381 = vld [vmem:[#allocation10 + $0x100] sm:$0xff]
        %v2382 = vld [vmem:[#allocation10 + $0x110] sm:$0xff]
        %v2383 = vld [vmem:[#allocation10 + $0x120] sm:$0xff]
        %v2384 = vld [vmem:[#allocation10 + $0x130] sm:$0xff]
        %v2385 = vld [vmem:[#allocation10 + $0x140] sm:$0xff]
        %v2386 = vld [vmem:[#allocation10 + $0x150] sm:$0xff]
        %v2387 = vld [vmem:[#allocation10 + $0x160] sm:$0xff]
        %v2388 = vld [vmem:[#allocation10 + $0x170] sm:$0xff]
        %v2389 = vld [vmem:[#allocation10 + $0x180] sm:$0xff]
        %v2390 = vld [vmem:[#allocation10 + $0x190] sm:$0xff]
        %v2391 = vld [vmem:[#allocation10 + $0x1a0] sm:$0xff]
        %v2392 = vld [vmem:[#allocation10 + $0x1b0] sm:$0xff]
        %v2393 = vld [vmem:[#allocation10 + $0x1c0] sm:$0xff]
        %v2394 = vld [vmem:[#allocation10 + $0x1d0] sm:$0xff]
        %v2395 = vld [vmem:[#allocation10 + $0x1e0] sm:$0xff]
        %v2396 = vld [vmem:[#allocation10 + $0x1f0] sm:$0xff]
        %v2397 = vpack.c.bf16 %v2366, %v2365
        %v2398 = vpack.c.bf16 %v2368, %v2367
        %v2399 = vpack.c.bf16 %v2370, %v2369
        %v2400 = vpack.c.bf16 %v2372, %v2371
        %v2401 = vpack.c.bf16 %v2374, %v2373
        %v2402 = vpack.c.bf16 %v2376, %v2375
        %v2403 = vpack.c.bf16 %v2378, %v2377
        %v2404 = vpack.c.bf16 %v2380, %v2379
        %v2405 = vpack.c.bf16 %v2382, %v2381
        %v2406 = vpack.c.bf16 %v2384, %v2383
        %v2407 = vpack.c.bf16 %v2386, %v2385
        %v2408 = vpack.c.bf16 %v2388, %v2387
        %v2409 = vpack.c.bf16 %v2390, %v2389
        %v2410 = vpack.c.bf16 %v2392, %v2391
        %v2411 = vpack.c.bf16 %v2394, %v2393
        %v2412 = vpack.c.bf16 %v2396, %v2395
        %v2413 = vld [vmem:[%s1] sm:$0xf]
        %v2414 = vld [vmem:[%s1 + $0x4] sm:$0xf]
        %v2415 = vld [vmem:[%s1 + $0x8] sm:$0xf]
        %v2416 = vld [vmem:[%s1 + $0xc] sm:$0xf]
        %v2417 = vld [vmem:[%s1 + $0x10] sm:$0x3]
        %v2418 = vld [vmem:[%s2] sm:$0x1]
        %v2420 = vperm.slane %v2418, 0
        %v2427 = vunpack.c.l.b16 %v2413
        %v2428 = vunpack.c.l.b16 %v2414
        %v2429 = vunpack.c.l.b16 %v2415
        %v2430 = vunpack.c.l.b16 %v2416
        %v2431 = vunpack.c.l.b16 %v2417
        %v2432 = vpack.c.b16 %v2428, %v2427
        %v2433 = vpack.c.b16 %v2430, %v2429
        %v2434 = vpack.c.b16 %v2431, %v2431
        %vm2437 = vcmask 293888
        %v2439 = vsel %vm2437, %v2397, 0
        %v2442 = vsel %vm2437, %v2398, 0
        %v2445 = vsel %vm2437, %v2399, 0
        %v2448 = vsel %vm2437, %v2400, 0
        %v2451 = vsel %vm2437, %v2401, 0
        %v2454 = vsel %vm2437, %v2402, 0
        %v2457 = vsel %vm2437, %v2403, 0
        %v2460 = vsel %vm2437, %v2404, 0
        %v2463 = vsel %vm2437, %v2405, 0
        %v2466 = vsel %vm2437, %v2406, 0
        %v2469 = vsel %vm2437, %v2407, 0
        %v2472 = vsel %vm2437, %v2408, 0
        %v2475 = vsel %vm2437, %v2409, 0
        %v2478 = vsel %vm2437, %v2410, 0
        %v2481 = vsel %vm2437, %v2411, 0
        %v2484 = vsel %vm2437, %v2412, 0
        %vm2486 = vcmask 1041408
        %v2488 = vsel %vm2486, %v2434, 0
        %2490 = vmatpush.bf16.msra.mxu0 0
        %2491 = vmatpush.bf16.msra.mxu0 0
        %2492 = vmatpush.bf16.msra.mxu0 0
        %2493 = vmatpush.bf16.msra.mxu0 0
        %2494 = vmatpush.bf16.msra.mxu0 0
        %2495 = vmatpush.bf16.msra.mxu0 %v2488
        %2496 = vmatpush.bf16.msra.mxu0 %v2433
        %2497 = vmatpush.bf16.msra.mxu0 %v2432
        %2498 = vmatmul.bf16.gmra.mxu0 %v2439
        %v2499 = vpop.f32.mrf.mxu0
        %v2500 = vadd.f32 %v2420, %v2499
        %v2501 = vpop.f32.mrf.mxu0
        %v2502 = vadd.f32 %v2420, %v2501
        %2503 = vmatmul.bf16.gmra.mxu0 %v2442
        %v2504 = vpop.f32.mrf.mxu0
        %v2505 = vadd.f32 %v2420, %v2504
        %v2506 = vpop.f32.mrf.mxu0
        %v2507 = vadd.f32 %v2420, %v2506
        %2508 = vmatmul.bf16.gmra.mxu0 %v2445
        %v2509 = vpop.f32.mrf.mxu0
        %v2510 = vadd.f32 %v2420, %v2509
        %v2511 = vpop.f32.mrf.mxu0
        %v2512 = vadd.f32 %v2420, %v2511
        %2513 = vmatmul.bf16.gmra.mxu0 %v2448
        %v2514 = vpop.f32.mrf.mxu0
        %v2515 = vadd.f32 %v2420, %v2514
        %v2516 = vpop.f32.mrf.mxu0
        %v2517 = vadd.f32 %v2420, %v2516
        %2518 = vmatmul.bf16.gmra.mxu0 %v2451
        %v2519 = vpop.f32.mrf.mxu0
        %v2520 = vadd.f32 %v2420, %v2519
        %v2521 = vpop.f32.mrf.mxu0
        %v2522 = vadd.f32 %v2420, %v2521
        %2523 = vmatmul.bf16.gmra.mxu0 %v2454
        %v2524 = vpop.f32.mrf.mxu0
        %v2525 = vadd.f32 %v2420, %v2524
        %v2526 = vpop.f32.mrf.mxu0
        %v2527 = vadd.f32 %v2420, %v2526
        %2528 = vmatmul.bf16.gmra.mxu0 %v2457
        %v2529 = vpop.f32.mrf.mxu0
        %v2530 = vadd.f32 %v2420, %v2529
        %v2531 = vpop.f32.mrf.mxu0
        %v2532 = vadd.f32 %v2420, %v2531
        %2533 = vmatmul.bf16.gmra.mxu0 %v2460
        %v2534 = vpop.f32.mrf.mxu0
        %v2535 = vadd.f32 %v2420, %v2534
        %v2536 = vpop.f32.mrf.mxu0
        %v2537 = vadd.f32 %v2420, %v2536
        %2538 = vmatmul.bf16.gmra.mxu0 %v2463
        %v2539 = vpop.f32.mrf.mxu0
        %v2540 = vadd.f32 %v2420, %v2539
        %v2541 = vpop.f32.mrf.mxu0
        %v2542 = vadd.f32 %v2420, %v2541
        %2543 = vmatmul.bf16.gmra.mxu0 %v2466
        %v2544 = vpop.f32.mrf.mxu0
        %v2545 = vadd.f32 %v2420, %v2544
        %v2546 = vpop.f32.mrf.mxu0
        %v2547 = vadd.f32 %v2420, %v2546
        %2548 = vmatmul.bf16.gmra.mxu0 %v2469
        %v2549 = vpop.f32.mrf.mxu0
        %v2550 = vadd.f32 %v2420, %v2549
        %v2551 = vpop.f32.mrf.mxu0
        %v2552 = vadd.f32 %v2420, %v2551
        %2553 = vmatmul.bf16.gmra.mxu0 %v2472
        %v2554 = vpop.f32.mrf.mxu0
        %v2555 = vadd.f32 %v2420, %v2554
        %v2556 = vpop.f32.mrf.mxu0
        %v2557 = vadd.f32 %v2420, %v2556
        %2558 = vmatmul.bf16.gmra.mxu0 %v2475
        %v2559 = vpop.f32.mrf.mxu0
        %v2560 = vadd.f32 %v2420, %v2559
        %v2561 = vpop.f32.mrf.mxu0
        %v2562 = vadd.f32 %v2420, %v2561
        %2563 = vmatmul.bf16.gmra.mxu0 %v2478
        %v2564 = vpop.f32.mrf.mxu0
        %v2565 = vadd.f32 %v2420, %v2564
        %v2566 = vpop.f32.mrf.mxu0
        %v2567 = vadd.f32 %v2420, %v2566
        %2568 = vmatmul.bf16.gmra.mxu0 %v2481
        %v2569 = vpop.f32.mrf.mxu0
        %v2570 = vadd.f32 %v2420, %v2569
        %v2571 = vpop.f32.mrf.mxu0
        %v2572 = vadd.f32 %v2420, %v2571
        %2573 = vmatmul.bf16.gmra.mxu0 %v2484
        %v2574 = vpop.f32.mrf.mxu0
        %v2575 = vadd.f32 %v2420, %v2574
        %v2576 = vpop.f32.mrf.mxu0
        %v2577 = vadd.f32 %v2420, %v2576
        %2578 = vdwg.mxu0
        %v2579 = vmax.f32 %v2500, 0.0
        %v2580 = vmax.f32 %v2502, 0.0
        %v2581 = vmax.f32 %v2505, 0.0
        %v2582 = vmax.f32 %v2507, 0.0
        %v2583 = vmax.f32 %v2510, 0.0
        %v2584 = vmax.f32 %v2512, 0.0
        %v2585 = vmax.f32 %v2515, 0.0
        %v2586 = vmax.f32 %v2517, 0.0
        %v2587 = vmax.f32 %v2520, 0.0
        %v2588 = vmax.f32 %v2522, 0.0
        %v2589 = vmax.f32 %v2525, 0.0
        %v2590 = vmax.f32 %v2527, 0.0
        %v2591 = vmax.f32 %v2530, 0.0
        %v2592 = vmax.f32 %v2532, 0.0
        %v2593 = vmax.f32 %v2535, 0.0
        %v2594 = vmax.f32 %v2537, 0.0
        %v2595 = vmax.f32 %v2540, 0.0
        %v2596 = vmax.f32 %v2542, 0.0
        %v2597 = vmax.f32 %v2545, 0.0
        %v2598 = vmax.f32 %v2547, 0.0
        %v2599 = vmax.f32 %v2550, 0.0
        %v2600 = vmax.f32 %v2552, 0.0
        %v2601 = vmax.f32 %v2555, 0.0
        %v2602 = vmax.f32 %v2557, 0.0
        %v2603 = vmax.f32 %v2560, 0.0
        %v2604 = vmax.f32 %v2562, 0.0
        %v2605 = vmax.f32 %v2565, 0.0
        %v2606 = vmax.f32 %v2567, 0.0
        %v2607 = vmax.f32 %v2570, 0.0
        %v2608 = vmax.f32 %v2572, 0.0
        %v2609 = vmax.f32 %v2575, 0.0
        %v2610 = vmax.f32 %v2577, 0.0
        %s2611 = scalar_lea.vmem [#allocation3], 32
        %2612 = vst.msk [vmem:[%s2611 + $0x8] sm:$0xff] %vm513, %v2579
        %2613 = vst.msk [vmem:[%s2611 + $0x10] sm:$0xff] %vm513, %v2580
        %2614 = vst.msk [vmem:[%s2611 + $0x28] sm:$0xff] %vm513, %v2581
        %2615 = vst.msk [vmem:[%s2611 + $0x30] sm:$0xff] %vm513, %v2582
        %2616 = vst.msk [vmem:[%s2611 + $0x48] sm:$0xff] %vm513, %v2583
        %2617 = vst.msk [vmem:[%s2611 + $0x50] sm:$0xff] %vm513, %v2584
        %2618 = vst.msk [vmem:[%s2611 + $0x68] sm:$0xff] %vm513, %v2585
        %2619 = vst.msk [vmem:[%s2611 + $0x70] sm:$0xff] %vm513, %v2586
        %2620 = vst.msk [vmem:[%s2611 + $0x88] sm:$0xff] %vm513, %v2587
        %2621 = vst.msk [vmem:[%s2611 + $0x90] sm:$0xff] %vm513, %v2588
        %2622 = vst.msk [vmem:[%s2611 + $0xa8] sm:$0xff] %vm513, %v2589
        %2623 = vst.msk [vmem:[%s2611 + $0xb0] sm:$0xff] %vm513, %v2590
        %2624 = vst.msk [vmem:[%s2611 + $0xc8] sm:$0xff] %vm513, %v2591
        %2625 = vst.msk [vmem:[%s2611 + $0xd0] sm:$0xff] %vm513, %v2592
        %2626 = vst.msk [vmem:[%s2611 + $0xe8] sm:$0xff] %vm513, %v2593
        %2627 = vst.msk [vmem:[%s2611 + $0xf0] sm:$0xff] %vm513, %v2594
        %2628 = vst.msk [vmem:[%s2611 + $0x108] sm:$0xff] %vm513, %v2595
        %2629 = vst.msk [vmem:[%s2611 + $0x110] sm:$0xff] %vm513, %v2596
        %2630 = vst.msk [vmem:[%s2611 + $0x128] sm:$0xff] %vm513, %v2597
        %2631 = vst.msk [vmem:[%s2611 + $0x130] sm:$0xff] %vm513, %v2598
        %2632 = vst.msk [vmem:[%s2611 + $0x148] sm:$0xff] %vm513, %v2599
        %2633 = vst.msk [vmem:[%s2611 + $0x150] sm:$0xff] %vm513, %v2600
        %2634 = vst.msk [vmem:[%s2611 + $0x168] sm:$0xff] %vm513, %v2601
        %2635 = vst.msk [vmem:[%s2611 + $0x170] sm:$0xff] %vm513, %v2602
        %2636 = vst.msk [vmem:[%s2611 + $0x188] sm:$0xff] %vm513, %v2603
        %2637 = vst.msk [vmem:[%s2611 + $0x190] sm:$0xff] %vm513, %v2604
        %2638 = vst.msk [vmem:[%s2611 + $0x1a8] sm:$0xff] %vm513, %v2605
        %2639 = vst.msk [vmem:[%s2611 + $0x1b0] sm:$0xff] %vm513, %v2606
        %2640 = vst.msk [vmem:[%s2611 + $0x1c8] sm:$0xff] %vm513, %v2607
        %2641 = vst.msk [vmem:[%s2611 + $0x1d0] sm:$0xff] %vm513, %v2608
        %2642 = vst.msk [vmem:[%s2611 + $0x1e8] sm:$0xff] %vm513, %v2609
        %2643 = vst.msk [vmem:[%s2611 + $0x1f0] sm:$0xff] %vm513, %v2610
        %s2644 = scalar_lea.vmem [#allocation3], 7
        %v2645 = vld [vmem:[%s2644] ss:$2 sm:$0xff]
        %s2646 = scalar_lea.vmem [#allocation3], 71
        %v2647 = vld [vmem:[%s2646] ss:$2 sm:$0xff]
        %s2648 = scalar_lea.vmem [#allocation3], 135
        %v2649 = vld [vmem:[%s2648] ss:$2 sm:$0xff]
        %s2650 = scalar_lea.vmem [#allocation3], 199
        %v2651 = vld [vmem:[%s2650] ss:$2 sm:$0xff]
        %s2652 = scalar_lea.vmem [#allocation3], 263
        %v2653 = vld [vmem:[%s2652] ss:$2 sm:$0xff]
        %s2654 = scalar_lea.vmem [#allocation3], 327
        %v2655 = vld [vmem:[%s2654] ss:$2 sm:$0xff]
        %s2656 = scalar_lea.vmem [#allocation3], 391
        %v2657 = vld [vmem:[%s2656] ss:$2 sm:$0xff]
        %s2658 = scalar_lea.vmem [#allocation3], 455
        %v2659 = vld [vmem:[%s2658] ss:$2 sm:$0xff]
        %s2660 = scalar_lea.vmem [#allocation3], 8
        %v2661 = vld [vmem:[%s2660] ss:$2 sm:$0xff]
        %s2662 = scalar_lea.vmem [#allocation3], 72
        %v2663 = vld [vmem:[%s2662] ss:$2 sm:$0xff]
        %s2664 = scalar_lea.vmem [#allocation3], 136
        %v2665 = vld [vmem:[%s2664] ss:$2 sm:$0xff]
        %s2666 = scalar_lea.vmem [#allocation3], 200
        %v2667 = vld [vmem:[%s2666] ss:$2 sm:$0xff]
        %s2668 = scalar_lea.vmem [#allocation3], 264
        %v2669 = vld [vmem:[%s2668] ss:$2 sm:$0xff]
        %s2670 = scalar_lea.vmem [#allocation3], 328
        %v2671 = vld [vmem:[%s2670] ss:$2 sm:$0xff]
        %s2672 = scalar_lea.vmem [#allocation3], 392
        %v2673 = vld [vmem:[%s2672] ss:$2 sm:$0xff]
        %s2674 = scalar_lea.vmem [#allocation3], 456
        %v2675 = vld [vmem:[%s2674] ss:$2 sm:$0xff]
        %v2676 = vmax.f32 %v2645, %v2661
        %v2677 = vmax.f32 %v2647, %v2663
        %v2678 = vmax.f32 %v2649, %v2665
        %v2679 = vmax.f32 %v2651, %v2667
        %v2680 = vmax.f32 %v2653, %v2669
        %v2681 = vmax.f32 %v2655, %v2671
        %v2682 = vmax.f32 %v2657, %v2673
        %v2683 = vmax.f32 %v2659, %v2675
        %s2684 = scalar_lea.vmem [#allocation3], 9
        %v2685 = vld [vmem:[%s2684] ss:$2 sm:$0xff]
        %s2686 = scalar_lea.vmem [#allocation3], 73
        %v2687 = vld [vmem:[%s2686] ss:$2 sm:$0xff]
        %s2688 = scalar_lea.vmem [#allocation3], 137
        %v2689 = vld [vmem:[%s2688] ss:$2 sm:$0xff]
        %s2690 = scalar_lea.vmem [#allocation3], 201
        %v2691 = vld [vmem:[%s2690] ss:$2 sm:$0xff]
        %s2692 = scalar_lea.vmem [#allocation3], 265
        %v2693 = vld [vmem:[%s2692] ss:$2 sm:$0xff]
        %s2694 = scalar_lea.vmem [#allocation3], 329
        %v2695 = vld [vmem:[%s2694] ss:$2 sm:$0xff]
        %s2696 = scalar_lea.vmem [#allocation3], 393
        %v2697 = vld [vmem:[%s2696] ss:$2 sm:$0xff]
        %s2698 = scalar_lea.vmem [#allocation3], 457
        %v2699 = vld [vmem:[%s2698] ss:$2 sm:$0xff]
        %v2700 = vmax.f32 %v2676, %v2685
        %v2701 = vmax.f32 %v2677, %v2687
        %v2702 = vmax.f32 %v2678, %v2689
        %v2703 = vmax.f32 %v2679, %v2691
        %v2704 = vmax.f32 %v2680, %v2693
        %v2705 = vmax.f32 %v2681, %v2695
        %v2706 = vmax.f32 %v2682, %v2697
        %v2707 = vmax.f32 %v2683, %v2699
        %s2708 = scalar_lea.vmem %s2611, 7 [#allocation3]
        %v2709 = vld [vmem:[%s2708] ss:$2 sm:$0xff]
        %s2710 = scalar_lea.vmem %s2611, 71 [#allocation3]
        %v2711 = vld [vmem:[%s2710] ss:$2 sm:$0xff]
        %s2712 = scalar_lea.vmem %s2611, 135 [#allocation3]
        %v2713 = vld [vmem:[%s2712] ss:$2 sm:$0xff]
        %s2714 = scalar_lea.vmem %s2611, 199 [#allocation3]
        %v2715 = vld [vmem:[%s2714] ss:$2 sm:$0xff]
        %s2716 = scalar_lea.vmem %s2611, 263 [#allocation3]
        %v2717 = vld [vmem:[%s2716] ss:$2 sm:$0xff]
        %s2718 = scalar_lea.vmem %s2611, 327 [#allocation3]
        %v2719 = vld [vmem:[%s2718] ss:$2 sm:$0xff]
        %s2720 = scalar_lea.vmem %s2611, 391 [#allocation3]
        %v2721 = vld [vmem:[%s2720] ss:$2 sm:$0xff]
        %s2722 = scalar_lea.vmem %s2611, 455 [#allocation3]
        %v2723 = vld [vmem:[%s2722] ss:$2 sm:$0xff]
        %v2724 = vmax.f32 %v2700, %v2709
        %v2725 = vmax.f32 %v2701, %v2711
        %v2726 = vmax.f32 %v2702, %v2713
        %v2727 = vmax.f32 %v2703, %v2715
        %v2728 = vmax.f32 %v2704, %v2717
        %v2729 = vmax.f32 %v2705, %v2719
        %v2730 = vmax.f32 %v2706, %v2721
        %v2731 = vmax.f32 %v2707, %v2723
        %s2732 = scalar_lea.vmem %s2611, 8 [#allocation3]
        %v2733 = vld [vmem:[%s2732] ss:$2 sm:$0xff]
        %s2734 = scalar_lea.vmem %s2611, 72 [#allocation3]
        %v2735 = vld [vmem:[%s2734] ss:$2 sm:$0xff]
        %s2736 = scalar_lea.vmem %s2611, 136 [#allocation3]
        %v2737 = vld [vmem:[%s2736] ss:$2 sm:$0xff]
        %s2738 = scalar_lea.vmem %s2611, 200 [#allocation3]
        %v2739 = vld [vmem:[%s2738] ss:$2 sm:$0xff]
        %s2740 = scalar_lea.vmem %s2611, 264 [#allocation3]
        %v2741 = vld [vmem:[%s2740] ss:$2 sm:$0xff]
        %s2742 = scalar_lea.vmem %s2611, 328 [#allocation3]
        %v2743 = vld [vmem:[%s2742] ss:$2 sm:$0xff]
        %s2744 = scalar_lea.vmem %s2611, 392 [#allocation3]
        %v2745 = vld [vmem:[%s2744] ss:$2 sm:$0xff]
        %s2746 = scalar_lea.vmem %s2611, 456 [#allocation3]
        %v2747 = vld [vmem:[%s2746] ss:$2 sm:$0xff]
        %v2748 = vmax.f32 %v2724, %v2733
        %v2749 = vmax.f32 %v2725, %v2735
        %v2750 = vmax.f32 %v2726, %v2737
        %v2751 = vmax.f32 %v2727, %v2739
        %v2752 = vmax.f32 %v2728, %v2741
        %v2753 = vmax.f32 %v2729, %v2743
        %v2754 = vmax.f32 %v2730, %v2745
        %v2755 = vmax.f32 %v2731, %v2747
        %s2756 = scalar_lea.vmem %s2611, 9 [#allocation3]
        %v2757 = vld [vmem:[%s2756] ss:$2 sm:$0xff]
        %s2758 = scalar_lea.vmem %s2611, 73 [#allocation3]
        %v2759 = vld [vmem:[%s2758] ss:$2 sm:$0xff]
        %s2760 = scalar_lea.vmem %s2611, 137 [#allocation3]
        %v2761 = vld [vmem:[%s2760] ss:$2 sm:$0xff]
        %s2762 = scalar_lea.vmem %s2611, 201 [#allocation3]
        %v2763 = vld [vmem:[%s2762] ss:$2 sm:$0xff]
        %s2764 = scalar_lea.vmem %s2611, 265 [#allocation3]
        %v2765 = vld [vmem:[%s2764] ss:$2 sm:$0xff]
        %s2766 = scalar_lea.vmem %s2611, 329 [#allocation3]
        %v2767 = vld [vmem:[%s2766] ss:$2 sm:$0xff]
        %s2768 = scalar_lea.vmem %s2611, 393 [#allocation3]
        %v2769 = vld [vmem:[%s2768] ss:$2 sm:$0xff]
        %s2770 = scalar_lea.vmem %s2611, 457 [#allocation3]
        %v2771 = vld [vmem:[%s2770] ss:$2 sm:$0xff]
        %v2772 = vmax.f32 %v2748, %v2757
        %v2773 = vmax.f32 %v2749, %v2759
        %v2774 = vmax.f32 %v2750, %v2761
        %v2775 = vmax.f32 %v2751, %v2763
        %v2776 = vmax.f32 %v2752, %v2765
        %v2777 = vmax.f32 %v2753, %v2767
        %v2778 = vmax.f32 %v2754, %v2769
        %v2779 = vmax.f32 %v2755, %v2771
        %s2780 = scalar_lea.vmem [#allocation3], 64
        %s2781 = scalar_lea.vmem %s2780, 7 [#allocation3]
        %v2782 = vld [vmem:[%s2781] ss:$2 sm:$0xff]
        %s2783 = scalar_lea.vmem %s2780, 71 [#allocation3]
        %v2784 = vld [vmem:[%s2783] ss:$2 sm:$0xff]
        %s2785 = scalar_lea.vmem %s2780, 135 [#allocation3]
        %v2786 = vld [vmem:[%s2785] ss:$2 sm:$0xff]
        %s2787 = scalar_lea.vmem %s2780, 199 [#allocation3]
        %v2788 = vld [vmem:[%s2787] ss:$2 sm:$0xff]
        %s2789 = scalar_lea.vmem %s2780, 263 [#allocation3]
        %v2790 = vld [vmem:[%s2789] ss:$2 sm:$0xff]
        %s2791 = scalar_lea.vmem %s2780, 327 [#allocation3]
        %v2792 = vld [vmem:[%s2791] ss:$2 sm:$0xff]
        %s2793 = scalar_lea.vmem %s2780, 391 [#allocation3]
        %v2794 = vld [vmem:[%s2793] ss:$2 sm:$0xff]
        %s2795 = scalar_lea.vmem %s2780, 455 [#allocation3]
        %v2796 = vld [vmem:[%s2795] ss:$2 sm:$0xff]
        %v2797 = vmax.f32 %v2772, %v2782
        %v2798 = vmax.f32 %v2773, %v2784
        %v2799 = vmax.f32 %v2774, %v2786
        %v2800 = vmax.f32 %v2775, %v2788
        %v2801 = vmax.f32 %v2776, %v2790
        %v2802 = vmax.f32 %v2777, %v2792
        %v2803 = vmax.f32 %v2778, %v2794
        %v2804 = vmax.f32 %v2779, %v2796
        %s2805 = scalar_lea.vmem %s2780, 8 [#allocation3]
        %v2806 = vld [vmem:[%s2805] ss:$2 sm:$0xff]
        %s2807 = scalar_lea.vmem %s2780, 72 [#allocation3]
        %v2808 = vld [vmem:[%s2807] ss:$2 sm:$0xff]
        %s2809 = scalar_lea.vmem %s2780, 136 [#allocation3]
        %v2810 = vld [vmem:[%s2809] ss:$2 sm:$0xff]
        %s2811 = scalar_lea.vmem %s2780, 200 [#allocation3]
        %v2812 = vld [vmem:[%s2811] ss:$2 sm:$0xff]
        %s2813 = scalar_lea.vmem %s2780, 264 [#allocation3]
        %v2814 = vld [vmem:[%s2813] ss:$2 sm:$0xff]
        %s2815 = scalar_lea.vmem %s2780, 328 [#allocation3]
        %v2816 = vld [vmem:[%s2815] ss:$2 sm:$0xff]
        %s2817 = scalar_lea.vmem %s2780, 392 [#allocation3]
        %v2818 = vld [vmem:[%s2817] ss:$2 sm:$0xff]
        %s2819 = scalar_lea.vmem %s2780, 456 [#allocation3]
        %v2820 = vld [vmem:[%s2819] ss:$2 sm:$0xff]
        %v2821 = vmax.f32 %v2797, %v2806
        %v2822 = vmax.f32 %v2798, %v2808
        %v2823 = vmax.f32 %v2799, %v2810
        %v2824 = vmax.f32 %v2800, %v2812
        %v2825 = vmax.f32 %v2801, %v2814
        %v2826 = vmax.f32 %v2802, %v2816
        %v2827 = vmax.f32 %v2803, %v2818
        %v2828 = vmax.f32 %v2804, %v2820
        %s2829 = scalar_lea.vmem %s2780, 9 [#allocation3]
        %v2830 = vld [vmem:[%s2829] ss:$2 sm:$0xff]
        %s2831 = scalar_lea.vmem %s2780, 73 [#allocation3]
        %v2832 = vld [vmem:[%s2831] ss:$2 sm:$0xff]
        %s2833 = scalar_lea.vmem %s2780, 137 [#allocation3]
        %v2834 = vld [vmem:[%s2833] ss:$2 sm:$0xff]
        %s2835 = scalar_lea.vmem %s2780, 201 [#allocation3]
        %v2836 = vld [vmem:[%s2835] ss:$2 sm:$0xff]
        %s2837 = scalar_lea.vmem %s2780, 265 [#allocation3]
        %v2838 = vld [vmem:[%s2837] ss:$2 sm:$0xff]
        %s2839 = scalar_lea.vmem %s2780, 329 [#allocation3]
        %v2840 = vld [vmem:[%s2839] ss:$2 sm:$0xff]
        %s2841 = scalar_lea.vmem %s2780, 393 [#allocation3]
        %v2842 = vld [vmem:[%s2841] ss:$2 sm:$0xff]
        %s2843 = scalar_lea.vmem %s2780, 457 [#allocation3]
        %v2844 = vld [vmem:[%s2843] ss:$2 sm:$0xff]
        %v2845 = vmax.f32 %v2821, %v2830
        %v2846 = vmax.f32 %v2822, %v2832
        %v2847 = vmax.f32 %v2823, %v2834
        %v2848 = vmax.f32 %v2824, %v2836
        %v2849 = vmax.f32 %v2825, %v2838
        %v2850 = vmax.f32 %v2826, %v2840
        %v2851 = vmax.f32 %v2827, %v2842
        %v2852 = vmax.f32 %v2828, %v2844
        %s2853 = scalar_lea.vmem [#allocation4], 24
        %2854 = vst.msk [vmem:[%s2853 + $0x8] sm:$0xff] %vm513, %v2845
        %2855 = vst.msk [vmem:[%s2853 + $0x20] sm:$0xff] %vm513, %v2846
        %2856 = vst.msk [vmem:[%s2853 + $0x38] sm:$0xff] %vm513, %v2847
        %2857 = vst.msk [vmem:[%s2853 + $0x50] sm:$0xff] %vm513, %v2848
        %2858 = vst.msk [vmem:[%s2853 + $0x68] sm:$0xff] %vm513, %v2849
        %2859 = vst.msk [vmem:[%s2853 + $0x80] sm:$0xff] %vm513, %v2850
        %2860 = vst.msk [vmem:[%s2853 + $0x98] sm:$0xff] %vm513, %v2851
        %2861 = vst.msk [vmem:[%s2853 + $0xb0] sm:$0xff] %vm513, %v2852
        %v2862 = vld [vmem:[#allocation4 + $0x7] sm:$0xff]
        %v2863 = vld [vmem:[#allocation4 + $0x1f] sm:$0xff]
        %v2864 = vld [vmem:[#allocation4 + $0x37] sm:$0xff]
        %v2865 = vld [vmem:[#allocation4 + $0x4f] sm:$0xff]
        %v2866 = vld [vmem:[#allocation4 + $0x67] sm:$0xff]
        %v2867 = vld [vmem:[#allocation4 + $0x7f] sm:$0xff]
        %v2868 = vld [vmem:[#allocation4 + $0x97] sm:$0xff]
        %v2869 = vld [vmem:[#allocation4 + $0xaf] sm:$0xff]
        %2870 = vst.msk [vmem:[#allocation10] sm:$0xff] %vm513, %v2862
        %2871 = vst.msk [vmem:[#allocation10 + $0x20] sm:$0xff] %vm513, %v2863
        %2872 = vst.msk [vmem:[#allocation10 + $0x40] sm:$0xff] %vm513, %v2864
        %2873 = vst.msk [vmem:[#allocation10 + $0x60] sm:$0xff] %vm513, %v2865
        %2874 = vst.msk [vmem:[#allocation10 + $0x80] sm:$0xff] %vm513, %v2866
        %2875 = vst.msk [vmem:[#allocation10 + $0xa0] sm:$0xff] %vm513, %v2867
        %2876 = vst.msk [vmem:[#allocation10 + $0xc0] sm:$0xff] %vm513, %v2868
        %2877 = vst.msk [vmem:[#allocation10 + $0xe0] sm:$0xff] %vm513, %v2869
        %v2878 = vld [vmem:[#allocation4 + $0x8] sm:$0xff]
        %v2879 = vld [vmem:[#allocation4 + $0x20] sm:$0xff]
        %v2880 = vld [vmem:[#allocation4 + $0x38] sm:$0xff]
        %v2881 = vld [vmem:[#allocation4 + $0x50] sm:$0xff]
        %v2882 = vld [vmem:[#allocation4 + $0x68] sm:$0xff]
        %v2883 = vld [vmem:[#allocation4 + $0x80] sm:$0xff]
        %v2884 = vld [vmem:[#allocation4 + $0x98] sm:$0xff]
        %v2885 = vld [vmem:[#allocation4 + $0xb0] sm:$0xff]
        %2894 = vrot.lane.b32.xlu0 %v2878, 8
        %v2895 = vpop.permute.xlu0 %2894
        %2896 = vrot.lane.b32.xlu0 %v2879, 8
        %v2897 = vpop.permute.xlu0 %2896
        %2898 = vrot.lane.b32.xlu0 %v2880, 8
        %v2899 = vpop.permute.xlu0 %2898
        %2900 = vrot.lane.b32.xlu0 %v2881, 8
        %v2901 = vpop.permute.xlu0 %2900
        %2902 = vrot.lane.b32.xlu0 %v2882, 8
        %v2903 = vpop.permute.xlu0 %2902
        %2904 = vrot.lane.b32.xlu0 %v2883, 8
        %v2905 = vpop.permute.xlu0 %2904
        %2906 = vrot.lane.b32.xlu0 %v2884, 8
        %v2907 = vpop.permute.xlu0 %2906
        %2908 = vrot.lane.b32.xlu0 %v2885, 8
        %v2909 = vpop.permute.xlu0 %2908
        %vm2918 = vcmask 130112
        %2919 = vst.msk [vmem:[#allocation10] sm:$0xff] %vm2918, %v2895
        %2920 = vst.msk [vmem:[#allocation10 + $0x20] sm:$0xff] %vm2918, %v2897
        %2921 = vst.msk [vmem:[#allocation10 + $0x40] sm:$0xff] %vm2918, %v2899
        %2922 = vst.msk [vmem:[#allocation10 + $0x60] sm:$0xff] %vm2918, %v2901
        %2923 = vst.msk [vmem:[#allocation10 + $0x80] sm:$0xff] %vm2918, %v2903
        %2924 = vst.msk [vmem:[#allocation10 + $0xa0] sm:$0xff] %vm2918, %v2905
        %2925 = vst.msk [vmem:[#allocation10 + $0xc0] sm:$0xff] %vm2918, %v2907
        %2926 = vst.msk [vmem:[#allocation10 + $0xe0] sm:$0xff] %vm2918, %v2909
        %v2927 = vld [vmem:[#allocation4 + $0x9] sm:$0xff]
        %v2928 = vld [vmem:[#allocation4 + $0x21] sm:$0xff]
        %v2929 = vld [vmem:[#allocation4 + $0x39] sm:$0xff]
        %v2930 = vld [vmem:[#allocation4 + $0x51] sm:$0xff]
        %v2931 = vld [vmem:[#allocation4 + $0x69] sm:$0xff]
        %v2932 = vld [vmem:[#allocation4 + $0x81] sm:$0xff]
        %v2933 = vld [vmem:[#allocation4 + $0x99] sm:$0xff]
        %v2934 = vld [vmem:[#allocation4 + $0xb1] sm:$0xff]
        %2943 = vrot.lane.b32.xlu0 %v2927, 16
        %v2944 = vpop.permute.xlu0 %2943
        %2945 = vrot.lane.b32.xlu0 %v2928, 16
        %v2946 = vpop.permute.xlu0 %2945
        %2947 = vrot.lane.b32.xlu0 %v2929, 16
        %v2948 = vpop.permute.xlu0 %2947
        %2949 = vrot.lane.b32.xlu0 %v2930, 16
        %v2950 = vpop.permute.xlu0 %2949
        %2951 = vrot.lane.b32.xlu0 %v2931, 16
        %v2952 = vpop.permute.xlu0 %2951
        %2953 = vrot.lane.b32.xlu0 %v2932, 16
        %v2954 = vpop.permute.xlu0 %2953
        %2955 = vrot.lane.b32.xlu0 %v2933, 16
        %v2956 = vpop.permute.xlu0 %2955
        %2957 = vrot.lane.b32.xlu0 %v2934, 16
        %v2958 = vpop.permute.xlu0 %2957
        %vm2967 = vcmask 195712
        %2968 = vst.msk [vmem:[#allocation10] sm:$0xff] %vm2967, %v2944
        %2969 = vst.msk [vmem:[#allocation10 + $0x20] sm:$0xff] %vm2967, %v2946
        %2970 = vst.msk [vmem:[#allocation10 + $0x40] sm:$0xff] %vm2967, %v2948
        %2971 = vst.msk [vmem:[#allocation10 + $0x60] sm:$0xff] %vm2967, %v2950
        %2972 = vst.msk [vmem:[#allocation10 + $0x80] sm:$0xff] %vm2967, %v2952
        %2973 = vst.msk [vmem:[#allocation10 + $0xa0] sm:$0xff] %vm2967, %v2954
        %2974 = vst.msk [vmem:[#allocation10 + $0xc0] sm:$0xff] %vm2967, %v2956
        %2975 = vst.msk [vmem:[#allocation10 + $0xe0] sm:$0xff] %vm2967, %v2958
        %v2976 = vld [vmem:[%s2853 + $0x7] sm:$0xff]
        %v2977 = vld [vmem:[%s2853 + $0x1f] sm:$0xff]
        %v2978 = vld [vmem:[%s2853 + $0x37] sm:$0xff]
        %v2979 = vld [vmem:[%s2853 + $0x4f] sm:$0xff]
        %v2980 = vld [vmem:[%s2853 + $0x67] sm:$0xff]
        %v2981 = vld [vmem:[%s2853 + $0x7f] sm:$0xff]
        %v2982 = vld [vmem:[%s2853 + $0x97] sm:$0xff]
        %v2983 = vld [vmem:[%s2853 + $0xaf] sm:$0xff]
        %2992 = vrot.lane.b32.xlu0 %v2976, 24
        %v2993 = vpop.permute.xlu0 %2992
        %2994 = vrot.lane.b32.xlu0 %v2977, 24
        %v2995 = vpop.permute.xlu0 %2994
        %2996 = vrot.lane.b32.xlu0 %v2978, 24
        %v2997 = vpop.permute.xlu0 %2996
        %2998 = vrot.lane.b32.xlu0 %v2979, 24
        %v2999 = vpop.permute.xlu0 %2998
        %3000 = vrot.lane.b32.xlu0 %v2980, 24
        %v3001 = vpop.permute.xlu0 %3000
        %3002 = vrot.lane.b32.xlu0 %v2981, 24
        %v3003 = vpop.permute.xlu0 %3002
        %3004 = vrot.lane.b32.xlu0 %v2982, 24
        %v3005 = vpop.permute.xlu0 %3004
        %3006 = vrot.lane.b32.xlu0 %v2983, 24
        %v3007 = vpop.permute.xlu0 %3006
        %vm3016 = vcmask 261312
        %3017 = vst.msk [vmem:[#allocation10] sm:$0xff] %vm3016, %v2993
        %3018 = vst.msk [vmem:[#allocation10 + $0x20] sm:$0xff] %vm3016, %v2995
        %3019 = vst.msk [vmem:[#allocation10 + $0x40] sm:$0xff] %vm3016, %v2997
        %3020 = vst.msk [vmem:[#allocation10 + $0x60] sm:$0xff] %vm3016, %v2999
        %3021 = vst.msk [vmem:[#allocation10 + $0x80] sm:$0xff] %vm3016, %v3001
        %3022 = vst.msk [vmem:[#allocation10 + $0xa0] sm:$0xff] %vm3016, %v3003
        %3023 = vst.msk [vmem:[#allocation10 + $0xc0] sm:$0xff] %vm3016, %v3005
        %3024 = vst.msk [vmem:[#allocation10 + $0xe0] sm:$0xff] %vm3016, %v3007
        %v3025 = vld [vmem:[%s2853 + $0x8] sm:$0xff]
        %v3026 = vld [vmem:[%s2853 + $0x20] sm:$0xff]
        %v3027 = vld [vmem:[%s2853 + $0x38] sm:$0xff]
        %v3028 = vld [vmem:[%s2853 + $0x50] sm:$0xff]
        %v3029 = vld [vmem:[%s2853 + $0x68] sm:$0xff]
        %v3030 = vld [vmem:[%s2853 + $0x80] sm:$0xff]
        %v3031 = vld [vmem:[%s2853 + $0x98] sm:$0xff]
        %v3032 = vld [vmem:[%s2853 + $0xb0] sm:$0xff]
        %3041 = vrot.lane.b32.xlu0 %v3025, 32
        %v3042 = vpop.permute.xlu0 %3041
        %3043 = vrot.lane.b32.xlu0 %v3026, 32
        %v3044 = vpop.permute.xlu0 %3043
        %3045 = vrot.lane.b32.xlu0 %v3027, 32
        %v3046 = vpop.permute.xlu0 %3045
        %3047 = vrot.lane.b32.xlu0 %v3028, 32
        %v3048 = vpop.permute.xlu0 %3047
        %3049 = vrot.lane.b32.xlu0 %v3029, 32
        %v3050 = vpop.permute.xlu0 %3049
        %3051 = vrot.lane.b32.xlu0 %v3030, 32
        %v3052 = vpop.permute.xlu0 %3051
        %3053 = vrot.lane.b32.xlu0 %v3031, 32
        %v3054 = vpop.permute.xlu0 %3053
        %3055 = vrot.lane.b32.xlu0 %v3032, 32
        %v3056 = vpop.permute.xlu0 %3055
        %vm3065 = vcmask 326912
        %3066 = vst.msk [vmem:[#allocation10] sm:$0xff] %vm3065, %v3042
        %3067 = vst.msk [vmem:[#allocation10 + $0x20] sm:$0xff] %vm3065, %v3044
        %3068 = vst.msk [vmem:[#allocation10 + $0x40] sm:$0xff] %vm3065, %v3046
        %3069 = vst.msk [vmem:[#allocation10 + $0x60] sm:$0xff] %vm3065, %v3048
        %3070 = vst.msk [vmem:[#allocation10 + $0x80] sm:$0xff] %vm3065, %v3050
        %3071 = vst.msk [vmem:[#allocation10 + $0xa0] sm:$0xff] %vm3065, %v3052
        %3072 = vst.msk [vmem:[#allocation10 + $0xc0] sm:$0xff] %vm3065, %v3054
        %3073 = vst.msk [vmem:[#allocation10 + $0xe0] sm:$0xff] %vm3065, %v3056
        %v3074 = vld [vmem:[%s2853 + $0x9] sm:$0xff]
        %v3075 = vld [vmem:[%s2853 + $0x21] sm:$0xff]
        %v3076 = vld [vmem:[%s2853 + $0x39] sm:$0xff]
        %v3077 = vld [vmem:[%s2853 + $0x51] sm:$0xff]
        %v3078 = vld [vmem:[%s2853 + $0x69] sm:$0xff]
        %v3079 = vld [vmem:[%s2853 + $0x81] sm:$0xff]
        %v3080 = vld [vmem:[%s2853 + $0x99] sm:$0xff]
        %v3081 = vld [vmem:[%s2853 + $0xb1] sm:$0xff]
        %3090 = vrot.lane.b32.xlu0 %v3074, 40
        %v3091 = vpop.permute.xlu0 %3090
        %3092 = vrot.lane.b32.xlu0 %v3075, 40
        %v3093 = vpop.permute.xlu0 %3092
        %3094 = vrot.lane.b32.xlu0 %v3076, 40
        %v3095 = vpop.permute.xlu0 %3094
        %3096 = vrot.lane.b32.xlu0 %v3077, 40
        %v3097 = vpop.permute.xlu0 %3096
        %3098 = vrot.lane.b32.xlu0 %v3078, 40
        %v3099 = vpop.permute.xlu0 %3098
        %3100 = vrot.lane.b32.xlu0 %v3079, 40
        %v3101 = vpop.permute.xlu0 %3100
        %3102 = vrot.lane.b32.xlu0 %v3080, 40
        %v3103 = vpop.permute.xlu0 %3102
        %3104 = vrot.lane.b32.xlu0 %v3081, 40
        %v3105 = vpop.permute.xlu0 %3104
        %vm3114 = vcmask 392512
        %3115 = vst.msk [vmem:[#allocation10] sm:$0xff] %vm3114, %v3091
        %3116 = vst.msk [vmem:[#allocation10 + $0x20] sm:$0xff] %vm3114, %v3093
        %3117 = vst.msk [vmem:[#allocation10 + $0x40] sm:$0xff] %vm3114, %v3095
        %3118 = vst.msk [vmem:[#allocation10 + $0x60] sm:$0xff] %vm3114, %v3097
        %3119 = vst.msk [vmem:[#allocation10 + $0x80] sm:$0xff] %vm3114, %v3099
        %3120 = vst.msk [vmem:[#allocation10 + $0xa0] sm:$0xff] %vm3114, %v3101
        %3121 = vst.msk [vmem:[#allocation10 + $0xc0] sm:$0xff] %vm3114, %v3103
        %3122 = vst.msk [vmem:[#allocation10 + $0xe0] sm:$0xff] %vm3114, %v3105
        %s3123 = scalar_lea.vmem [#allocation4], 48
        %v3124 = vld [vmem:[%s3123 + $0x7] sm:$0xff]
        %v3125 = vld [vmem:[%s3123 + $0x1f] sm:$0xff]
        %v3126 = vld [vmem:[%s3123 + $0x37] sm:$0xff]
        %v3127 = vld [vmem:[%s3123 + $0x4f] sm:$0xff]
        %v3128 = vld [vmem:[%s3123 + $0x67] sm:$0xff]
        %v3129 = vld [vmem:[%s3123 + $0x7f] sm:$0xff]
        %v3130 = vld [vmem:[%s3123 + $0x97] sm:$0xff]
        %v3131 = vld [vmem:[%s3123 + $0xaf] sm:$0xff]
        %3140 = vrot.lane.b32.xlu0 %v3124, 48
        %v3141 = vpop.permute.xlu0 %3140
        %3142 = vrot.lane.b32.xlu0 %v3125, 48
        %v3143 = vpop.permute.xlu0 %3142
        %3144 = vrot.lane.b32.xlu0 %v3126, 48
        %v3145 = vpop.permute.xlu0 %3144
        %3146 = vrot.lane.b32.xlu0 %v3127, 48
        %v3147 = vpop.permute.xlu0 %3146
        %3148 = vrot.lane.b32.xlu0 %v3128, 48
        %v3149 = vpop.permute.xlu0 %3148
        %3150 = vrot.lane.b32.xlu0 %v3129, 48
        %v3151 = vpop.permute.xlu0 %3150
        %3152 = vrot.lane.b32.xlu0 %v3130, 48
        %v3153 = vpop.permute.xlu0 %3152
        %3154 = vrot.lane.b32.xlu0 %v3131, 48
        %v3155 = vpop.permute.xlu0 %3154
        %vm3164 = vcmask 458112
        %3165 = vst.msk [vmem:[#allocation10] sm:$0xff] %vm3164, %v3141
        %3166 = vst.msk [vmem:[#allocation10 + $0x20] sm:$0xff] %vm3164, %v3143
        %3167 = vst.msk [vmem:[#allocation10 + $0x40] sm:$0xff] %vm3164, %v3145
        %3168 = vst.msk [vmem:[#allocation10 + $0x60] sm:$0xff] %vm3164, %v3147
        %3169 = vst.msk [vmem:[#allocation10 + $0x80] sm:$0xff] %vm3164, %v3149
        %3170 = vst.msk [vmem:[#allocation10 + $0xa0] sm:$0xff] %vm3164, %v3151
        %3171 = vst.msk [vmem:[#allocation10 + $0xc0] sm:$0xff] %vm3164, %v3153
        %3172 = vst.msk [vmem:[#allocation10 + $0xe0] sm:$0xff] %vm3164, %v3155
        %v3173 = vld [vmem:[%s3123 + $0x8] sm:$0xff]
        %v3174 = vld [vmem:[%s3123 + $0x20] sm:$0xff]
        %v3175 = vld [vmem:[%s3123 + $0x38] sm:$0xff]
        %v3176 = vld [vmem:[%s3123 + $0x50] sm:$0xff]
        %v3177 = vld [vmem:[%s3123 + $0x68] sm:$0xff]
        %v3178 = vld [vmem:[%s3123 + $0x80] sm:$0xff]
        %v3179 = vld [vmem:[%s3123 + $0x98] sm:$0xff]
        %v3180 = vld [vmem:[%s3123 + $0xb0] sm:$0xff]
        %3189 = vrot.lane.b32.xlu0 %v3173, 56
        %v3190 = vpop.permute.xlu0 %3189
        %3191 = vrot.lane.b32.xlu0 %v3174, 56
        %v3192 = vpop.permute.xlu0 %3191
        %3193 = vrot.lane.b32.xlu0 %v3175, 56
        %v3194 = vpop.permute.xlu0 %3193
        %3195 = vrot.lane.b32.xlu0 %v3176, 56
        %v3196 = vpop.permute.xlu0 %3195
        %3197 = vrot.lane.b32.xlu0 %v3177, 56
        %v3198 = vpop.permute.xlu0 %3197
        %3199 = vrot.lane.b32.xlu0 %v3178, 56
        %v3200 = vpop.permute.xlu0 %3199
        %3201 = vrot.lane.b32.xlu0 %v3179, 56
        %v3202 = vpop.permute.xlu0 %3201
        %3203 = vrot.lane.b32.xlu0 %v3180, 56
        %v3204 = vpop.permute.xlu0 %3203
        %vm3213 = vcmask 523712
        %3214 = vst.msk [vmem:[#allocation10] sm:$0xff] %vm3213, %v3190
        %3215 = vst.msk [vmem:[#allocation10 + $0x20] sm:$0xff] %vm3213, %v3192
        %3216 = vst.msk [vmem:[#allocation10 + $0x40] sm:$0xff] %vm3213, %v3194
        %3217 = vst.msk [vmem:[#allocation10 + $0x60] sm:$0xff] %vm3213, %v3196
        %3218 = vst.msk [vmem:[#allocation10 + $0x80] sm:$0xff] %vm3213, %v3198
        %3219 = vst.msk [vmem:[#allocation10 + $0xa0] sm:$0xff] %vm3213, %v3200
        %3220 = vst.msk [vmem:[#allocation10 + $0xc0] sm:$0xff] %vm3213, %v3202
        %3221 = vst.msk [vmem:[#allocation10 + $0xe0] sm:$0xff] %vm3213, %v3204
        %v3222 = vld [vmem:[%s3123 + $0x9] sm:$0xff]
        %v3223 = vld [vmem:[%s3123 + $0x21] sm:$0xff]
        %v3224 = vld [vmem:[%s3123 + $0x39] sm:$0xff]
        %v3225 = vld [vmem:[%s3123 + $0x51] sm:$0xff]
        %v3226 = vld [vmem:[%s3123 + $0x69] sm:$0xff]
        %v3227 = vld [vmem:[%s3123 + $0x81] sm:$0xff]
        %v3228 = vld [vmem:[%s3123 + $0x99] sm:$0xff]
        %v3229 = vld [vmem:[%s3123 + $0xb1] sm:$0xff]
        %3238 = vrot.lane.b32.xlu0 %v3222, 64
        %v3239 = vpop.permute.xlu0 %3238
        %3240 = vrot.lane.b32.xlu0 %v3223, 64
        %v3241 = vpop.permute.xlu0 %3240
        %3242 = vrot.lane.b32.xlu0 %v3224, 64
        %v3243 = vpop.permute.xlu0 %3242
        %3244 = vrot.lane.b32.xlu0 %v3225, 64
        %v3245 = vpop.permute.xlu0 %3244
        %3246 = vrot.lane.b32.xlu0 %v3226, 64
        %v3247 = vpop.permute.xlu0 %3246
        %3248 = vrot.lane.b32.xlu0 %v3227, 64
        %v3249 = vpop.permute.xlu0 %3248
        %3250 = vrot.lane.b32.xlu0 %v3228, 64
        %v3251 = vpop.permute.xlu0 %3250
        %3252 = vrot.lane.b32.xlu0 %v3229, 64
        %v3253 = vpop.permute.xlu0 %3252
        %vm3262 = vcmask 589312
        %3263 = vst.msk [vmem:[#allocation10] sm:$0xff] %vm3262, %v3239
        %3264 = vst.msk [vmem:[#allocation10 + $0x20] sm:$0xff] %vm3262, %v3241
        %3265 = vst.msk [vmem:[#allocation10 + $0x40] sm:$0xff] %vm3262, %v3243
        %3266 = vst.msk [vmem:[#allocation10 + $0x60] sm:$0xff] %vm3262, %v3245
        %3267 = vst.msk [vmem:[#allocation10 + $0x80] sm:$0xff] %vm3262, %v3247
        %3268 = vst.msk [vmem:[#allocation10 + $0xa0] sm:$0xff] %vm3262, %v3249
        %3269 = vst.msk [vmem:[#allocation10 + $0xc0] sm:$0xff] %vm3262, %v3251
        %3270 = vst.msk [vmem:[#allocation10 + $0xe0] sm:$0xff] %vm3262, %v3253
        %v3271 = vld [vmem:[#allocation10] sm:$0xff]
        %v3272 = vld [vmem:[#allocation10 + $0x20] sm:$0xff]
        %v3273 = vld [vmem:[#allocation10 + $0x40] sm:$0xff]
        %v3274 = vld [vmem:[#allocation10 + $0x60] sm:$0xff]
        %v3275 = vld [vmem:[#allocation10 + $0x80] sm:$0xff]
        %v3276 = vld [vmem:[#allocation10 + $0xa0] sm:$0xff]
        %v3277 = vld [vmem:[#allocation10 + $0xc0] sm:$0xff]
        %v3278 = vld [vmem:[#allocation10 + $0xe0] sm:$0xff]
        %v3279 = vpack.c.bf16 %v3272, %v3271
        %v3280 = vpack.c.bf16 %v3274, %v3273
        %v3281 = vpack.c.bf16 %v3276, %v3275
        %v3282 = vpack.c.bf16 %v3278, %v3277
        %v3283 = vld [vmem:[%s3] sm:$0xf]
        %v3284 = vld [vmem:[%s3 + $0x4] sm:$0xf]
        %v3285 = vld [vmem:[%s3 + $0x8] sm:$0xf]
        %v3286 = vld [vmem:[%s3 + $0xc] sm:$0xf]
        %v3287 = vld [vmem:[%s3 + $0x10] sm:$0xf]
        %v3288 = vld [vmem:[%s3 + $0x14] sm:$0xf]
        %v3289 = vld [vmem:[%s3 + $0x18] sm:$0xf]
        %v3290 = vld [vmem:[%s3 + $0x1c] sm:$0xf]
        %v3291 = vld [vmem:[%s3 + $0x20] sm:$0xf]
        %v3292 = vld [vmem:[%s4] sm:$0x1]
        %v3294 = vperm.slane %v3292, 0
        %v3305 = vunpack.c.l.b16 %v3283
        %v3306 = vunpack.c.l.b16 %v3284
        %v3307 = vunpack.c.l.b16 %v3285
        %v3308 = vunpack.c.l.b16 %v3286
        %v3309 = vunpack.c.l.b16 %v3287
        %v3310 = vunpack.c.l.b16 %v3288
        %v3311 = vunpack.c.l.b16 %v3289
        %v3312 = vunpack.c.l.b16 %v3290
        %v3313 = vunpack.c.l.b16 %v3291
        %v3314 = vpack.c.b16 %v3306, %v3305
        %v3315 = vpack.c.b16 %v3308, %v3307
        %v3316 = vpack.c.b16 %v3310, %v3309
        %v3317 = vpack.c.b16 %v3312, %v3311
        %v3318 = vpack.c.b16 %v3313, %v3313
        %vm3323 = vcmask 588800
        %v3325 = vsel %vm3323, %v3279, 0
        %v3328 = vsel %vm3323, %v3280, 0
        %v3331 = vsel %vm3323, %v3281, 0
        %v3334 = vsel %vm3323, %v3282, 0
        %vm3336 = vcmask 1043456
        %v3338 = vsel %vm3336, %v3318, 0
        %3340 = vmatpush.bf16.msra.mxu0 0
        %3341 = vmatpush.bf16.msra.mxu0 0
        %3342 = vmatpush.bf16.msra.mxu0 0
        %3343 = vmatpush.bf16.msra.mxu0 %v3338
        %3344 = vmatpush.bf16.msra.mxu0 %v3317
        %3345 = vmatpush.bf16.msra.mxu0 %v3316
        %3346 = vmatpush.bf16.msra.mxu0 %v3315
        %3347 = vmatpush.bf16.msra.mxu0 %v3314
        %3348 = vmatmul.bf16.gmra.mxu0 %v3325
        %v3349 = vpop.f32.mrf.mxu0
        %v3350 = vadd.f32 %v3294, %v3349
        %v3351 = vpop.f32.mrf.mxu0
        %v3352 = vadd.f32 %v3294, %v3351
        %3353 = vmatmul.bf16.gmra.mxu0 %v3328
        %v3354 = vpop.f32.mrf.mxu0
        %v3355 = vadd.f32 %v3294, %v3354
        %v3356 = vpop.f32.mrf.mxu0
        %v3357 = vadd.f32 %v3294, %v3356
        %3358 = vmatmul.bf16.gmra.mxu0 %v3331
        %v3359 = vpop.f32.mrf.mxu0
        %v3360 = vadd.f32 %v3294, %v3359
        %v3361 = vpop.f32.mrf.mxu0
        %v3362 = vadd.f32 %v3294, %v3361
        %3363 = vmatmul.bf16.gmra.mxu0 %v3334
        %v3364 = vpop.f32.mrf.mxu0
        %v3365 = vadd.f32 %v3294, %v3364
        %v3366 = vpop.f32.mrf.mxu0
        %v3367 = vadd.f32 %v3294, %v3366
        %3368 = vdwg.mxu0
        %v3369 = vmax.f32 %v3350, 0.0
        %v3370 = vmax.f32 %v3352, 0.0
        %v3371 = vmax.f32 %v3355, 0.0
        %v3372 = vmax.f32 %v3357, 0.0
        %v3373 = vmax.f32 %v3360, 0.0
        %v3374 = vmax.f32 %v3362, 0.0
        %v3375 = vmax.f32 %v3365, 0.0
        %v3376 = vmax.f32 %v3367, 0.0
        %s3377 = scalar_lea.vmem [#allocation5], 24
        %3378 = vst.msk [vmem:[%s3377 + $0x8] sm:$0xff] %vm513, %v3369
        %3379 = vst.msk [vmem:[%s3377 + $0x20] sm:$0xff] %vm513, %v3370
        %3380 = vst.msk [vmem:[%s3377 + $0x38] sm:$0xff] %vm513, %v3371
        %3381 = vst.msk [vmem:[%s3377 + $0x50] sm:$0xff] %vm513, %v3372
        %3382 = vst.msk [vmem:[%s3377 + $0x68] sm:$0xff] %vm513, %v3373
        %3383 = vst.msk [vmem:[%s3377 + $0x80] sm:$0xff] %vm513, %v3374
        %3384 = vst.msk [vmem:[%s3377 + $0x98] sm:$0xff] %vm513, %v3375
        %3385 = vst.msk [vmem:[%s3377 + $0xb0] sm:$0xff] %vm513, %v3376
        %s3386 = scalar_lea.vmem [#allocation5], 7
        %v3387 = vld [vmem:[%s3386] ss:$2 sm:$0xf]
        %s3388 = scalar_lea.vmem [#allocation5], 55
        %v3389 = vld [vmem:[%s3388] ss:$2 sm:$0xf]
        %s3390 = scalar_lea.vmem [#allocation5], 103
        %v3391 = vld [vmem:[%s3390] ss:$2 sm:$0xf]
        %s3392 = scalar_lea.vmem [#allocation5], 151
        %v3393 = vld [vmem:[%s3392] ss:$2 sm:$0xf]
        %s3394 = scalar_lea.vmem [#allocation5], 8
        %v3395 = vld [vmem:[%s3394] ss:$2 sm:$0xf]
        %s3396 = scalar_lea.vmem [#allocation5], 56
        %v3397 = vld [vmem:[%s3396] ss:$2 sm:$0xf]
        %s3398 = scalar_lea.vmem [#allocation5], 104
        %v3399 = vld [vmem:[%s3398] ss:$2 sm:$0xf]
        %s3400 = scalar_lea.vmem [#allocation5], 152
        %v3401 = vld [vmem:[%s3400] ss:$2 sm:$0xf]
        %v3402 = vmax.f32 %v3387, %v3395
        %v3403 = vmax.f32 %v3389, %v3397
        %v3404 = vmax.f32 %v3391, %v3399
        %v3405 = vmax.f32 %v3393, %v3401
        %s3406 = scalar_lea.vmem [#allocation5], 9
        %v3407 = vld [vmem:[%s3406] ss:$2 sm:$0xf]
        %s3408 = scalar_lea.vmem [#allocation5], 57
        %v3409 = vld [vmem:[%s3408] ss:$2 sm:$0xf]
        %s3410 = scalar_lea.vmem [#allocation5], 105
        %v3411 = vld [vmem:[%s3410] ss:$2 sm:$0xf]
        %s3412 = scalar_lea.vmem [#allocation5], 153
        %v3413 = vld [vmem:[%s3412] ss:$2 sm:$0xf]
        %v3414 = vmax.f32 %v3402, %v3407
        %v3415 = vmax.f32 %v3403, %v3409
        %v3416 = vmax.f32 %v3404, %v3411
        %v3417 = vmax.f32 %v3405, %v3413
        %s3418 = scalar_lea.vmem %s3377, 7 [#allocation5]
        %v3419 = vld [vmem:[%s3418] ss:$2 sm:$0xf]
        %s3420 = scalar_lea.vmem %s3377, 55 [#allocation5]
        %v3421 = vld [vmem:[%s3420] ss:$2 sm:$0xf]
        %s3422 = scalar_lea.vmem %s3377, 103 [#allocation5]
        %v3423 = vld [vmem:[%s3422] ss:$2 sm:$0xf]
        %s3424 = scalar_lea.vmem %s3377, 151 [#allocation5]
        %v3425 = vld [vmem:[%s3424] ss:$2 sm:$0xf]
        %v3426 = vmax.f32 %v3414, %v3419
        %v3427 = vmax.f32 %v3415, %v3421
        %v3428 = vmax.f32 %v3416, %v3423
        %v3429 = vmax.f32 %v3417, %v3425
        %s3430 = scalar_lea.vmem %s3377, 8 [#allocation5]
        %v3431 = vld [vmem:[%s3430] ss:$2 sm:$0xf]
        %s3432 = scalar_lea.vmem %s3377, 56 [#allocation5]
        %v3433 = vld [vmem:[%s3432] ss:$2 sm:$0xf]
        %s3434 = scalar_lea.vmem %s3377, 104 [#allocation5]
        %v3435 = vld [vmem:[%s3434] ss:$2 sm:$0xf]
        %s3436 = scalar_lea.vmem %s3377, 152 [#allocation5]
        %v3437 = vld [vmem:[%s3436] ss:$2 sm:$0xf]
        %v3438 = vmax.f32 %v3426, %v3431
        %v3439 = vmax.f32 %v3427, %v3433
        %v3440 = vmax.f32 %v3428, %v3435
        %v3441 = vmax.f32 %v3429, %v3437
        %s3442 = scalar_lea.vmem %s3377, 9 [#allocation5]
        %v3443 = vld [vmem:[%s3442] ss:$2 sm:$0xf]
        %s3444 = scalar_lea.vmem %s3377, 57 [#allocation5]
        %v3445 = vld [vmem:[%s3444] ss:$2 sm:$0xf]
        %s3446 = scalar_lea.vmem %s3377, 105 [#allocation5]
        %v3447 = vld [vmem:[%s3446] ss:$2 sm:$0xf]
        %s3448 = scalar_lea.vmem %s3377, 153 [#allocation5]
        %v3449 = vld [vmem:[%s3448] ss:$2 sm:$0xf]
        %v3450 = vmax.f32 %v3438, %v3443
        %v3451 = vmax.f32 %v3439, %v3445
        %v3452 = vmax.f32 %v3440, %v3447
        %v3453 = vmax.f32 %v3441, %v3449
        %s3454 = scalar_lea.vmem [#allocation5], 48
        %s3455 = scalar_lea.vmem %s3454, 7 [#allocation5]
        %v3456 = vld [vmem:[%s3455] ss:$2 sm:$0xf]
        %s3457 = scalar_lea.vmem %s3454, 55 [#allocation5]
        %v3458 = vld [vmem:[%s3457] ss:$2 sm:$0xf]
        %s3459 = scalar_lea.vmem %s3454, 103 [#allocation5]
        %v3460 = vld [vmem:[%s3459] ss:$2 sm:$0xf]
        %s3461 = scalar_lea.vmem %s3454, 151 [#allocation5]
        %v3462 = vld [vmem:[%s3461] ss:$2 sm:$0xf]
        %v3463 = vmax.f32 %v3450, %v3456
        %v3464 = vmax.f32 %v3451, %v3458
        %v3465 = vmax.f32 %v3452, %v3460
        %v3466 = vmax.f32 %v3453, %v3462
        %s3467 = scalar_lea.vmem %s3454, 8 [#allocation5]
        %v3468 = vld [vmem:[%s3467] ss:$2 sm:$0xf]
        %s3469 = scalar_lea.vmem %s3454, 56 [#allocation5]
        %v3470 = vld [vmem:[%s3469] ss:$2 sm:$0xf]
        %s3471 = scalar_lea.vmem %s3454, 104 [#allocation5]
        %v3472 = vld [vmem:[%s3471] ss:$2 sm:$0xf]
        %s3473 = scalar_lea.vmem %s3454, 152 [#allocation5]
        %v3474 = vld [vmem:[%s3473] ss:$2 sm:$0xf]
        %v3475 = vmax.f32 %v3463, %v3468
        %v3476 = vmax.f32 %v3464, %v3470
        %v3477 = vmax.f32 %v3465, %v3472
        %v3478 = vmax.f32 %v3466, %v3474
        %s3479 = scalar_lea.vmem %s3454, 9 [#allocation5]
        %v3480 = vld [vmem:[%s3479] ss:$2 sm:$0xf]
        %s3481 = scalar_lea.vmem %s3454, 57 [#allocation5]
        %v3482 = vld [vmem:[%s3481] ss:$2 sm:$0xf]
        %s3483 = scalar_lea.vmem %s3454, 105 [#allocation5]
        %v3484 = vld [vmem:[%s3483] ss:$2 sm:$0xf]
        %s3485 = scalar_lea.vmem %s3454, 153 [#allocation5]
        %v3486 = vld [vmem:[%s3485] ss:$2 sm:$0xf]
        %v3487 = vmax.f32 %v3475, %v3480
        %v3488 = vmax.f32 %v3476, %v3482
        %v3489 = vmax.f32 %v3477, %v3484
        %v3490 = vmax.f32 %v3478, %v3486
        %s3491 = scalar_lea.vmem [#allocation6], 16
        %vm3492 = vcmask 60416
        %3493 = vst.msk [vmem:[%s3491 + $0x8] sm:$0xf] %vm3492, %v3487
        %3494 = vst.msk [vmem:[%s3491 + $0x18] sm:$0xf] %vm3492, %v3488
        %3495 = vst.msk [vmem:[%s3491 + $0x28] sm:$0xf] %vm3492, %v3489
        %3496 = vst.msk [vmem:[%s3491 + $0x38] sm:$0xf] %vm3492, %v3490
        %v3497 = vld [vmem:[#allocation6 + $0x7] sm:$0xf]
        %v3498 = vld [vmem:[#allocation6 + $0x17] sm:$0xf]
        %v3499 = vld [vmem:[#allocation6 + $0x27] sm:$0xf]
        %v3500 = vld [vmem:[#allocation6 + $0x37] sm:$0xf]
        %3501 = vst.msk [vmem:[#allocation10] sm:$0xf] %vm3492, %v3497
        %3502 = vst.msk [vmem:[#allocation10 + $0x20] sm:$0xf] %vm3492, %v3498
        %3503 = vst.msk [vmem:[#allocation10 + $0x40] sm:$0xf] %vm3492, %v3499
        %3504 = vst.msk [vmem:[#allocation10 + $0x60] sm:$0xf] %vm3492, %v3500
        %v3505 = vld [vmem:[#allocation6 + $0x8] sm:$0xf]
        %v3506 = vld [vmem:[#allocation6 + $0x18] sm:$0xf]
        %v3507 = vld [vmem:[#allocation6 + $0x28] sm:$0xf]
        %v3508 = vld [vmem:[#allocation6 + $0x38] sm:$0xf]
        %3513 = vrot.lane.b32.xlu0 %v3505, 8
        %v3514 = vpop.permute.xlu0 %3513
        %3515 = vrot.lane.b32.xlu0 %v3506, 8
        %v3516 = vpop.permute.xlu0 %3515
        %3517 = vrot.lane.b32.xlu0 %v3507, 8
        %v3518 = vpop.permute.xlu0 %3517
        %3519 = vrot.lane.b32.xlu0 %v3508, 8
        %v3520 = vpop.permute.xlu0 %3519
        %vm3525 = vcmask 126016
        %3526 = vst.msk [vmem:[#allocation10] sm:$0xf] %vm3525, %v3514
        %3527 = vst.msk [vmem:[#allocation10 + $0x20] sm:$0xf] %vm3525, %v3516
        %3528 = vst.msk [vmem:[#allocation10 + $0x40] sm:$0xf] %vm3525, %v3518
        %3529 = vst.msk [vmem:[#allocation10 + $0x60] sm:$0xf] %vm3525, %v3520
        %v3530 = vld [vmem:[#allocation6 + $0x9] sm:$0xf]
        %v3531 = vld [vmem:[#allocation6 + $0x19] sm:$0xf]
        %v3532 = vld [vmem:[#allocation6 + $0x29] sm:$0xf]
        %v3533 = vld [vmem:[#allocation6 + $0x39] sm:$0xf]
        %3538 = vrot.lane.b32.xlu0 %v3530, 16
        %v3539 = vpop.permute.xlu0 %3538
        %3540 = vrot.lane.b32.xlu0 %v3531, 16
        %v3541 = vpop.permute.xlu0 %3540
        %3542 = vrot.lane.b32.xlu0 %v3532, 16
        %v3543 = vpop.permute.xlu0 %3542
        %3544 = vrot.lane.b32.xlu0 %v3533, 16
        %v3545 = vpop.permute.xlu0 %3544
        %vm3550 = vcmask 191616
        %3551 = vst.msk [vmem:[#allocation10] sm:$0xf] %vm3550, %v3539
        %3552 = vst.msk [vmem:[#allocation10 + $0x20] sm:$0xf] %vm3550, %v3541
        %3553 = vst.msk [vmem:[#allocation10 + $0x40] sm:$0xf] %vm3550, %v3543
        %3554 = vst.msk [vmem:[#allocation10 + $0x60] sm:$0xf] %vm3550, %v3545
        %v3555 = vld [vmem:[%s3491 + $0x7] sm:$0xf]
        %v3556 = vld [vmem:[%s3491 + $0x17] sm:$0xf]
        %v3557 = vld [vmem:[%s3491 + $0x27] sm:$0xf]
        %v3558 = vld [vmem:[%s3491 + $0x37] sm:$0xf]
        %3563 = vrot.lane.b32.xlu0 %v3555, 24
        %v3564 = vpop.permute.xlu0 %3563
        %3565 = vrot.lane.b32.xlu0 %v3556, 24
        %v3566 = vpop.permute.xlu0 %3565
        %3567 = vrot.lane.b32.xlu0 %v3557, 24
        %v3568 = vpop.permute.xlu0 %3567
        %3569 = vrot.lane.b32.xlu0 %v3558, 24
        %v3570 = vpop.permute.xlu0 %3569
        %vm3575 = vcmask 257216
        %3576 = vst.msk [vmem:[#allocation10] sm:$0xf] %vm3575, %v3564
        %3577 = vst.msk [vmem:[#allocation10 + $0x20] sm:$0xf] %vm3575, %v3566
        %3578 = vst.msk [vmem:[#allocation10 + $0x40] sm:$0xf] %vm3575, %v3568
        %3579 = vst.msk [vmem:[#allocation10 + $0x60] sm:$0xf] %vm3575, %v3570
        %v3580 = vld [vmem:[%s3491 + $0x8] sm:$0xf]
        %v3581 = vld [vmem:[%s3491 + $0x18] sm:$0xf]
        %v3582 = vld [vmem:[%s3491 + $0x28] sm:$0xf]
        %v3583 = vld [vmem:[%s3491 + $0x38] sm:$0xf]
        %3588 = vrot.lane.b32.xlu0 %v3580, 32
        %v3589 = vpop.permute.xlu0 %3588
        %3590 = vrot.lane.b32.xlu0 %v3581, 32
        %v3591 = vpop.permute.xlu0 %3590
        %3592 = vrot.lane.b32.xlu0 %v3582, 32
        %v3593 = vpop.permute.xlu0 %3592
        %3594 = vrot.lane.b32.xlu0 %v3583, 32
        %v3595 = vpop.permute.xlu0 %3594
        %vm3600 = vcmask 322816
        %3601 = vst.msk [vmem:[#allocation10] sm:$0xf] %vm3600, %v3589
        %3602 = vst.msk [vmem:[#allocation10 + $0x20] sm:$0xf] %vm3600, %v3591
        %3603 = vst.msk [vmem:[#allocation10 + $0x40] sm:$0xf] %vm3600, %v3593
        %3604 = vst.msk [vmem:[#allocation10 + $0x60] sm:$0xf] %vm3600, %v3595
        %v3605 = vld [vmem:[%s3491 + $0x9] sm:$0xf]
        %v3606 = vld [vmem:[%s3491 + $0x19] sm:$0xf]
        %v3607 = vld [vmem:[%s3491 + $0x29] sm:$0xf]
        %v3608 = vld [vmem:[%s3491 + $0x39] sm:$0xf]
        %3613 = vrot.lane.b32.xlu0 %v3605, 40
        %v3614 = vpop.permute.xlu0 %3613
        %3615 = vrot.lane.b32.xlu0 %v3606, 40
        %v3616 = vpop.permute.xlu0 %3615
        %3617 = vrot.lane.b32.xlu0 %v3607, 40
        %v3618 = vpop.permute.xlu0 %3617
        %3619 = vrot.lane.b32.xlu0 %v3608, 40
        %v3620 = vpop.permute.xlu0 %3619
        %vm3625 = vcmask 388416
        %3626 = vst.msk [vmem:[#allocation10] sm:$0xf] %vm3625, %v3614
        %3627 = vst.msk [vmem:[#allocation10 + $0x20] sm:$0xf] %vm3625, %v3616
        %3628 = vst.msk [vmem:[#allocation10 + $0x40] sm:$0xf] %vm3625, %v3618
        %3629 = vst.msk [vmem:[#allocation10 + $0x60] sm:$0xf] %vm3625, %v3620
        %s3630 = scalar_lea.vmem [#allocation6], 32
        %v3631 = vld [vmem:[%s3630 + $0x7] sm:$0xf]
        %v3632 = vld [vmem:[%s3630 + $0x17] sm:$0xf]
        %v3633 = vld [vmem:[%s3630 + $0x27] sm:$0xf]
        %v3634 = vld [vmem:[%s3630 + $0x37] sm:$0xf]
        %3639 = vrot.lane.b32.xlu0 %v3631, 48
        %v3640 = vpop.permute.xlu0 %3639
        %3641 = vrot.lane.b32.xlu0 %v3632, 48
        %v3642 = vpop.permute.xlu0 %3641
        %3643 = vrot.lane.b32.xlu0 %v3633, 48
        %v3644 = vpop.permute.xlu0 %3643
        %3645 = vrot.lane.b32.xlu0 %v3634, 48
        %v3646 = vpop.permute.xlu0 %3645
        %vm3651 = vcmask 454016
        %3652 = vst.msk [vmem:[#allocation10] sm:$0xf] %vm3651, %v3640
        %3653 = vst.msk [vmem:[#allocation10 + $0x20] sm:$0xf] %vm3651, %v3642
        %3654 = vst.msk [vmem:[#allocation10 + $0x40] sm:$0xf] %vm3651, %v3644
        %3655 = vst.msk [vmem:[#allocation10 + $0x60] sm:$0xf] %vm3651, %v3646
        %v3656 = vld [vmem:[%s3630 + $0x8] sm:$0xf]
        %v3657 = vld [vmem:[%s3630 + $0x18] sm:$0xf]
        %v3658 = vld [vmem:[%s3630 + $0x28] sm:$0xf]
        %v3659 = vld [vmem:[%s3630 + $0x38] sm:$0xf]
        %3664 = vrot.lane.b32.xlu0 %v3656, 56
        %v3665 = vpop.permute.xlu0 %3664
        %3666 = vrot.lane.b32.xlu0 %v3657, 56
        %v3667 = vpop.permute.xlu0 %3666
        %3668 = vrot.lane.b32.xlu0 %v3658, 56
        %v3669 = vpop.permute.xlu0 %3668
        %3670 = vrot.lane.b32.xlu0 %v3659, 56
        %v3671 = vpop.permute.xlu0 %3670
        %vm3676 = vcmask 519616
        %3677 = vst.msk [vmem:[#allocation10] sm:$0xf] %vm3676, %v3665
        %3678 = vst.msk [vmem:[#allocation10 + $0x20] sm:$0xf] %vm3676, %v3667
        %3679 = vst.msk [vmem:[#allocation10 + $0x40] sm:$0xf] %vm3676, %v3669
        %3680 = vst.msk [vmem:[#allocation10 + $0x60] sm:$0xf] %vm3676, %v3671
        %v3681 = vld [vmem:[%s3630 + $0x9] sm:$0xf]
        %v3682 = vld [vmem:[%s3630 + $0x19] sm:$0xf]
        %v3683 = vld [vmem:[%s3630 + $0x29] sm:$0xf]
        %v3684 = vld [vmem:[%s3630 + $0x39] sm:$0xf]
        %3689 = vrot.lane.b32.xlu0 %v3681, 64
        %v3690 = vpop.permute.xlu0 %3689
        %3691 = vrot.lane.b32.xlu0 %v3682, 64
        %v3692 = vpop.permute.xlu0 %3691
        %3693 = vrot.lane.b32.xlu0 %v3683, 64
        %v3694 = vpop.permute.xlu0 %3693
        %3695 = vrot.lane.b32.xlu0 %v3684, 64
        %v3696 = vpop.permute.xlu0 %3695
        %vm3701 = vcmask 585216
        %3702 = vst.msk [vmem:[#allocation10] sm:$0xf] %vm3701, %v3690
        %3703 = vst.msk [vmem:[#allocation10 + $0x20] sm:$0xf] %vm3701, %v3692
        %3704 = vst.msk [vmem:[#allocation10 + $0x40] sm:$0xf] %vm3701, %v3694
        %3705 = vst.msk [vmem:[#allocation10 + $0x60] sm:$0xf] %vm3701, %v3696
        %v3706 = vld [vmem:[#allocation10] sm:$0xf]
        %v3707 = vld [vmem:[#allocation10 + $0x20] sm:$0xf]
        %v3708 = vld [vmem:[#allocation10 + $0x40] sm:$0xf]
        %v3709 = vld [vmem:[#allocation10 + $0x60] sm:$0xf]
        %3714 = vst [vmem:[#allocation1] ss:$2 sm:$0xff] %v3706
        %s3715 = scalar_lea.vmem [#allocation1], 1
        %3716 = vst [vmem:[%s3715] ss:$2 sm:$0xff] %v3707
        %s3717 = scalar_lea.vmem [#allocation1], 16
        %3718 = vst [vmem:[%s3717] ss:$2 sm:$0xff] %v3708
        %s3719 = scalar_lea.vmem [#allocation1], 17
        %3720 = vst [vmem:[%s3719] ss:$2 sm:$0xff] %v3709
        %v3721 = vld.sshfl [vmem:[#allocation1] sm:$0xff pattern:$0x75316420]
        %v3722 = vld.sshfl [vmem:[#allocation1 + $0x10] sm:$0xff pattern:$0x75316420]
        %v3725 = vpack.c.bf16 %v3722, %v3721
        %v3726 = vld [vmem:[%s5] sm:$0xf]
        %v3727 = vld [vmem:[%s5 + $0x4] sm:$0xf]
        %v3728 = vld [vmem:[%s5 + $0x8] sm:$0xf]
        %v3729 = vld [vmem:[%s5 + $0xc] sm:$0xf]
        %v3730 = vld [vmem:[%s5 + $0x10] sm:$0xf]
        %v3731 = vld [vmem:[%s5 + $0x14] sm:$0xf]
        %v3732 = vld [vmem:[%s5 + $0x18] sm:$0xf]
        %v3733 = vld [vmem:[%s5 + $0x1c] sm:$0xf]
        %v3734 = vld [vmem:[%s5 + $0x20] sm:$0xf]
        %v3735 = vld [vmem:[%s6] sm:$0x1]
        %v3737 = vperm.slane %v3735, 0
        %v3748 = vunpack.c.l.b16 %v3726
        %v3749 = vunpack.c.l.b16 %v3727
        %v3750 = vunpack.c.l.b16 %v3728
        %v3751 = vunpack.c.l.b16 %v3729
        %v3752 = vunpack.c.l.b16 %v3730
        %v3753 = vunpack.c.l.b16 %v3731
        %v3754 = vunpack.c.l.b16 %v3732
        %v3755 = vunpack.c.l.b16 %v3733
        %v3756 = vunpack.c.l.b16 %v3734
        %v3757 = vpack.c.b16 %v3749, %v3748
        %v3758 = vpack.c.b16 %v3751, %v3750
        %v3759 = vpack.c.b16 %v3753, %v3752
        %v3760 = vpack.c.b16 %v3755, %v3754
        %v3761 = vpack.c.b16 %v3756, %v3756
        %v3767 = vsel %vm3323, %v3725, 0
        %v3770 = vsel %vm3336, %v3761, 0
        %3772 = vmatpush.bf16.msra.mxu0 0
        %3773 = vmatpush.bf16.msra.mxu0 0
        %3774 = vmatpush.bf16.msra.mxu0 0
        %3775 = vmatpush.bf16.msra.mxu0 %v3770
        %3776 = vmatpush.bf16.msra.mxu0 %v3760
        %3777 = vmatpush.bf16.msra.mxu0 %v3759
        %3778 = vmatpush.bf16.msra.mxu0 %v3758
        %3779 = vmatpush.bf16.msra.mxu0 %v3757
        %3780 = vmatmul.bf16.gmra.mxu0 %v3767
        %v3781 = vpop.f32.mrf.mxu0
        %v3782 = vadd.f32 %v3737, %v3781
        %v3783 = vpop.f32.mrf.mxu0
        %v3784 = vadd.f32 %v3737, %v3783
        %3785 = vdwg.mxu0
        %v3786 = vmax.f32 %v3782, 0.0
        %v3787 = vmax.f32 %v3784, 0.0
        %v3790 = vrot.slane %v3786, 4
        %v3791 = vrot.slane %v3787, 4
        %s3794 = scalar_lea.vmem [#allocation7], 16
        %vm3795 = vcmask 125952
        %3796 = vst.msk [vmem:[%s3794 + $0x8] sm:$0xf] %vm3795, %v3786
        %3797 = vst.msk [vmem:[%s3794 + $0x18] sm:$0xf] %vm3795, %v3790
        %3798 = vst.msk [vmem:[%s3794 + $0x28] sm:$0xf] %vm3795, %v3787
        %3799 = vst.msk [vmem:[%s3794 + $0x38] sm:$0xf] %vm3795, %v3791
        %s3800 = scalar_lea.vmem [#allocation7], 7
        %v3801 = vld [vmem:[%s3800] ss:$2 sm:$0x3]
        %s3802 = scalar_lea.vmem [#allocation7], 39
        %v3803 = vld [vmem:[%s3802] ss:$2 sm:$0x3]
        %s3804 = scalar_lea.vmem [#allocation7], 8
        %v3805 = vld [vmem:[%s3804] ss:$2 sm:$0x3]
        %s3806 = scalar_lea.vmem [#allocation7], 40
        %v3807 = vld [vmem:[%s3806] ss:$2 sm:$0x3]
        %v3808 = vmax.f32 %v3801, %v3805
        %v3809 = vmax.f32 %v3803, %v3807
        %s3810 = scalar_lea.vmem [#allocation7], 9
        %v3811 = vld [vmem:[%s3810] ss:$2 sm:$0x3]
        %s3812 = scalar_lea.vmem [#allocation7], 41
        %v3813 = vld [vmem:[%s3812] ss:$2 sm:$0x3]
        %v3814 = vmax.f32 %v3808, %v3811
        %v3815 = vmax.f32 %v3809, %v3813
        %s3816 = scalar_lea.vmem %s3794, 7 [#allocation7]
        %v3817 = vld [vmem:[%s3816] ss:$2 sm:$0x3]
        %s3818 = scalar_lea.vmem %s3794, 39 [#allocation7]
        %v3819 = vld [vmem:[%s3818] ss:$2 sm:$0x3]
        %v3820 = vmax.f32 %v3814, %v3817
        %v3821 = vmax.f32 %v3815, %v3819
        %s3822 = scalar_lea.vmem %s3794, 8 [#allocation7]
        %v3823 = vld [vmem:[%s3822] ss:$2 sm:$0x3]
        %s3824 = scalar_lea.vmem %s3794, 40 [#allocation7]
        %v3825 = vld [vmem:[%s3824] ss:$2 sm:$0x3]
        %v3826 = vmax.f32 %v3820, %v3823
        %v3827 = vmax.f32 %v3821, %v3825
        %s3828 = scalar_lea.vmem %s3794, 9 [#allocation7]
        %v3829 = vld [vmem:[%s3828] ss:$2 sm:$0x3]
        %s3830 = scalar_lea.vmem %s3794, 41 [#allocation7]
        %v3831 = vld [vmem:[%s3830] ss:$2 sm:$0x3]
        %v3832 = vmax.f32 %v3826, %v3829
        %v3833 = vmax.f32 %v3827, %v3831
        %s3834 = scalar_lea.vmem [#allocation7], 32
        %s3835 = scalar_lea.vmem %s3834, 7 [#allocation7]
        %v3836 = vld [vmem:[%s3835] ss:$2 sm:$0x3]
        %s3837 = scalar_lea.vmem %s3834, 39 [#allocation7]
        %v3838 = vld [vmem:[%s3837] ss:$2 sm:$0x3]
        %v3839 = vmax.f32 %v3832, %v3836
        %v3840 = vmax.f32 %v3833, %v3838
        %s3841 = scalar_lea.vmem %s3834, 8 [#allocation7]
        %v3842 = vld [vmem:[%s3841] ss:$2 sm:$0x3]
        %s3843 = scalar_lea.vmem %s3834, 40 [#allocation7]
        %v3844 = vld [vmem:[%s3843] ss:$2 sm:$0x3]
        %v3845 = vmax.f32 %v3839, %v3842
        %v3846 = vmax.f32 %v3840, %v3844
        %s3847 = scalar_lea.vmem %s3834, 9 [#allocation7]
        %v3848 = vld [vmem:[%s3847] ss:$2 sm:$0x3]
        %s3849 = scalar_lea.vmem %s3834, 41 [#allocation7]
        %v3850 = vld [vmem:[%s3849] ss:$2 sm:$0x3]
        %v3851 = vmax.f32 %v3845, %v3848
        %v3852 = vmax.f32 %v3846, %v3850
        %s3853 = scalar_lea.vmem [#allocation8], 16
        %vm3854 = vcmask 123904
        %3855 = vst.msk [vmem:[%s3853 + $0x8] sm:$0x3] %vm3854, %v3851
        %3856 = vst.msk [vmem:[%s3853 + $0x18] sm:$0x3] %vm3854, %v3852
        %v3857 = vld [vmem:[#allocation8 + $0x7] sm:$0x3]
        %v3858 = vld [vmem:[#allocation8 + $0x17] sm:$0x3]
        %3859 = vst.msk [vmem:[#allocation10] sm:$0x3] %vm3854, %v3857
        %3860 = vst.msk [vmem:[#allocation10 + $0x20] sm:$0x3] %vm3854, %v3858
        %v3861 = vld [vmem:[#allocation8 + $0x8] sm:$0x3]
        %v3862 = vld [vmem:[#allocation8 + $0x18] sm:$0x3]
        %3865 = vrot.lane.b32.xlu0 %v3861, 16
        %v3866 = vpop.permute.xlu0 %3865
        %3867 = vrot.lane.b32.xlu0 %v3862, 16
        %v3868 = vpop.permute.xlu0 %3867
        %vm3871 = vcmask 255104
        %3872 = vst.msk [vmem:[#allocation10] sm:$0x3] %vm3871, %v3866
        %3873 = vst.msk [vmem:[#allocation10 + $0x20] sm:$0x3] %vm3871, %v3868
        %v3874 = vld [vmem:[#allocation8 + $0x9] sm:$0x3]
        %v3875 = vld [vmem:[#allocation8 + $0x19] sm:$0x3]
        %3878 = vrot.lane.b32.xlu0 %v3874, 32
        %v3879 = vpop.permute.xlu0 %3878
        %3880 = vrot.lane.b32.xlu0 %v3875, 32
        %v3881 = vpop.permute.xlu0 %3880
        %vm3884 = vcmask 386304
        %3885 = vst.msk [vmem:[#allocation10] sm:$0x3] %vm3884, %v3879
        %3886 = vst.msk [vmem:[#allocation10 + $0x20] sm:$0x3] %vm3884, %v3881
        %v3887 = vld [vmem:[%s3853 + $0x7] sm:$0x3]
        %v3888 = vld [vmem:[%s3853 + $0x17] sm:$0x3]
        %3891 = vrot.lane.b32.xlu0 %v3887, 48
        %v3892 = vpop.permute.xlu0 %3891
        %3893 = vrot.lane.b32.xlu0 %v3888, 48
        %v3894 = vpop.permute.xlu0 %3893
        %vm3897 = vcmask 517504
        %3898 = vst.msk [vmem:[#allocation10] sm:$0x3] %vm3897, %v3892
        %3899 = vst.msk [vmem:[#allocation10 + $0x20] sm:$0x3] %vm3897, %v3894
        %v3900 = vld [vmem:[%s3853 + $0x8] sm:$0x3]
        %v3901 = vld [vmem:[%s3853 + $0x18] sm:$0x3]
        %3904 = vrot.lane.b32.xlu0 %v3900, 64
        %v3905 = vpop.permute.xlu0 %3904
        %3906 = vrot.lane.b32.xlu0 %v3901, 64
        %v3907 = vpop.permute.xlu0 %3906
        %vm3910 = vcmask 648704
        %3911 = vst.msk [vmem:[#allocation10] sm:$0x3] %vm3910, %v3905
        %3912 = vst.msk [vmem:[#allocation10 + $0x20] sm:$0x3] %vm3910, %v3907
        %v3913 = vld [vmem:[%s3853 + $0x9] sm:$0x3]
        %v3914 = vld [vmem:[%s3853 + $0x19] sm:$0x3]
        %3917 = vrot.lane.b32.xlu0 %v3913, 80
        %v3918 = vpop.permute.xlu0 %3917
        %3919 = vrot.lane.b32.xlu0 %v3914, 80
        %v3920 = vpop.permute.xlu0 %3919
        %vm3923 = vcmask 779904
        %3924 = vst.msk [vmem:[#allocation10] sm:$0x3] %vm3923, %v3918
        %3925 = vst.msk [vmem:[#allocation10 + $0x20] sm:$0x3] %vm3923, %v3920
        %s3926 = scalar_lea.vmem [#allocation8], 32
        %v3927 = vld [vmem:[%s3926 + $0x7] sm:$0x3]
        %v3928 = vld [vmem:[%s3926 + $0x17] sm:$0x3]
        %3931 = vrot.lane.b32.xlu0 %v3927, 96
        %v3932 = vpop.permute.xlu0 %3931
        %3933 = vrot.lane.b32.xlu0 %v3928, 96
        %v3934 = vpop.permute.xlu0 %3933
        %vm3937 = vcmask 911104
        %3938 = vst.msk [vmem:[#allocation10] sm:$0x3] %vm3937, %v3932
        %3939 = vst.msk [vmem:[#allocation10 + $0x20] sm:$0x3] %vm3937, %v3934
        %v3940 = vld [vmem:[%s3926 + $0x8] sm:$0x3]
        %v3941 = vld [vmem:[%s3926 + $0x18] sm:$0x3]
        %3944 = vrot.lane.b32.xlu0 %v3940, 112
        %v3945 = vpop.permute.xlu0 %3944
        %3946 = vrot.lane.b32.xlu0 %v3941, 112
        %v3947 = vpop.permute.xlu0 %3946
        %vm3950 = vcmask 1042304
        %3951 = vst.msk [vmem:[#allocation10] sm:$0x3] %vm3950, %v3945
        %3952 = vst.msk [vmem:[#allocation10 + $0x20] sm:$0x3] %vm3950, %v3947
        %v3953 = vld [vmem:[%s3926 + $0x9] sm:$0x3]
        %v3954 = vld [vmem:[%s3926 + $0x19] sm:$0x3]
        %3955 = vst.msk [vmem:[#allocation10 + $0x8] sm:$0x3] %vm3854, %v3953
        %3956 = vst.msk [vmem:[#allocation10 + $0x28] sm:$0x3] %vm3854, %v3954
        %v3957 = vld [vmem:[#allocation10] sm:$0x3]
        %v3958 = vld [vmem:[#allocation10 + $0x8] sm:$0x3]
        %v3959 = vld [vmem:[#allocation10 + $0x20] sm:$0x3]
        %v3960 = vld [vmem:[#allocation10 + $0x28] sm:$0x3]
        %v3965 = vrot.slane %v3958, 6
        %v3966 = vrot.slane %v3960, 6
        %v3967 = vsel %vm2486, %v3957, %v3965
        %v3968 = vsel %vm2486, %v3959, %v3966
        %3969 = vst [vmem:[#allocation1] ss:$4 sm:$0xff] %v3967
        %s3970 = scalar_lea.vmem [#allocation1], 1
        %3971 = vst [vmem:[%s3970] ss:$4 sm:$0xff] %v3968
        %v3972 = vld.sshfl [vmem:[#allocation1] sm:$0xff pattern:$0x73625140]
        %v3973 = vld.sshfl [vmem:[#allocation1 + $0x8] sm:$0xff pattern:$0x73625140]
        %v3976 = vpack.c.bf16 %v3972, %v3972
        %v3977 = vpack.c.bf16 %v3973, %v3973
        %v3978 = vld [vmem:[%s7] sm:$0xf]
        %v3979 = vld [vmem:[%s7 + $0x4] sm:$0xf]
        %v3980 = vld [vmem:[%s7 + $0x8] sm:$0xf]
        %v3981 = vld [vmem:[%s7 + $0xc] sm:$0xf]
        %v3982 = vld [vmem:[%s7 + $0x10] sm:$0xf]
        %v3983 = vld [vmem:[%s7 + $0x14] sm:$0xf]
        %v3984 = vld [vmem:[%s7 + $0x18] sm:$0xf]
        %v3985 = vld [vmem:[%s7 + $0x1c] sm:$0xf]
        %v3986 = vld [vmem:[%s7 + $0x20] sm:$0xf]
        %v3987 = vld [vmem:[%s7 + $0x24] sm:$0xf]
        %v3988 = vld [vmem:[%s7 + $0x28] sm:$0xf]
        %v3989 = vld [vmem:[%s7 + $0x2c] sm:$0xf]
        %v3990 = vld [vmem:[%s7 + $0x30] sm:$0xf]
        %v3991 = vld [vmem:[%s7 + $0x34] sm:$0xf]
        %v3992 = vld [vmem:[%s7 + $0x38] sm:$0xf]
        %v3993 = vld [vmem:[%s7 + $0x3c] sm:$0xf]
        %v3994 = vld [vmem:[%s7 + $0x40] sm:$0xf]
        %v3995 = vld [vmem:[%s7 + $0x44] sm:$0xf]
        %v3996 = vld [vmem:[%s8] sm:$0x1]
        %v3998 = vperm.slane %v3996, 0
        %v4018 = vunpack.c.l.b16 %v3978
        %v4019 = vunpack.c.l.b16 %v3979
        %v4020 = vunpack.c.l.b16 %v3980
        %v4021 = vunpack.c.l.b16 %v3981
        %v4022 = vunpack.c.l.b16 %v3982
        %v4023 = vunpack.c.l.b16 %v3983
        %v4024 = vunpack.c.l.b16 %v3984
        %v4025 = vunpack.c.l.b16 %v3985
        %v4026 = vunpack.c.l.b16 %v3986
        %v4027 = vunpack.c.l.b16 %v3987
        %v4028 = vunpack.c.l.b16 %v3988
        %v4029 = vunpack.c.l.b16 %v3989
        %v4030 = vunpack.c.l.b16 %v3990
        %v4031 = vunpack.c.l.b16 %v3991
        %v4032 = vunpack.c.l.b16 %v3992
        %v4033 = vunpack.c.l.b16 %v3993
        %v4034 = vunpack.c.l.b16 %v3994
        %v4035 = vunpack.c.l.b16 %v3995
        %v4036 = vpack.c.b16 %v4019, %v4018
        %v4037 = vpack.c.b16 %v4021, %v4020
        %v4038 = vpack.c.b16 %v4023, %v4022
        %v4039 = vpack.c.b16 %v4025, %v4024
        %v4040 = vpack.c.b16 %v4027, %v4026
        %v4041 = vpack.c.b16 %v4029, %v4028
        %v4042 = vpack.c.b16 %v4031, %v4030
        %v4043 = vpack.c.b16 %v4033, %v4032
        %v4044 = vpack.c.b16 %v4035, %v4034
        %v4055 = vsel %vm558, %v3977, 0
        %4057 = vmatpush.bf16.msra.mxu0 %v4043
        %4058 = vmatpush.bf16.msra.mxu0 %v4042
        %4059 = vmatpush.bf16.msra.mxu0 %v4041
        %4060 = vmatpush.bf16.msra.mxu0 %v4040
        %4061 = vmatpush.bf16.msra.mxu0 %v4039
        %4062 = vmatpush.bf16.msra.mxu0 %v4038
        %4063 = vmatpush.bf16.msra.mxu0 %v4037
        %4064 = vmatpush.bf16.msra.mxu0 %v4036
        %4065 = vmatmul.bf16.gmra.mxu0 %v3976
        %v4066 = vpop.f32.mrf.mxu0
        %v4067 = vadd.f32 %v3998, %v4066
        %v4068 = vpop.f32.mrf.mxu0
        %4069 = vdwg.mxu0
        %4070 = vmatpush.bf16.msra.mxu0 0
        %4071 = vmatpush.bf16.msra.mxu0 0
        %4072 = vmatpush.bf16.msra.mxu0 0
        %4073 = vmatpush.bf16.msra.mxu0 0
        %4074 = vmatpush.bf16.msra.mxu0 0
        %4075 = vmatpush.bf16.msra.mxu0 0
        %4076 = vmatpush.bf16.msra.mxu0 0
        %4077 = vmatpush.bf16.msra.mxu0 %v4044
        %4078 = vmatmul.bf16.gmra.mxu0 %v4055
        %v4079 = vpop.f32.mrf.mxu0
        %v4080 = vadd.f32 %v4067, %v4079
        %v4081 = vpop.f32.mrf.mxu0
        %4082 = vdwg.mxu0
        %v4083 = vmax.f32 %v4080, 0.0
        %v4085 = vrot.slane %v4083, 2
        %s4087 = scalar_lea.vmem [#allocation9], 16
        %4088 = vst.msk [vmem:[%s4087 + $0x8] sm:$0x3] %vm3854, %v4083
        %4089 = vst.msk [vmem:[%s4087 + $0x18] sm:$0x3] %vm3854, %v4085
        %s4090 = scalar_lea.vmem [#allocation9], 7
        %v4091 = vld [vmem:[%s4090] ss:$2 sm:$0x1]
        %s4092 = scalar_lea.vmem [#allocation9], 8
        %v4093 = vld [vmem:[%s4092] ss:$2 sm:$0x1]
        %v4094 = vmax.f32 %v4091, %v4093
        %s4095 = scalar_lea.vmem [#allocation9], 9
        %v4096 = vld [vmem:[%s4095] ss:$2 sm:$0x1]
        %v4097 = vmax.f32 %v4094, %v4096
        %s4098 = scalar_lea.vmem %s4087, 7 [#allocation9]
        %v4099 = vld [vmem:[%s4098] ss:$2 sm:$0x1]
        %v4100 = vmax.f32 %v4097, %v4099
        %s4101 = scalar_lea.vmem %s4087, 8 [#allocation9]
        %v4102 = vld [vmem:[%s4101] ss:$2 sm:$0x1]
        %v4103 = vmax.f32 %v4100, %v4102
        %s4104 = scalar_lea.vmem %s4087, 9 [#allocation9]
        %v4105 = vld [vmem:[%s4104] ss:$2 sm:$0x1]
        %v4106 = vmax.f32 %v4103, %v4105
        %s4107 = scalar_lea.vmem [#allocation9], 32
        %s4108 = scalar_lea.vmem %s4107, 7 [#allocation9]
        %v4109 = vld [vmem:[%s4108] ss:$2 sm:$0x1]
        %v4110 = vmax.f32 %v4106, %v4109
        %s4111 = scalar_lea.vmem %s4107, 8 [#allocation9]
        %v4112 = vld [vmem:[%s4111] ss:$2 sm:$0x1]
        %v4113 = vmax.f32 %v4110, %v4112
        %s4114 = scalar_lea.vmem %s4107, 9 [#allocation9]
        %v4115 = vld [vmem:[%s4114] ss:$2 sm:$0x1]
        %v4116 = vmax.f32 %v4113, %v4115
        %v4117 = vpack.c.bf16 %v4116, %v4116
        %v4118 = vld [vmem:[%s9] sm:$0xf]
        %v4119 = vld [vmem:[%s9 + $0x4] sm:$0xf]
        %v4120 = vld [vmem:[%s10] sm:$0x1]
        %v4123 = vunpack.c.l.b16 %v4118
        %v4124 = vunpack.c.l.b16 %v4119
        %v4125 = vpack.c.b16 %v4124, %v4123
        %v4128 = vsel %vm558, %v4117, 0
        %4130 = vmatpush.bf16.msra.mxu0 0
        %4131 = vmatpush.bf16.msra.mxu0 0
        %4132 = vmatpush.bf16.msra.mxu0 0
        %4133 = vmatpush.bf16.msra.mxu0 0
        %4134 = vmatpush.bf16.msra.mxu0 0
        %4135 = vmatpush.bf16.msra.mxu0 0
        %4136 = vmatpush.bf16.msra.mxu0 0
        %4137 = vmatpush.bf16.msra.mxu0 %v4125
        %4138 = vmatmul.bf16.gmra.mxu0 %v4128
        %v4139 = vpop.f32.mrf.mxu0
        %v4140 = vadd.f32 %v4120, %v4139
        %v4141 = vpop.f32.mrf.mxu0
        %4142 = vdwg.mxu0
        %v4143 = vmax.f32 %v4140, 0.0
        %v4144 = vpack.c.bf16 %v4143, %v4143
        %v4145 = vld [vmem:[%s11] sm:$0xf]
        %v4146 = vld [vmem:[%s11 + $0x4] sm:$0xf]
        %v4147 = vld [vmem:[%s11 + $0x8] sm:$0xf]
        %v4148 = vld [vmem:[%s11 + $0xc] sm:$0xf]
        %v4149 = vld [vmem:[%s12] sm:$0x1]
        %v4154 = vunpack.c.l.b16 %v4145
        %v4155 = vunpack.c.l.b16 %v4146
        %v4156 = vunpack.c.l.b16 %v4147
        %v4157 = vunpack.c.l.b16 %v4148
        %v4158 = vpack.c.b16 %v4155, %v4154
        %v4159 = vpack.c.b16 %v4157, %v4156
        %vm4162 = vcmask 261120
        %v4164 = vsel %vm4162, %v4144, 0
        %4166 = vmatpush.bf16.msra.mxu0 0
        %4167 = vmatpush.bf16.msra.mxu0 0
        %4168 = vmatpush.bf16.msra.mxu0 0
        %4169 = vmatpush.bf16.msra.mxu0 0
        %4170 = vmatpush.bf16.msra.mxu0 0
        %4171 = vmatpush.bf16.msra.mxu0 0
        %4172 = vmatpush.bf16.msra.mxu0 %v4159
        %4173 = vmatpush.bf16.msra.mxu0 %v4158
        %4174 = vmatmul.bf16.gmra.mxu0 %v4164
        %v4175 = vpop.f32.mrf.mxu0
        %v4176 = vadd.f32 %v4149, %v4175
        %v4177 = vpop.f32.mrf.mxu0
        %4178 = vdwg.mxu0
        %vm4179 = vcmask 73728
        %v4180 = vsel %vm4179, %v4176, -inf
        %4181 = vmax.xlane.f32.xlu0 %v4180
        %v4182 = vpop.xlane.xlu0 %4181
        %v4183 = vsub.f32 %v4176, %v4182
        %v4184 = vmul.f32 %v4183, 1.442695
        %v4185 = vpow.pop %v4184
        %v4186 = vsel %vm4179, %v4185, 0.0
        %4187 = vadd.xlane.f32.xlu0 %v4186
        %v4188 = vpop.xlane.xlu0 %4187
        %v4189 = vrcp.pop %v4188
        %v4190 = vmul.f32 %v4185, %v4189
        %4191 = vst.msk [vmem:[%s432] sm:$0x1] %vm4179, %v4190
        %s4192 = sand.u32 %s313, 1
        %s4193 = scalar_lea.sflag [#allocation12], %s4192
        %s4194 = sand.u32 %s313, 1
        %s4195 = scalar_lea.vmem [#allocation11], %s4194
        // Predicated region
        $region73: #{cnn_forward.1} parent=71 // pred_check
          %p4196 = pneg %p323
        $region74: #{cnn_forward.1} parent=71 // pred_check_branch
          %4198 = sbr.rel (%p4196) target = $region76
        $region75: #{cnn_forward.1} parent=71 // pred_region
          %4200 = vsyncadd %s4193, 0
          %s4201 = scalar_lea.hbm %s13, %s27
          %s4203 = sshll.u32 %s4195, 4
          %s4204 = int_to_ptr.vmem [resolvable:$true] %s4203
          %s4205 = sshll.u32 %s4201, 4
          %s4206 = int_to_ptr.hbm [resolvable:$true] %s4205
          %4208 = dma.vmem_to_hbm [thread:$0]  %s4204, 16, %s4206, %s4193
        $region76: #{cnn_forward.1} parent=71 // pred_fallthru
          _
      $region72: #{cnn_forward.1} parent=5 // pred_fallthru
        _
      %p4209 = scmp.le.s32.totalorder 2, %s22
      // Predicated region
      $region77: #{cnn_forward.1} parent=5 // pred_check
        %p4210 = pneg %p4209
      $region78: #{cnn_forward.1} parent=5 // pred_check_branch
        %4212 = sbr.rel (%p4210) target = $region80
      $region79: #{cnn_forward.1} parent=5 // pred_region
        %s4213 = ssub.s32 %s22, 2
        // Predicated region
        $region81: #{cnn_forward.1} parent=79 // pred_check
          %p4214 = pneg %p329
        $region82: #{cnn_forward.1} parent=79 // pred_check_branch
          %4216 = sbr.rel (%p4214) target = $region84
        $region83: #{cnn_forward.1} parent=79 // pred_region
          %s4217 = sand.u32 %s314, 1
          %s4218 = scalar_lea.sflag [#allocation12], %s4217
          %s4219 = sand.u32 %s314, 1
          %s4220 = scalar_lea.vmem [#allocation11], %s4219
          %4222 = dma.done %s4218, 16
        $region84: #{cnn_forward.1} parent=79 // pred_fallthru
          _
      $region80: #{cnn_forward.1} parent=5 // pred_fallthru
        _
    $region6: #{cnn_forward.1} parent=1 // loop_footer
      %s26 = sadd.s32 1, %s22
    $region7: #{cnn_forward.1} parent=1 // loop_footer_branch
      %21 = sbr.rel target = $region3
    $region8: #{cnn_forward.1} parent=1 // loop_exit
      _
    %4223 = vsyncpa [#allocation12], 1
    %s4224 = scalar_lea.sflag [#allocation12], 1
    %4225 = vsyncpa %s4224, 1

</llo_original>
